<compile_context>
chip_gen: v6e
topology: v6e:2x2x1
jax: 0.10.0
libtpu: 0.0.40
codegen_flags: <defaults>
</compile_context>

<pallas_src>
import jax
import jax.numpy as jnp
import numpy as np
from jax.experimental import pallas as pl
from jax.experimental.pallas import tpu as pltpu


# ---------------------------------------------------------------------------
# Fused kernel factory
# ---------------------------------------------------------------------------
def make_kernel(n_layers, T, B, H):
    G = 4 * H                         # gates per direction
    n_weight_args = 3 + 4 * (n_layers - 1)
    unroll = True if T <= 8 else 8    # bounded unroll at production T

    def kernel(*refs):
        x_ref = refs[0]                                   # (T*B, Din)
        w_refs = refs[1:1 + n_weight_args]
        lwf_ref = refs[1 + n_weight_args]                 # (1, H)
        lwb_ref = refs[2 + n_weight_args]                 # (1, H)
        lb_ref = refs[3 + n_weight_args]                  # (1, 1)
        out_ref = refs[4 + n_weight_args]                 # (T*B, 1)
        xw_sc = refs[5 + n_weight_args]                   # (T*B, 8H)
        hf_seq = refs[6 + n_weight_args]                  # (T*B, H)  fwd hidden seq
        hb_seq = refs[7 + n_weight_args]                  # (T*B, H)  bwd hidden seq

        widx = 0
        for li in range(n_layers):
            # ---- batched input projection (one matmul, off the serial path) ----
            if li == 0:
                wih_ref, whh_ref, b_ref = (w_refs[widx], w_refs[widx + 1],
                                           w_refs[widx + 2])
                widx += 3
                p = jnp.dot(x_ref[...], wih_ref[...],
                            preferred_element_type=jnp.float32)       # (T*B, 8H)
            else:
                wif_ref, wib_ref, whh_ref, b_ref = (w_refs[widx], w_refs[widx + 1],
                                                    w_refs[widx + 2], w_refs[widx + 3])
                widx += 4
                p = (jnp.dot(hf_seq[...], wif_ref[...],
                             preferred_element_type=jnp.float32)
                     + jnp.dot(hb_seq[...], wib_ref[...],
                               preferred_element_type=jnp.float32))   # (T*B, 8H)
            xw_sc[...] = p + b_ref[...]

            whh_mat = whh_ref[...]          # (2H, 8H) block-diag; hoisted from loop

            # ---- fused bidirectional recurrence: one MXU dot per step ----
            def step(t, carry, whh_mat=whh_mat):
                h, c_f, c_b = carry                                   # (B,2H),(B,H),(B,H)
                gh = jnp.dot(h, whh_mat,
                             preferred_element_type=jnp.float32)      # (B, 8H)
                rf = t * B                       # rows of time t       (forward)
                rb = (T - 1 - t) * B             # rows of time T-1-t   (backward)
                # i/f/o columns were pre-scaled by 0.5; sigmoid(x)=0.5*tanh(0.5x)+0.5
                a_f = jnp.tanh(gh[:, :G] + xw_sc[pl.ds(rf, B), :G])   # (B, 4H)
                a_b = jnp.tanh(gh[:, G:] + xw_sc[pl.ds(rb, B), G:])   # (B, 4H)

                def halfcell(a, c):
                    i_g = 0.5 * a[:, 0 * H:1 * H] + 0.5
                    f_g = 0.5 * a[:, 1 * H:2 * H] + 0.5
                    g_g = a[:, 2 * H:3 * H]
                    o_g = 0.5 * a[:, 3 * H:4 * H] + 0.5
                    c_new = f_g * c + i_g * g_g
                    return o_g * jnp.tanh(c_new), c_new

                h_f, c_f = halfcell(a_f, c_f)
                h_b, c_b = halfcell(a_b, c_b)
                # full-extent (lane-dense) stores -- no interleaved half-lane writes
                hf_seq[pl.ds(rf, B), :] = h_f
                hb_seq[pl.ds(rb, B), :] = h_b
                return jnp.concatenate([h_f, h_b], axis=1), c_f, c_b

            h0 = jnp.zeros((B, 2 * H), jnp.float32)
            c0 = jnp.zeros((B, H), jnp.float32)
            jax.lax.fori_loop(0, T, step, (h0, c0, c0), unroll=unroll)

        # ---- TimeDistributed(Linear(2H,1)) + sigmoid head (fused, no N=1 matmul) ----
        z = (jnp.sum(hf_seq[...] * lwf_ref[...], axis=-1, keepdims=True)
             + jnp.sum(hb_seq[...] * lwb_ref[...], axis=-1, keepdims=True)
             + lb_ref[...])                                            # (T*B, 1)
        out_ref[...] = jax.nn.sigmoid(z)

    return kernel


# ---------------------------------------------------------------------------
# One-time parameter preparation (fusion / gate pre-scaling) -- NOT per call
# ---------------------------------------------------------------------------
def _gate_scale(H):
    # sigmoid(x) = 0.5*tanh(0.5x)+0.5  ->  pre-scale i,f,o columns by 0.5
    return jnp.concatenate([jnp.full((H,), 0.5, jnp.float32),
                            jnp.full((H,), 0.5, jnp.float32),
                            jnp.ones((H,), jnp.float32),
                            jnp.full((H,), 0.5, jnp.float32)])


def prepare_params(params):
    H = params["lstm"][0][0][1].shape[0]
    s = _gate_scale(H)
    weights = []
    for li, ((wih_f, whh_f, b_f), (wih_b, whh_b, b_b)) in enumerate(params["lstm"]):
        wf = (wih_f * s).astype(jnp.float32)                 # (Din, 4H)
        wb = (wih_b * s).astype(jnp.float32)
        if li == 0:
            weights.append(jnp.concatenate([wf, wb], axis=1))           # (Din, 8H)
        else:
            # layer input is [h_fwd | h_bwd]; split rows by which half they consume
            weights.append(jnp.concatenate([wf[:H], wb[:H]], axis=1))   # (H, 8H)
            weights.append(jnp.concatenate([wf[H:], wb[H:]], axis=1))   # (H, 8H)
        z = jnp.zeros((H, 4 * H), jnp.float32)
        whh_blk = jnp.concatenate(
            [jnp.concatenate([whh_f * s, z], axis=1),
             jnp.concatenate([z, whh_b * s], axis=1)], axis=0)          # (2H, 8H)
        weights.append(whh_blk.astype(jnp.float32))
        weights.append(jnp.concatenate([b_f * s, b_b * s], axis=1)
                       .astype(jnp.float32))                            # (1, 8H)
    lw = params["linear_w"].reshape(2 * H).astype(jnp.float32)
    return {
        "weights": tuple(weights),
        "lwf": lw[:H].reshape(1, H),
        "lwb": lw[H:].reshape(1, H),
        "lb": params["linear_b"].reshape(1, 1).astype(jnp.float32),
    }


# ---------------------------------------------------------------------------
# Forward wrapper (single pallas_call)
# ---------------------------------------------------------------------------
def birnn_char_tagger_forward(prepared, X):
    """X: (B, T, input_dim), batch_first=True like the PyTorch module.
    Returns (B, T, 1) float32."""
    B, T, din = X.shape
    H = prepared["lwf"].shape[1]
    n_layers = (len(prepared["weights"]) + 1) // 4

    # flat time-major layer-0 input: row t*B + b == X[b, t]  (tiny tensor)
    x_flat = jnp.transpose(X, (1, 0, 2)).reshape(T * B, din).astype(jnp.float32)

    kernel = make_kernel(n_layers, T, B, H)
    n_in = 1 + len(prepared["weights"]) + 3
    out_flat = pl.pallas_call(
        kernel,
        out_shape=jax.ShapeDtypeStruct((T * B, 1), jnp.float32),
        in_specs=[pl.BlockSpec(memory_space=pltpu.MemorySpace.VMEM)] * n_in,
        out_specs=pl.BlockSpec(memory_space=pltpu.MemorySpace.VMEM),
        scratch_shapes=[pltpu.VMEM((T * B, 8 * H), jnp.float32),   # xw (both dirs)
                        pltpu.VMEM((T * B, H), jnp.float32),       # fwd hidden seq
                        pltpu.VMEM((T * B, H), jnp.float32)],      # bwd hidden seq
    )(x_flat, *prepared["weights"], prepared["lwf"], prepared["lwb"], prepared["lb"])

    # rows are t-major -> batch_first (B, T, 1)
    return jnp.transpose(out_flat.reshape(T, B, 1), (1, 0, 2))


# ---------------------------------------------------------------------------
# Deterministic parameter init (same shapes / init range as nn.LSTM, nn.Linear)
# ---------------------------------------------------------------------------
def init_params(key, lstm_layers, input_dim, out_dim):
    H = out_dim
    bound = 1.0 / np.sqrt(H)
    params = {"lstm": []}
    for layer in range(lstm_layers):
        din = input_dim if layer == 0 else 2 * H
        layer_p = []
        for _direction in range(2):
            key, k1, k2, k3, k4 = jax.random.split(key, 5)
            wih = jax.random.uniform(k1, (din, 4 * H), jnp.float32, -bound, bound)
            whh = jax.random.uniform(k2, (H, 4 * H), jnp.float32, -bound, bound)
            bih = jax.random.uniform(k3, (4 * H,), jnp.float32, -bound, bound)
            bhh = jax.random.uniform(k4, (4 * H,), jnp.float32, -bound, bound)
            layer_p.append((wih, whh, (bih + bhh).reshape(1, 4 * H)))
        params["lstm"].append(layer_p)
    lb = 1.0 / np.sqrt(2 * H)
    key, k1, k2 = jax.random.split(key, 3)
    params["linear_w"] = jax.random.uniform(k1, (2 * H, 1), jnp.float32, -lb, lb)
    params["linear_b"] = jax.random.uniform(k2, (1, 1), jnp.float32, -lb, lb)
    return params


# ---------------------------------------------------------------------------
# Pure-JAX reference (same math) for correctness check
# ---------------------------------------------------------------------------
def _ref_lstm_dir(x, wih, whh, b):
    T, B, _ = x.shape
    H = whh.shape[0]

    def step(carry, x_t):
        h, c = carry
        gates = x_t @ wih + h @ whh + b
        i = jax.nn.sigmoid(gates[:, 0 * H:1 * H])
        f = jax.nn.sigmoid(gates[:, 1 * H:2 * H])
        g = jnp.tanh(gates[:, 2 * H:3 * H])
        o = jax.nn.sigmoid(gates[:, 3 * H:4 * H])
        c = f * c + i * g
        h = o * jnp.tanh(c)
        return (h, c), h

    init = (jnp.zeros((B, H), jnp.float32), jnp.zeros((B, H), jnp.float32))
    _, hs = jax.lax.scan(step, init, x)
    return hs


def reference_forward(params, X):
    B, T, _ = X.shape
    x = jnp.transpose(X, (1, 0, 2))
    for layer_p in params["lstm"]:
        outs = []
        for d, (wih, whh, b) in enumerate(layer_p):
            xin = x[::-1] if d == 1 else x
            h = _ref_lstm_dir(xin, wih, whh, b)
            if d == 1:
                h = h[::-1]
            outs.append(h)
        x = jnp.concatenate(outs, axis=-1)
    flat = jnp.transpose(x, (1, 0, 2)).reshape(B * T, -1)
    out = jax.nn.sigmoid(flat @ params["linear_w"] + params["linear_b"])
    return out.reshape(B, T, 1)


# ---------------------------------------------------------------------------
if __name__ == "__main__":
    LSTM_LAYERS = 2
    INPUT_DIM = 16
    OUT_DIM = 32          # LSTM hidden size per direction
    BATCH = 2
    SEQ = 8

    key = jax.random.PRNGKey(0)
    pkey, xkey = jax.random.split(key)
    params = init_params(pkey, LSTM_LAYERS, INPUT_DIM, OUT_DIM)
    X = jax.random.normal(xkey, (BATCH, SEQ, INPUT_DIM), jnp.float32)

    prepared = prepare_params(params)          # one-time weight fusion / scaling
    out = jax.jit(birnn_char_tagger_forward)(prepared, X)
    out = jax.block_until_ready(out)

    ref = reference_forward(params, X)
    np.testing.assert_allclose(np.asarray(out), np.asarray(ref),
                               rtol=1e-4, atol=1e-4)
    assert out.shape == (BATCH, SEQ, 1)
    print("KERNEL_OK")
</pallas_src>

<mosaic_0001>
module attributes {stable_mosaic.version = 11 : i64} {
  func.func @kernel(%arg0: memref<16x16xf32, #tpu.memory_space<vmem>>, %arg1: memref<16x256xf32, #tpu.memory_space<vmem>>, %arg2: memref<64x256xf32, #tpu.memory_space<vmem>>, %arg3: memref<1x256xf32, #tpu.memory_space<vmem>>, %arg4: memref<32x256xf32, #tpu.memory_space<vmem>>, %arg5: memref<32x256xf32, #tpu.memory_space<vmem>>, %arg6: memref<64x256xf32, #tpu.memory_space<vmem>>, %arg7: memref<1x256xf32, #tpu.memory_space<vmem>>, %arg8: memref<1x32xf32, #tpu.memory_space<vmem>>, %arg9: memref<1x32xf32, #tpu.memory_space<vmem>>, %arg10: memref<1x1xf32, #tpu.memory_space<vmem>>, %arg11: memref<16x1xf32, #tpu.memory_space<vmem>>, %arg12: memref<16x256xf32, #tpu.memory_space<vmem>>, %arg13: memref<16x32xf32, #tpu.memory_space<vmem>>, %arg14: memref<16x32xf32, #tpu.memory_space<vmem>>) attributes {dimension_semantics = [], scalar_prefetch = 0 : i64, scratch_operands = 3 : i64, tpu.core_type = #tpu.core_type<tc>} {
    %c0 = arith.constant 0 : index
    %c0_0 = arith.constant 0 : index
    %0 = vector.load %arg0[%c0, %c0_0] : memref<16x16xf32, #tpu.memory_space<vmem>>, vector<16x16xf32>
    %c0_1 = arith.constant 0 : index
    %c0_2 = arith.constant 0 : index
    %1 = vector.load %arg1[%c0_1, %c0_2] : memref<16x256xf32, #tpu.memory_space<vmem>>, vector<16x256xf32>
    %cst = arith.constant dense<0.000000e+00> : vector<16x256xf32>
    %2 = tpu.matmul %0, %1, %cst {dimension_numbers = #tpu.dot_dimension_numbers<[1], [0], [0], [1], [0, 0, 1, 1], [], []>} : vector<16x16xf32>, vector<16x256xf32>, vector<16x256xf32> -> vector<16x256xf32>
    %c0_3 = arith.constant 0 : index
    %c0_4 = arith.constant 0 : index
    %3 = vector.load %arg3[%c0_3, %c0_4] : memref<1x256xf32, #tpu.memory_space<vmem>>, vector<1x256xf32>
    %4 = vector.broadcast %3 : vector<1x256xf32> to vector<16x256xf32>
    %5 = arith.addf %2, %4 : vector<16x256xf32>
    %c0_5 = arith.constant 0 : index
    %c0_6 = arith.constant 0 : index
    %6 = vector.load %arg12[%c0_5, %c0_6] : memref<16x256xf32, #tpu.memory_space<vmem>>, vector<16x256xf32>
    tpu.vector_store %arg12[%c0_5, %c0_6], %5 {strides = array<i32>} : memref<16x256xf32, #tpu.memory_space<vmem>>, vector<16x256xf32>,
    %c0_7 = arith.constant 0 : index
    %c0_8 = arith.constant 0 : index
    %7 = vector.load %arg2[%c0_7, %c0_8] : memref<64x256xf32, #tpu.memory_space<vmem>>, vector<64x256xf32>
    %cst_9 = arith.constant 0.000000e+00 : f32
    %8 = vector.broadcast %cst_9 : f32 to vector<2x64xf32>
    %cst_10 = arith.constant 0.000000e+00 : f32
    %9 = vector.broadcast %cst_10 : f32 to vector<2x32xf32>
    %c0_i32 = arith.constant 0 : i32
    %cst_11 = arith.constant dense<0.000000e+00> : vector<2x256xf32>
    %10 = tpu.matmul %8, %7, %cst_11 {dimension_numbers = #tpu.dot_dimension_numbers<[1], [0], [0], [1], [0, 0, 1, 1], [], []>} : vector<2x64xf32>, vector<64x256xf32>, vector<2x256xf32> -> vector<2x256xf32>
    %c2_i32 = arith.constant 2 : i32
    %11 = arith.muli %c0_i32, %c2_i32 : i32
    %c7_i32 = arith.constant 7 : i32
    %12 = arith.subi %c7_i32, %c0_i32 : i32
    %c2_i32_12 = arith.constant 2 : i32
    %13 = arith.muli %12, %c2_i32_12 : i32
    %14 = vector.extract_strided_slice %10 {offsets = [0, 0], sizes = [2, 128], strides = [1, 1]} : vector<2x256xf32> to vector<2x128xf32>
    %15 = arith.index_cast %11 : i32 to index
    %c0_13 = arith.constant 0 : index
    %16 = vector.load %arg12[%15, %c0_13] : memref<16x256xf32, #tpu.memory_space<vmem>>, vector<2x128xf32>
    %17 = arith.addf %14, %16 : vector<2x128xf32>
    %18 = math.tanh %17 : vector<2x128xf32>
    %19 = vector.extract_strided_slice %10 {offsets = [0, 128], sizes = [2, 128], strides = [1, 1]} : vector<2x256xf32> to vector<2x128xf32>
    %20 = arith.index_cast %13 : i32 to index
    %c128 = arith.constant 128 : index
    %21 = vector.load %arg12[%20, %c128] : memref<16x256xf32, #tpu.memory_space<vmem>>, vector<2x128xf32>
    %22 = arith.addf %19, %21 : vector<2x128xf32>
    %23 = math.tanh %22 : vector<2x128xf32>
    %24 = vector.extract_strided_slice %18 {offsets = [0, 0], sizes = [2, 32], strides = [1, 1]} : vector<2x128xf32> to vector<2x32xf32>
    %cst_14 = arith.constant 5.000000e-01 : f32
    %25 = vector.broadcast %cst_14 : f32 to vector<2x32xf32>
    %26 = arith.mulf %25, %24 : vector<2x32xf32>
    %cst_15 = arith.constant 5.000000e-01 : f32
    %27 = vector.broadcast %cst_15 : f32 to vector<2x32xf32>
    %28 = arith.addf %26, %27 : vector<2x32xf32>
    %29 = vector.extract_strided_slice %18 {offsets = [0, 32], sizes = [2, 32], strides = [1, 1]} : vector<2x128xf32> to vector<2x32xf32>
    %cst_16 = arith.constant 5.000000e-01 : f32
    %30 = vector.broadcast %cst_16 : f32 to vector<2x32xf32>
    %31 = arith.mulf %30, %29 : vector<2x32xf32>
    %cst_17 = arith.constant 5.000000e-01 : f32
    %32 = vector.broadcast %cst_17 : f32 to vector<2x32xf32>
    %33 = arith.addf %31, %32 : vector<2x32xf32>
    %34 = vector.extract_strided_slice %18 {offsets = [0, 64], sizes = [2, 32], strides = [1, 1]} : vector<2x128xf32> to vector<2x32xf32>
    %35 = vector.extract_strided_slice %18 {offsets = [0, 96], sizes = [2, 32], strides = [1, 1]} : vector<2x128xf32> to vector<2x32xf32>
    %cst_18 = arith.constant 5.000000e-01 : f32
    %36 = vector.broadcast %cst_18 : f32 to vector<2x32xf32>
    %37 = arith.mulf %36, %35 : vector<2x32xf32>
    %cst_19 = arith.constant 5.000000e-01 : f32
    %38 = vector.broadcast %cst_19 : f32 to vector<2x32xf32>
    %39 = arith.addf %37, %38 : vector<2x32xf32>
    %40 = arith.mulf %33, %9 : vector<2x32xf32>
    %41 = arith.mulf %28, %34 : vector<2x32xf32>
    %42 = arith.addf %40, %41 : vector<2x32xf32>
    %43 = math.tanh %42 : vector<2x32xf32>
    %44 = arith.mulf %39, %43 : vector<2x32xf32>
    %45 = vector.extract_strided_slice %23 {offsets = [0, 0], sizes = [2, 32], strides = [1, 1]} : vector<2x128xf32> to vector<2x32xf32>
    %cst_20 = arith.constant 5.000000e-01 : f32
    %46 = vector.broadcast %cst_20 : f32 to vector<2x32xf32>
    %47 = arith.mulf %46, %45 : vector<2x32xf32>
    %cst_21 = arith.constant 5.000000e-01 : f32
    %48 = vector.broadcast %cst_21 : f32 to vector<2x32xf32>
    %49 = arith.addf %47, %48 : vector<2x32xf32>
    %50 = vector.extract_strided_slice %23 {offsets = [0, 32], sizes = [2, 32], strides = [1, 1]} : vector<2x128xf32> to vector<2x32xf32>
    %cst_22 = arith.constant 5.000000e-01 : f32
    %51 = vector.broadcast %cst_22 : f32 to vector<2x32xf32>
    %52 = arith.mulf %51, %50 : vector<2x32xf32>
    %cst_23 = arith.constant 5.000000e-01 : f32
    %53 = vector.broadcast %cst_23 : f32 to vector<2x32xf32>
    %54 = arith.addf %52, %53 : vector<2x32xf32>
    %55 = vector.extract_strided_slice %23 {offsets = [0, 64], sizes = [2, 32], strides = [1, 1]} : vector<2x128xf32> to vector<2x32xf32>
    %56 = vector.extract_strided_slice %23 {offsets = [0, 96], sizes = [2, 32], strides = [1, 1]} : vector<2x128xf32> to vector<2x32xf32>
    %cst_24 = arith.constant 5.000000e-01 : f32
    %57 = vector.broadcast %cst_24 : f32 to vector<2x32xf32>
    %58 = arith.mulf %57, %56 : vector<2x32xf32>
    %cst_25 = arith.constant 5.000000e-01 : f32
    %59 = vector.broadcast %cst_25 : f32 to vector<2x32xf32>
    %60 = arith.addf %58, %59 : vector<2x32xf32>
    %61 = arith.mulf %54, %9 : vector<2x32xf32>
    %62 = arith.mulf %49, %55 : vector<2x32xf32>
    %63 = arith.addf %61, %62 : vector<2x32xf32>
    %64 = math.tanh %63 : vector<2x32xf32>
    %65 = arith.mulf %60, %64 : vector<2x32xf32>
    %66 = arith.index_cast %11 : i32 to index
    %c0_26 = arith.constant 0 : index
    %67 = vector.load %arg13[%66, %c0_26] : memref<16x32xf32, #tpu.memory_space<vmem>>, vector<2x32xf32>
    tpu.vector_store %arg13[%66, %c0_26], %44 {strides = array<i32>} : memref<16x32xf32, #tpu.memory_space<vmem>>, vector<2x32xf32>,
    %68 = arith.index_cast %13 : i32 to index
    %c0_27 = arith.constant 0 : index
    %69 = vector.load %arg14[%68, %c0_27] : memref<16x32xf32, #tpu.memory_space<vmem>>, vector<2x32xf32>
    tpu.vector_store %arg14[%68, %c0_27], %65 {strides = array<i32>} : memref<16x32xf32, #tpu.memory_space<vmem>>, vector<2x32xf32>,
    %70 = tpu.concatenate %44, %65 in 1 : vector<2x32xf32>, vector<2x32xf32> -> vector<2x64xf32>
    %c1_i32 = arith.constant 1 : i32
    %cst_28 = arith.constant dense<0.000000e+00> : vector<2x256xf32>
    %71 = tpu.matmul %70, %7, %cst_28 {dimension_numbers = #tpu.dot_dimension_numbers<[1], [0], [0], [1], [0, 0, 1, 1], [], []>} : vector<2x64xf32>, vector<64x256xf32>, vector<2x256xf32> -> vector<2x256xf32>
    %c2_i32_29 = arith.constant 2 : i32
    %72 = arith.muli %c1_i32, %c2_i32_29 : i32
    %c7_i32_30 = arith.constant 7 : i32
    %73 = arith.subi %c7_i32_30, %c1_i32 : i32
    %c2_i32_31 = arith.constant 2 : i32
    %74 = arith.muli %73, %c2_i32_31 : i32
    %75 = vector.extract_strided_slice %71 {offsets = [0, 0], sizes = [2, 128], strides = [1, 1]} : vector<2x256xf32> to vector<2x128xf32>
    %76 = arith.index_cast %72 : i32 to index
    %c0_32 = arith.constant 0 : index
    %77 = vector.load %arg12[%76, %c0_32] : memref<16x256xf32, #tpu.memory_space<vmem>>, vector<2x128xf32>
    %78 = arith.addf %75, %77 : vector<2x128xf32>
    %79 = math.tanh %78 : vector<2x128xf32>
    %80 = vector.extract_strided_slice %71 {offsets = [0, 128], sizes = [2, 128], strides = [1, 1]} : vector<2x256xf32> to vector<2x128xf32>
    %81 = arith.index_cast %74 : i32 to index
    %c128_33 = arith.constant 128 : index
    %82 = vector.load %arg12[%81, %c128_33] : memref<16x256xf32, #tpu.memory_space<vmem>>, vector<2x128xf32>
    %83 = arith.addf %80, %82 : vector<2x128xf32>
    %84 = math.tanh %83 : vector<2x128xf32>
    %85 = vector.extract_strided_slice %79 {offsets = [0, 0], sizes = [2, 32], strides = [1, 1]} : vector<2x128xf32> to vector<2x32xf32>
    %cst_34 = arith.constant 5.000000e-01 : f32
    %86 = vector.broadcast %cst_34 : f32 to vector<2x32xf32>
    %87 = arith.mulf %86, %85 : vector<2x32xf32>
    %cst_35 = arith.constant 5.000000e-01 : f32
    %88 = vector.broadcast %cst_35 : f32 to vector<2x32xf32>
    %89 = arith.addf %87, %88 : vector<2x32xf32>
    %90 = vector.extract_strided_slice %79 {offsets = [0, 32], sizes = [2, 32], strides = [1, 1]} : vector<2x128xf32> to vector<2x32xf32>
    %cst_36 = arith.constant 5.000000e-01 : f32
    %91 = vector.broadcast %cst_36 : f32 to vector<2x32xf32>
    %92 = arith.mulf %91, %90 : vector<2x32xf32>
    %cst_37 = arith.constant 5.000000e-01 : f32
    %93 = vector.broadcast %cst_37 : f32 to vector<2x32xf32>
    %94 = arith.addf %92, %93 : vector<2x32xf32>
    %95 = vector.extract_strided_slice %79 {offsets = [0, 64], sizes = [2, 32], strides = [1, 1]} : vector<2x128xf32> to vector<2x32xf32>
    %96 = vector.extract_strided_slice %79 {offsets = [0, 96], sizes = [2, 32], strides = [1, 1]} : vector<2x128xf32> to vector<2x32xf32>
    %cst_38 = arith.constant 5.000000e-01 : f32
    %97 = vector.broadcast %cst_38 : f32 to vector<2x32xf32>
    %98 = arith.mulf %97, %96 : vector<2x32xf32>
    %cst_39 = arith.constant 5.000000e-01 : f32
    %99 = vector.broadcast %cst_39 : f32 to vector<2x32xf32>
    %100 = arith.addf %98, %99 : vector<2x32xf32>
    %101 = arith.mulf %94, %42 : vector<2x32xf32>
    %102 = arith.mulf %89, %95 : vector<2x32xf32>
    %103 = arith.addf %101, %102 : vector<2x32xf32>
    %104 = math.tanh %103 : vector<2x32xf32>
    %105 = arith.mulf %100, %104 : vector<2x32xf32>
    %106 = vector.extract_strided_slice %84 {offsets = [0, 0], sizes = [2, 32], strides = [1, 1]} : vector<2x128xf32> to vector<2x32xf32>
    %cst_40 = arith.constant 5.000000e-01 : f32
    %107 = vector.broadcast %cst_40 : f32 to vector<2x32xf32>
    %108 = arith.mulf %107, %106 : vector<2x32xf32>
    %cst_41 = arith.constant 5.000000e-01 : f32
    %109 = vector.broadcast %cst_41 : f32 to vector<2x32xf32>
    %110 = arith.addf %108, %109 : vector<2x32xf32>
    %111 = vector.extract_strided_slice %84 {offsets = [0, 32], sizes = [2, 32], strides = [1, 1]} : vector<2x128xf32> to vector<2x32xf32>
    %cst_42 = arith.constant 5.000000e-01 : f32
    %112 = vector.broadcast %cst_42 : f32 to vector<2x32xf32>
    %113 = arith.mulf %112, %111 : vector<2x32xf32>
    %cst_43 = arith.constant 5.000000e-01 : f32
    %114 = vector.broadcast %cst_43 : f32 to vector<2x32xf32>
    %115 = arith.addf %113, %114 : vector<2x32xf32>
    %116 = vector.extract_strided_slice %84 {offsets = [0, 64], sizes = [2, 32], strides = [1, 1]} : vector<2x128xf32> to vector<2x32xf32>
    %117 = vector.extract_strided_slice %84 {offsets = [0, 96], sizes = [2, 32], strides = [1, 1]} : vector<2x128xf32> to vector<2x32xf32>
    %cst_44 = arith.constant 5.000000e-01 : f32
    %118 = vector.broadcast %cst_44 : f32 to vector<2x32xf32>
    %119 = arith.mulf %118, %117 : vector<2x32xf32>
    %cst_45 = arith.constant 5.000000e-01 : f32
    %120 = vector.broadcast %cst_45 : f32 to vector<2x32xf32>
    %121 = arith.addf %119, %120 : vector<2x32xf32>
    %122 = arith.mulf %115, %63 : vector<2x32xf32>
    %123 = arith.mulf %110, %116 : vector<2x32xf32>
    %124 = arith.addf %122, %123 : vector<2x32xf32>
    %125 = math.tanh %124 : vector<2x32xf32>
    %126 = arith.mulf %121, %125 : vector<2x32xf32>
    %127 = arith.index_cast %72 : i32 to index
    %c0_46 = arith.constant 0 : index
    %128 = vector.load %arg13[%127, %c0_46] : memref<16x32xf32, #tpu.memory_space<vmem>>, vector<2x32xf32>
    tpu.vector_store %arg13[%127, %c0_46], %105 {strides = array<i32>} : memref<16x32xf32, #tpu.memory_space<vmem>>, vector<2x32xf32>,
    %129 = arith.index_cast %74 : i32 to index
    %c0_47 = arith.constant 0 : index
    %130 = vector.load %arg14[%129, %c0_47] : memref<16x32xf32, #tpu.memory_space<vmem>>, vector<2x32xf32>
    tpu.vector_store %arg14[%129, %c0_47], %126 {strides = array<i32>} : memref<16x32xf32, #tpu.memory_space<vmem>>, vector<2x32xf32>,
    %131 = tpu.concatenate %105, %126 in 1 : vector<2x32xf32>, vector<2x32xf32> -> vector<2x64xf32>
    %c2_i32_48 = arith.constant 2 : i32
    %cst_49 = arith.constant dense<0.000000e+00> : vector<2x256xf32>
    %132 = tpu.matmul %131, %7, %cst_49 {dimension_numbers = #tpu.dot_dimension_numbers<[1], [0], [0], [1], [0, 0, 1, 1], [], []>} : vector<2x64xf32>, vector<64x256xf32>, vector<2x256xf32> -> vector<2x256xf32>
    %c2_i32_50 = arith.constant 2 : i32
    %133 = arith.muli %c2_i32_48, %c2_i32_50 : i32
    %c7_i32_51 = arith.constant 7 : i32
    %134 = arith.subi %c7_i32_51, %c2_i32_48 : i32
    %c2_i32_52 = arith.constant 2 : i32
    %135 = arith.muli %134, %c2_i32_52 : i32
    %136 = vector.extract_strided_slice %132 {offsets = [0, 0], sizes = [2, 128], strides = [1, 1]} : vector<2x256xf32> to vector<2x128xf32>
    %137 = arith.index_cast %133 : i32 to index
    %c0_53 = arith.constant 0 : index
    %138 = vector.load %arg12[%137, %c0_53] : memref<16x256xf32, #tpu.memory_space<vmem>>, vector<2x128xf32>
    %139 = arith.addf %136, %138 : vector<2x128xf32>
    %140 = math.tanh %139 : vector<2x128xf32>
    %141 = vector.extract_strided_slice %132 {offsets = [0, 128], sizes = [2, 128], strides = [1, 1]} : vector<2x256xf32> to vector<2x128xf32>
    %142 = arith.index_cast %135 : i32 to index
    %c128_54 = arith.constant 128 : index
    %143 = vector.load %arg12[%142, %c128_54] : memref<16x256xf32, #tpu.memory_space<vmem>>, vector<2x128xf32>
    %144 = arith.addf %141, %143 : vector<2x128xf32>
    %145 = math.tanh %144 : vector<2x128xf32>
    %146 = vector.extract_strided_slice %140 {offsets = [0, 0], sizes = [2, 32], strides = [1, 1]} : vector<2x128xf32> to vector<2x32xf32>
    %cst_55 = arith.constant 5.000000e-01 : f32
    %147 = vector.broadcast %cst_55 : f32 to vector<2x32xf32>
    %148 = arith.mulf %147, %146 : vector<2x32xf32>
    %cst_56 = arith.constant 5.000000e-01 : f32
    %149 = vector.broadcast %cst_56 : f32 to vector<2x32xf32>
    %150 = arith.addf %148, %149 : vector<2x32xf32>
    %151 = vector.extract_strided_slice %140 {offsets = [0, 32], sizes = [2, 32], strides = [1, 1]} : vector<2x128xf32> to vector<2x32xf32>
    %cst_57 = arith.constant 5.000000e-01 : f32
    %152 = vector.broadcast %cst_57 : f32 to vector<2x32xf32>
    %153 = arith.mulf %152, %151 : vector<2x32xf32>
    %cst_58 = arith.constant 5.000000e-01 : f32
    %154 = vector.broadcast %cst_58 : f32 to vector<2x32xf32>
    %155 = arith.addf %153, %154 : vector<2x32xf32>
    %156 = vector.extract_strided_slice %140 {offsets = [0, 64], sizes = [2, 32], strides = [1, 1]} : vector<2x128xf32> to vector<2x32xf32>
    %157 = vector.extract_strided_slice %140 {offsets = [0, 96], sizes = [2, 32], strides = [1, 1]} : vector<2x128xf32> to vector<2x32xf32>
    %cst_59 = arith.constant 5.000000e-01 : f32
    %158 = vector.broadcast %cst_59 : f32 to vector<2x32xf32>
    %159 = arith.mulf %158, %157 : vector<2x32xf32>
    %cst_60 = arith.constant 5.000000e-01 : f32
    %160 = vector.broadcast %cst_60 : f32 to vector<2x32xf32>
    %161 = arith.addf %159, %160 : vector<2x32xf32>
    %162 = arith.mulf %155, %103 : vector<2x32xf32>
    %163 = arith.mulf %150, %156 : vector<2x32xf32>
    %164 = arith.addf %162, %163 : vector<2x32xf32>
    %165 = math.tanh %164 : vector<2x32xf32>
    %166 = arith.mulf %161, %165 : vector<2x32xf32>
    %167 = vector.extract_strided_slice %145 {offsets = [0, 0], sizes = [2, 32], strides = [1, 1]} : vector<2x128xf32> to vector<2x32xf32>
    %cst_61 = arith.constant 5.000000e-01 : f32
    %168 = vector.broadcast %cst_61 : f32 to vector<2x32xf32>
    %169 = arith.mulf %168, %167 : vector<2x32xf32>
    %cst_62 = arith.constant 5.000000e-01 : f32
    %170 = vector.broadcast %cst_62 : f32 to vector<2x32xf32>
    %171 = arith.addf %169, %170 : vector<2x32xf32>
    %172 = vector.extract_strided_slice %145 {offsets = [0, 32], sizes = [2, 32], strides = [1, 1]} : vector<2x128xf32> to vector<2x32xf32>
    %cst_63 = arith.constant 5.000000e-01 : f32
    %173 = vector.broadcast %cst_63 : f32 to vector<2x32xf32>
    %174 = arith.mulf %173, %172 : vector<2x32xf32>
    %cst_64 = arith.constant 5.000000e-01 : f32
    %175 = vector.broadcast %cst_64 : f32 to vector<2x32xf32>
    %176 = arith.addf %174, %175 : vector<2x32xf32>
    %177 = vector.extract_strided_slice %145 {offsets = [0, 64], sizes = [2, 32], strides = [1, 1]} : vector<2x128xf32> to vector<2x32xf32>
    %178 = vector.extract_strided_slice %145 {offsets = [0, 96], sizes = [2, 32], strides = [1, 1]} : vector<2x128xf32> to vector<2x32xf32>
    %cst_65 = arith.constant 5.000000e-01 : f32
    %179 = vector.broadcast %cst_65 : f32 to vector<2x32xf32>
    %180 = arith.mulf %179, %178 : vector<2x32xf32>
    %cst_66 = arith.constant 5.000000e-01 : f32
    %181 = vector.broadcast %cst_66 : f32 to vector<2x32xf32>
    %182 = arith.addf %180, %181 : vector<2x32xf32>
    %183 = arith.mulf %176, %124 : vector<2x32xf32>
    %184 = arith.mulf %171, %177 : vector<2x32xf32>
    %185 = arith.addf %183, %184 : vector<2x32xf32>
    %186 = math.tanh %185 : vector<2x32xf32>
    %187 = arith.mulf %182, %186 : vector<2x32xf32>
    %188 = arith.index_cast %133 : i32 to index
    %c0_67 = arith.constant 0 : index
    %189 = vector.load %arg13[%188, %c0_67] : memref<16x32xf32, #tpu.memory_space<vmem>>, vector<2x32xf32>
    tpu.vector_store %arg13[%188, %c0_67], %166 {strides = array<i32>} : memref<16x32xf32, #tpu.memory_space<vmem>>, vector<2x32xf32>,
    %190 = arith.index_cast %135 : i32 to index
    %c0_68 = arith.constant 0 : index
    %191 = vector.load %arg14[%190, %c0_68] : memref<16x32xf32, #tpu.memory_space<vmem>>, vector<2x32xf32>
    tpu.vector_store %arg14[%190, %c0_68], %187 {strides = array<i32>} : memref<16x32xf32, #tpu.memory_space<vmem>>, vector<2x32xf32>,
    %192 = tpu.concatenate %166, %187 in 1 : vector<2x32xf32>, vector<2x32xf32> -> vector<2x64xf32>
    %c3_i32 = arith.constant 3 : i32
    %cst_69 = arith.constant dense<0.000000e+00> : vector<2x256xf32>
    %193 = tpu.matmul %192, %7, %cst_69 {dimension_numbers = #tpu.dot_dimension_numbers<[1], [0], [0], [1], [0, 0, 1, 1], [], []>} : vector<2x64xf32>, vector<64x256xf32>, vector<2x256xf32> -> vector<2x256xf32>
    %c2_i32_70 = arith.constant 2 : i32
    %194 = arith.muli %c3_i32, %c2_i32_70 : i32
    %c7_i32_71 = arith.constant 7 : i32
    %195 = arith.subi %c7_i32_71, %c3_i32 : i32
    %c2_i32_72 = arith.constant 2 : i32
    %196 = arith.muli %195, %c2_i32_72 : i32
    %197 = vector.extract_strided_slice %193 {offsets = [0, 0], sizes = [2, 128], strides = [1, 1]} : vector<2x256xf32> to vector<2x128xf32>
    %198 = arith.index_cast %194 : i32 to index
    %c0_73 = arith.constant 0 : index
    %199 = vector.load %arg12[%198, %c0_73] : memref<16x256xf32, #tpu.memory_space<vmem>>, vector<2x128xf32>
    %200 = arith.addf %197, %199 : vector<2x128xf32>
    %201 = math.tanh %200 : vector<2x128xf32>
    %202 = vector.extract_strided_slice %193 {offsets = [0, 128], sizes = [2, 128], strides = [1, 1]} : vector<2x256xf32> to vector<2x128xf32>
    %203 = arith.index_cast %196 : i32 to index
    %c128_74 = arith.constant 128 : index
    %204 = vector.load %arg12[%203, %c128_74] : memref<16x256xf32, #tpu.memory_space<vmem>>, vector<2x128xf32>
    %205 = arith.addf %202, %204 : vector<2x128xf32>
    %206 = math.tanh %205 : vector<2x128xf32>
    %207 = vector.extract_strided_slice %201 {offsets = [0, 0], sizes = [2, 32], strides = [1, 1]} : vector<2x128xf32> to vector<2x32xf32>
    %cst_75 = arith.constant 5.000000e-01 : f32
    %208 = vector.broadcast %cst_75 : f32 to vector<2x32xf32>
    %209 = arith.mulf %208, %207 : vector<2x32xf32>
    %cst_76 = arith.constant 5.000000e-01 : f32
    %210 = vector.broadcast %cst_76 : f32 to vector<2x32xf32>
    %211 = arith.addf %209, %210 : vector<2x32xf32>
    %212 = vector.extract_strided_slice %201 {offsets = [0, 32], sizes = [2, 32], strides = [1, 1]} : vector<2x128xf32> to vector<2x32xf32>
    %cst_77 = arith.constant 5.000000e-01 : f32
    %213 = vector.broadcast %cst_77 : f32 to vector<2x32xf32>
    %214 = arith.mulf %213, %212 : vector<2x32xf32>
    %cst_78 = arith.constant 5.000000e-01 : f32
    %215 = vector.broadcast %cst_78 : f32 to vector<2x32xf32>
    %216 = arith.addf %214, %215 : vector<2x32xf32>
    %217 = vector.extract_strided_slice %201 {offsets = [0, 64], sizes = [2, 32], strides = [1, 1]} : vector<2x128xf32> to vector<2x32xf32>
    %218 = vector.extract_strided_slice %201 {offsets = [0, 96], sizes = [2, 32], strides = [1, 1]} : vector<2x128xf32> to vector<2x32xf32>
    %cst_79 = arith.constant 5.000000e-01 : f32
    %219 = vector.broadcast %cst_79 : f32 to vector<2x32xf32>
    %220 = arith.mulf %219, %218 : vector<2x32xf32>
    %cst_80 = arith.constant 5.000000e-01 : f32
    %221 = vector.broadcast %cst_80 : f32 to vector<2x32xf32>
    %222 = arith.addf %220, %221 : vector<2x32xf32>
    %223 = arith.mulf %216, %164 : vector<2x32xf32>
    %224 = arith.mulf %211, %217 : vector<2x32xf32>
    %225 = arith.addf %223, %224 : vector<2x32xf32>
    %226 = math.tanh %225 : vector<2x32xf32>
    %227 = arith.mulf %222, %226 : vector<2x32xf32>
    %228 = vector.extract_strided_slice %206 {offsets = [0, 0], sizes = [2, 32], strides = [1, 1]} : vector<2x128xf32> to vector<2x32xf32>
    %cst_81 = arith.constant 5.000000e-01 : f32
    %229 = vector.broadcast %cst_81 : f32 to vector<2x32xf32>
    %230 = arith.mulf %229, %228 : vector<2x32xf32>
    %cst_82 = arith.constant 5.000000e-01 : f32
    %231 = vector.broadcast %cst_82 : f32 to vector<2x32xf32>
    %232 = arith.addf %230, %231 : vector<2x32xf32>
    %233 = vector.extract_strided_slice %206 {offsets = [0, 32], sizes = [2, 32], strides = [1, 1]} : vector<2x128xf32> to vector<2x32xf32>
    %cst_83 = arith.constant 5.000000e-01 : f32
    %234 = vector.broadcast %cst_83 : f32 to vector<2x32xf32>
    %235 = arith.mulf %234, %233 : vector<2x32xf32>
    %cst_84 = arith.constant 5.000000e-01 : f32
    %236 = vector.broadcast %cst_84 : f32 to vector<2x32xf32>
    %237 = arith.addf %235, %236 : vector<2x32xf32>
    %238 = vector.extract_strided_slice %206 {offsets = [0, 64], sizes = [2, 32], strides = [1, 1]} : vector<2x128xf32> to vector<2x32xf32>
    %239 = vector.extract_strided_slice %206 {offsets = [0, 96], sizes = [2, 32], strides = [1, 1]} : vector<2x128xf32> to vector<2x32xf32>
    %cst_85 = arith.constant 5.000000e-01 : f32
    %240 = vector.broadcast %cst_85 : f32 to vector<2x32xf32>
    %241 = arith.mulf %240, %239 : vector<2x32xf32>
    %cst_86 = arith.constant 5.000000e-01 : f32
    %242 = vector.broadcast %cst_86 : f32 to vector<2x32xf32>
    %243 = arith.addf %241, %242 : vector<2x32xf32>
    %244 = arith.mulf %237, %185 : vector<2x32xf32>
    %245 = arith.mulf %232, %238 : vector<2x32xf32>
    %246 = arith.addf %244, %245 : vector<2x32xf32>
    %247 = math.tanh %246 : vector<2x32xf32>
    %248 = arith.mulf %243, %247 : vector<2x32xf32>
    %249 = arith.index_cast %194 : i32 to index
    %c0_87 = arith.constant 0 : index
    %250 = vector.load %arg13[%249, %c0_87] : memref<16x32xf32, #tpu.memory_space<vmem>>, vector<2x32xf32>
    tpu.vector_store %arg13[%249, %c0_87], %227 {strides = array<i32>} : memref<16x32xf32, #tpu.memory_space<vmem>>, vector<2x32xf32>,
    %251 = arith.index_cast %196 : i32 to index
    %c0_88 = arith.constant 0 : index
    %252 = vector.load %arg14[%251, %c0_88] : memref<16x32xf32, #tpu.memory_space<vmem>>, vector<2x32xf32>
    tpu.vector_store %arg14[%251, %c0_88], %248 {strides = array<i32>} : memref<16x32xf32, #tpu.memory_space<vmem>>, vector<2x32xf32>,
    %253 = tpu.concatenate %227, %248 in 1 : vector<2x32xf32>, vector<2x32xf32> -> vector<2x64xf32>
    %c4_i32 = arith.constant 4 : i32
    %cst_89 = arith.constant dense<0.000000e+00> : vector<2x256xf32>
    %254 = tpu.matmul %253, %7, %cst_89 {dimension_numbers = #tpu.dot_dimension_numbers<[1], [0], [0], [1], [0, 0, 1, 1], [], []>} : vector<2x64xf32>, vector<64x256xf32>, vector<2x256xf32> -> vector<2x256xf32>
    %c2_i32_90 = arith.constant 2 : i32
    %255 = arith.muli %c4_i32, %c2_i32_90 : i32
    %c7_i32_91 = arith.constant 7 : i32
    %256 = arith.subi %c7_i32_91, %c4_i32 : i32
    %c2_i32_92 = arith.constant 2 : i32
    %257 = arith.muli %256, %c2_i32_92 : i32
    %258 = vector.extract_strided_slice %254 {offsets = [0, 0], sizes = [2, 128], strides = [1, 1]} : vector<2x256xf32> to vector<2x128xf32>
    %259 = arith.index_cast %255 : i32 to index
    %c0_93 = arith.constant 0 : index
    %260 = vector.load %arg12[%259, %c0_93] : memref<16x256xf32, #tpu.memory_space<vmem>>, vector<2x128xf32>
    %261 = arith.addf %258, %260 : vector<2x128xf32>
    %262 = math.tanh %261 : vector<2x128xf32>
    %263 = vector.extract_strided_slice %254 {offsets = [0, 128], sizes = [2, 128], strides = [1, 1]} : vector<2x256xf32> to vector<2x128xf32>
    %264 = arith.index_cast %257 : i32 to index
    %c128_94 = arith.constant 128 : index
    %265 = vector.load %arg12[%264, %c128_94] : memref<16x256xf32, #tpu.memory_space<vmem>>, vector<2x128xf32>
    %266 = arith.addf %263, %265 : vector<2x128xf32>
    %267 = math.tanh %266 : vector<2x128xf32>
    %268 = vector.extract_strided_slice %262 {offsets = [0, 0], sizes = [2, 32], strides = [1, 1]} : vector<2x128xf32> to vector<2x32xf32>
    %cst_95 = arith.constant 5.000000e-01 : f32
    %269 = vector.broadcast %cst_95 : f32 to vector<2x32xf32>
    %270 = arith.mulf %269, %268 : vector<2x32xf32>
    %cst_96 = arith.constant 5.000000e-01 : f32
    %271 = vector.broadcast %cst_96 : f32 to vector<2x32xf32>
    %272 = arith.addf %270, %271 : vector<2x32xf32>
    %273 = vector.extract_strided_slice %262 {offsets = [0, 32], sizes = [2, 32], strides = [1, 1]} : vector<2x128xf32> to vector<2x32xf32>
    %cst_97 = arith.constant 5.000000e-01 : f32
    %274 = vector.broadcast %cst_97 : f32 to vector<2x32xf32>
    %275 = arith.mulf %274, %273 : vector<2x32xf32>
    %cst_98 = arith.constant 5.000000e-01 : f32
    %276 = vector.broadcast %cst_98 : f32 to vector<2x32xf32>
    %277 = arith.addf %275, %276 : vector<2x32xf32>
    %278 = vector.extract_strided_slice %262 {offsets = [0, 64], sizes = [2, 32], strides = [1, 1]} : vector<2x128xf32> to vector<2x32xf32>
    %279 = vector.extract_strided_slice %262 {offsets = [0, 96], sizes = [2, 32], strides = [1, 1]} : vector<2x128xf32> to vector<2x32xf32>
    %cst_99 = arith.constant 5.000000e-01 : f32
    %280 = vector.broadcast %cst_99 : f32 to vector<2x32xf32>
    %281 = arith.mulf %280, %279 : vector<2x32xf32>
    %cst_100 = arith.constant 5.000000e-01 : f32
    %282 = vector.broadcast %cst_100 : f32 to vector<2x32xf32>
    %283 = arith.addf %281, %282 : vector<2x32xf32>
    %284 = arith.mulf %277, %225 : vector<2x32xf32>
    %285 = arith.mulf %272, %278 : vector<2x32xf32>
    %286 = arith.addf %284, %285 : vector<2x32xf32>
    %287 = math.tanh %286 : vector<2x32xf32>
    %288 = arith.mulf %283, %287 : vector<2x32xf32>
    %289 = vector.extract_strided_slice %267 {offsets = [0, 0], sizes = [2, 32], strides = [1, 1]} : vector<2x128xf32> to vector<2x32xf32>
    %cst_101 = arith.constant 5.000000e-01 : f32
    %290 = vector.broadcast %cst_101 : f32 to vector<2x32xf32>
    %291 = arith.mulf %290, %289 : vector<2x32xf32>
    %cst_102 = arith.constant 5.000000e-01 : f32
    %292 = vector.broadcast %cst_102 : f32 to vector<2x32xf32>
    %293 = arith.addf %291, %292 : vector<2x32xf32>
    %294 = vector.extract_strided_slice %267 {offsets = [0, 32], sizes = [2, 32], strides = [1, 1]} : vector<2x128xf32> to vector<2x32xf32>
    %cst_103 = arith.constant 5.000000e-01 : f32
    %295 = vector.broadcast %cst_103 : f32 to vector<2x32xf32>
    %296 = arith.mulf %295, %294 : vector<2x32xf32>
    %cst_104 = arith.constant 5.000000e-01 : f32
    %297 = vector.broadcast %cst_104 : f32 to vector<2x32xf32>
    %298 = arith.addf %296, %297 : vector<2x32xf32>
    %299 = vector.extract_strided_slice %267 {offsets = [0, 64], sizes = [2, 32], strides = [1, 1]} : vector<2x128xf32> to vector<2x32xf32>
    %300 = vector.extract_strided_slice %267 {offsets = [0, 96], sizes = [2, 32], strides = [1, 1]} : vector<2x128xf32> to vector<2x32xf32>
    %cst_105 = arith.constant 5.000000e-01 : f32
    %301 = vector.broadcast %cst_105 : f32 to vector<2x32xf32>
    %302 = arith.mulf %301, %300 : vector<2x32xf32>
    %cst_106 = arith.constant 5.000000e-01 : f32
    %303 = vector.broadcast %cst_106 : f32 to vector<2x32xf32>
    %304 = arith.addf %302, %303 : vector<2x32xf32>
    %305 = arith.mulf %298, %246 : vector<2x32xf32>
    %306 = arith.mulf %293, %299 : vector<2x32xf32>
    %307 = arith.addf %305, %306 : vector<2x32xf32>
    %308 = math.tanh %307 : vector<2x32xf32>
    %309 = arith.mulf %304, %308 : vector<2x32xf32>
    %310 = arith.index_cast %255 : i32 to index
    %c0_107 = arith.constant 0 : index
    %311 = vector.load %arg13[%310, %c0_107] : memref<16x32xf32, #tpu.memory_space<vmem>>, vector<2x32xf32>
    tpu.vector_store %arg13[%310, %c0_107], %288 {strides = array<i32>} : memref<16x32xf32, #tpu.memory_space<vmem>>, vector<2x32xf32>,
    %312 = arith.index_cast %257 : i32 to index
    %c0_108 = arith.constant 0 : index
    %313 = vector.load %arg14[%312, %c0_108] : memref<16x32xf32, #tpu.memory_space<vmem>>, vector<2x32xf32>
    tpu.vector_store %arg14[%312, %c0_108], %309 {strides = array<i32>} : memref<16x32xf32, #tpu.memory_space<vmem>>, vector<2x32xf32>,
    %314 = tpu.concatenate %288, %309 in 1 : vector<2x32xf32>, vector<2x32xf32> -> vector<2x64xf32>
    %c5_i32 = arith.constant 5 : i32
    %cst_109 = arith.constant dense<0.000000e+00> : vector<2x256xf32>
    %315 = tpu.matmul %314, %7, %cst_109 {dimension_numbers = #tpu.dot_dimension_numbers<[1], [0], [0], [1], [0, 0, 1, 1], [], []>} : vector<2x64xf32>, vector<64x256xf32>, vector<2x256xf32> -> vector<2x256xf32>
    %c2_i32_110 = arith.constant 2 : i32
    %316 = arith.muli %c5_i32, %c2_i32_110 : i32
    %c7_i32_111 = arith.constant 7 : i32
    %317 = arith.subi %c7_i32_111, %c5_i32 : i32
    %c2_i32_112 = arith.constant 2 : i32
    %318 = arith.muli %317, %c2_i32_112 : i32
    %319 = vector.extract_strided_slice %315 {offsets = [0, 0], sizes = [2, 128], strides = [1, 1]} : vector<2x256xf32> to vector<2x128xf32>
    %320 = arith.index_cast %316 : i32 to index
    %c0_113 = arith.constant 0 : index
    %321 = vector.load %arg12[%320, %c0_113] : memref<16x256xf32, #tpu.memory_space<vmem>>, vector<2x128xf32>
    %322 = arith.addf %319, %321 : vector<2x128xf32>
    %323 = math.tanh %322 : vector<2x128xf32>
    %324 = vector.extract_strided_slice %315 {offsets = [0, 128], sizes = [2, 128], strides = [1, 1]} : vector<2x256xf32> to vector<2x128xf32>
    %325 = arith.index_cast %318 : i32 to index
    %c128_114 = arith.constant 128 : index
    %326 = vector.load %arg12[%325, %c128_114] : memref<16x256xf32, #tpu.memory_space<vmem>>, vector<2x128xf32>
    %327 = arith.addf %324, %326 : vector<2x128xf32>
    %328 = math.tanh %327 : vector<2x128xf32>
    %329 = vector.extract_strided_slice %323 {offsets = [0, 0], sizes = [2, 32], strides = [1, 1]} : vector<2x128xf32> to vector<2x32xf32>
    %cst_115 = arith.constant 5.000000e-01 : f32
    %330 = vector.broadcast %cst_115 : f32 to vector<2x32xf32>
    %331 = arith.mulf %330, %329 : vector<2x32xf32>
    %cst_116 = arith.constant 5.000000e-01 : f32
    %332 = vector.broadcast %cst_116 : f32 to vector<2x32xf32>
    %333 = arith.addf %331, %332 : vector<2x32xf32>
    %334 = vector.extract_strided_slice %323 {offsets = [0, 32], sizes = [2, 32], strides = [1, 1]} : vector<2x128xf32> to vector<2x32xf32>
    %cst_117 = arith.constant 5.000000e-01 : f32
    %335 = vector.broadcast %cst_117 : f32 to vector<2x32xf32>
    %336 = arith.mulf %335, %334 : vector<2x32xf32>
    %cst_118 = arith.constant 5.000000e-01 : f32
    %337 = vector.broadcast %cst_118 : f32 to vector<2x32xf32>
    %338 = arith.addf %336, %337 : vector<2x32xf32>
    %339 = vector.extract_strided_slice %323 {offsets = [0, 64], sizes = [2, 32], strides = [1, 1]} : vector<2x128xf32> to vector<2x32xf32>
    %340 = vector.extract_strided_slice %323 {offsets = [0, 96], sizes = [2, 32], strides = [1, 1]} : vector<2x128xf32> to vector<2x32xf32>
    %cst_119 = arith.constant 5.000000e-01 : f32
    %341 = vector.broadcast %cst_119 : f32 to vector<2x32xf32>
    %342 = arith.mulf %341, %340 : vector<2x32xf32>
    %cst_120 = arith.constant 5.000000e-01 : f32
    %343 = vector.broadcast %cst_120 : f32 to vector<2x32xf32>
    %344 = arith.addf %342, %343 : vector<2x32xf32>
    %345 = arith.mulf %338, %286 : vector<2x32xf32>
    %346 = arith.mulf %333, %339 : vector<2x32xf32>
    %347 = arith.addf %345, %346 : vector<2x32xf32>
    %348 = math.tanh %347 : vector<2x32xf32>
    %349 = arith.mulf %344, %348 : vector<2x32xf32>
    %350 = vector.extract_strided_slice %328 {offsets = [0, 0], sizes = [2, 32], strides = [1, 1]} : vector<2x128xf32> to vector<2x32xf32>
    %cst_121 = arith.constant 5.000000e-01 : f32
    %351 = vector.broadcast %cst_121 : f32 to vector<2x32xf32>
    %352 = arith.mulf %351, %350 : vector<2x32xf32>
    %cst_122 = arith.constant 5.000000e-01 : f32
    %353 = vector.broadcast %cst_122 : f32 to vector<2x32xf32>
    %354 = arith.addf %352, %353 : vector<2x32xf32>
    %355 = vector.extract_strided_slice %328 {offsets = [0, 32], sizes = [2, 32], strides = [1, 1]} : vector<2x128xf32> to vector<2x32xf32>
    %cst_123 = arith.constant 5.000000e-01 : f32
    %356 = vector.broadcast %cst_123 : f32 to vector<2x32xf32>
    %357 = arith.mulf %356, %355 : vector<2x32xf32>
    %cst_124 = arith.constant 5.000000e-01 : f32
    %358 = vector.broadcast %cst_124 : f32 to vector<2x32xf32>
    %359 = arith.addf %357, %358 : vector<2x32xf32>
    %360 = vector.extract_strided_slice %328 {offsets = [0, 64], sizes = [2, 32], strides = [1, 1]} : vector<2x128xf32> to vector<2x32xf32>
    %361 = vector.extract_strided_slice %328 {offsets = [0, 96], sizes = [2, 32], strides = [1, 1]} : vector<2x128xf32> to vector<2x32xf32>
    %cst_125 = arith.constant 5.000000e-01 : f32
    %362 = vector.broadcast %cst_125 : f32 to vector<2x32xf32>
    %363 = arith.mulf %362, %361 : vector<2x32xf32>
    %cst_126 = arith.constant 5.000000e-01 : f32
    %364 = vector.broadcast %cst_126 : f32 to vector<2x32xf32>
    %365 = arith.addf %363, %364 : vector<2x32xf32>
    %366 = arith.mulf %359, %307 : vector<2x32xf32>
    %367 = arith.mulf %354, %360 : vector<2x32xf32>
    %368 = arith.addf %366, %367 : vector<2x32xf32>
    %369 = math.tanh %368 : vector<2x32xf32>
    %370 = arith.mulf %365, %369 : vector<2x32xf32>
    %371 = arith.index_cast %316 : i32 to index
    %c0_127 = arith.constant 0 : index
    %372 = vector.load %arg13[%371, %c0_127] : memref<16x32xf32, #tpu.memory_space<vmem>>, vector<2x32xf32>
    tpu.vector_store %arg13[%371, %c0_127], %349 {strides = array<i32>} : memref<16x32xf32, #tpu.memory_space<vmem>>, vector<2x32xf32>,
    %373 = arith.index_cast %318 : i32 to index
    %c0_128 = arith.constant 0 : index
    %374 = vector.load %arg14[%373, %c0_128] : memref<16x32xf32, #tpu.memory_space<vmem>>, vector<2x32xf32>
    tpu.vector_store %arg14[%373, %c0_128], %370 {strides = array<i32>} : memref<16x32xf32, #tpu.memory_space<vmem>>, vector<2x32xf32>,
    %375 = tpu.concatenate %349, %370 in 1 : vector<2x32xf32>, vector<2x32xf32> -> vector<2x64xf32>
    %c6_i32 = arith.constant 6 : i32
    %cst_129 = arith.constant dense<0.000000e+00> : vector<2x256xf32>
    %376 = tpu.matmul %375, %7, %cst_129 {dimension_numbers = #tpu.dot_dimension_numbers<[1], [0], [0], [1], [0, 0, 1, 1], [], []>} : vector<2x64xf32>, vector<64x256xf32>, vector<2x256xf32> -> vector<2x256xf32>
    %c2_i32_130 = arith.constant 2 : i32
    %377 = arith.muli %c6_i32, %c2_i32_130 : i32
    %c7_i32_131 = arith.constant 7 : i32
    %378 = arith.subi %c7_i32_131, %c6_i32 : i32
    %c2_i32_132 = arith.constant 2 : i32
    %379 = arith.muli %378, %c2_i32_132 : i32
    %380 = vector.extract_strided_slice %376 {offsets = [0, 0], sizes = [2, 128], strides = [1, 1]} : vector<2x256xf32> to vector<2x128xf32>
    %381 = arith.index_cast %377 : i32 to index
    %c0_133 = arith.constant 0 : index
    %382 = vector.load %arg12[%381, %c0_133] : memref<16x256xf32, #tpu.memory_space<vmem>>, vector<2x128xf32>
    %383 = arith.addf %380, %382 : vector<2x128xf32>
    %384 = math.tanh %383 : vector<2x128xf32>
    %385 = vector.extract_strided_slice %376 {offsets = [0, 128], sizes = [2, 128], strides = [1, 1]} : vector<2x256xf32> to vector<2x128xf32>
    %386 = arith.index_cast %379 : i32 to index
    %c128_134 = arith.constant 128 : index
    %387 = vector.load %arg12[%386, %c128_134] : memref<16x256xf32, #tpu.memory_space<vmem>>, vector<2x128xf32>
    %388 = arith.addf %385, %387 : vector<2x128xf32>
    %389 = math.tanh %388 : vector<2x128xf32>
    %390 = vector.extract_strided_slice %384 {offsets = [0, 0], sizes = [2, 32], strides = [1, 1]} : vector<2x128xf32> to vector<2x32xf32>
    %cst_135 = arith.constant 5.000000e-01 : f32
    %391 = vector.broadcast %cst_135 : f32 to vector<2x32xf32>
    %392 = arith.mulf %391, %390 : vector<2x32xf32>
    %cst_136 = arith.constant 5.000000e-01 : f32
    %393 = vector.broadcast %cst_136 : f32 to vector<2x32xf32>
    %394 = arith.addf %392, %393 : vector<2x32xf32>
    %395 = vector.extract_strided_slice %384 {offsets = [0, 32], sizes = [2, 32], strides = [1, 1]} : vector<2x128xf32> to vector<2x32xf32>
    %cst_137 = arith.constant 5.000000e-01 : f32
    %396 = vector.broadcast %cst_137 : f32 to vector<2x32xf32>
    %397 = arith.mulf %396, %395 : vector<2x32xf32>
    %cst_138 = arith.constant 5.000000e-01 : f32
    %398 = vector.broadcast %cst_138 : f32 to vector<2x32xf32>
    %399 = arith.addf %397, %398 : vector<2x32xf32>
    %400 = vector.extract_strided_slice %384 {offsets = [0, 64], sizes = [2, 32], strides = [1, 1]} : vector<2x128xf32> to vector<2x32xf32>
    %401 = vector.extract_strided_slice %384 {offsets = [0, 96], sizes = [2, 32], strides = [1, 1]} : vector<2x128xf32> to vector<2x32xf32>
    %cst_139 = arith.constant 5.000000e-01 : f32
    %402 = vector.broadcast %cst_139 : f32 to vector<2x32xf32>
    %403 = arith.mulf %402, %401 : vector<2x32xf32>
    %cst_140 = arith.constant 5.000000e-01 : f32
    %404 = vector.broadcast %cst_140 : f32 to vector<2x32xf32>
    %405 = arith.addf %403, %404 : vector<2x32xf32>
    %406 = arith.mulf %399, %347 : vector<2x32xf32>
    %407 = arith.mulf %394, %400 : vector<2x32xf32>
    %408 = arith.addf %406, %407 : vector<2x32xf32>
    %409 = math.tanh %408 : vector<2x32xf32>
    %410 = arith.mulf %405, %409 : vector<2x32xf32>
    %411 = vector.extract_strided_slice %389 {offsets = [0, 0], sizes = [2, 32], strides = [1, 1]} : vector<2x128xf32> to vector<2x32xf32>
    %cst_141 = arith.constant 5.000000e-01 : f32
    %412 = vector.broadcast %cst_141 : f32 to vector<2x32xf32>
    %413 = arith.mulf %412, %411 : vector<2x32xf32>
    %cst_142 = arith.constant 5.000000e-01 : f32
    %414 = vector.broadcast %cst_142 : f32 to vector<2x32xf32>
    %415 = arith.addf %413, %414 : vector<2x32xf32>
    %416 = vector.extract_strided_slice %389 {offsets = [0, 32], sizes = [2, 32], strides = [1, 1]} : vector<2x128xf32> to vector<2x32xf32>
    %cst_143 = arith.constant 5.000000e-01 : f32
    %417 = vector.broadcast %cst_143 : f32 to vector<2x32xf32>
    %418 = arith.mulf %417, %416 : vector<2x32xf32>
    %cst_144 = arith.constant 5.000000e-01 : f32
    %419 = vector.broadcast %cst_144 : f32 to vector<2x32xf32>
    %420 = arith.addf %418, %419 : vector<2x32xf32>
    %421 = vector.extract_strided_slice %389 {offsets = [0, 64], sizes = [2, 32], strides = [1, 1]} : vector<2x128xf32> to vector<2x32xf32>
    %422 = vector.extract_strided_slice %389 {offsets = [0, 96], sizes = [2, 32], strides = [1, 1]} : vector<2x128xf32> to vector<2x32xf32>
    %cst_145 = arith.constant 5.000000e-01 : f32
    %423 = vector.broadcast %cst_145 : f32 to vector<2x32xf32>
    %424 = arith.mulf %423, %422 : vector<2x32xf32>
    %cst_146 = arith.constant 5.000000e-01 : f32
    %425 = vector.broadcast %cst_146 : f32 to vector<2x32xf32>
    %426 = arith.addf %424, %425 : vector<2x32xf32>
    %427 = arith.mulf %420, %368 : vector<2x32xf32>
    %428 = arith.mulf %415, %421 : vector<2x32xf32>
    %429 = arith.addf %427, %428 : vector<2x32xf32>
    %430 = math.tanh %429 : vector<2x32xf32>
    %431 = arith.mulf %426, %430 : vector<2x32xf32>
    %432 = arith.index_cast %377 : i32 to index
    %c0_147 = arith.constant 0 : index
    %433 = vector.load %arg13[%432, %c0_147] : memref<16x32xf32, #tpu.memory_space<vmem>>, vector<2x32xf32>
    tpu.vector_store %arg13[%432, %c0_147], %410 {strides = array<i32>} : memref<16x32xf32, #tpu.memory_space<vmem>>, vector<2x32xf32>,
    %434 = arith.index_cast %379 : i32 to index
    %c0_148 = arith.constant 0 : index
    %435 = vector.load %arg14[%434, %c0_148] : memref<16x32xf32, #tpu.memory_space<vmem>>, vector<2x32xf32>
    tpu.vector_store %arg14[%434, %c0_148], %431 {strides = array<i32>} : memref<16x32xf32, #tpu.memory_space<vmem>>, vector<2x32xf32>,
    %436 = tpu.concatenate %410, %431 in 1 : vector<2x32xf32>, vector<2x32xf32> -> vector<2x64xf32>
    %c7_i32_149 = arith.constant 7 : i32
    %cst_150 = arith.constant dense<0.000000e+00> : vector<2x256xf32>
    %437 = tpu.matmul %436, %7, %cst_150 {dimension_numbers = #tpu.dot_dimension_numbers<[1], [0], [0], [1], [0, 0, 1, 1], [], []>} : vector<2x64xf32>, vector<64x256xf32>, vector<2x256xf32> -> vector<2x256xf32>
    %c2_i32_151 = arith.constant 2 : i32
    %438 = arith.muli %c7_i32_149, %c2_i32_151 : i32
    %c7_i32_152 = arith.constant 7 : i32
    %439 = arith.subi %c7_i32_152, %c7_i32_149 : i32
    %c2_i32_153 = arith.constant 2 : i32
    %440 = arith.muli %439, %c2_i32_153 : i32
    %441 = vector.extract_strided_slice %437 {offsets = [0, 0], sizes = [2, 128], strides = [1, 1]} : vector<2x256xf32> to vector<2x128xf32>
    %442 = arith.index_cast %438 : i32 to index
    %c0_154 = arith.constant 0 : index
    %443 = vector.load %arg12[%442, %c0_154] : memref<16x256xf32, #tpu.memory_space<vmem>>, vector<2x128xf32>
    %444 = arith.addf %441, %443 : vector<2x128xf32>
    %445 = math.tanh %444 : vector<2x128xf32>
    %446 = vector.extract_strided_slice %437 {offsets = [0, 128], sizes = [2, 128], strides = [1, 1]} : vector<2x256xf32> to vector<2x128xf32>
    %447 = arith.index_cast %440 : i32 to index
    %c128_155 = arith.constant 128 : index
    %448 = vector.load %arg12[%447, %c128_155] : memref<16x256xf32, #tpu.memory_space<vmem>>, vector<2x128xf32>
    %449 = arith.addf %446, %448 : vector<2x128xf32>
    %450 = math.tanh %449 : vector<2x128xf32>
    %451 = vector.extract_strided_slice %445 {offsets = [0, 0], sizes = [2, 32], strides = [1, 1]} : vector<2x128xf32> to vector<2x32xf32>
    %cst_156 = arith.constant 5.000000e-01 : f32
    %452 = vector.broadcast %cst_156 : f32 to vector<2x32xf32>
    %453 = arith.mulf %452, %451 : vector<2x32xf32>
    %cst_157 = arith.constant 5.000000e-01 : f32
    %454 = vector.broadcast %cst_157 : f32 to vector<2x32xf32>
    %455 = arith.addf %453, %454 : vector<2x32xf32>
    %456 = vector.extract_strided_slice %445 {offsets = [0, 32], sizes = [2, 32], strides = [1, 1]} : vector<2x128xf32> to vector<2x32xf32>
    %cst_158 = arith.constant 5.000000e-01 : f32
    %457 = vector.broadcast %cst_158 : f32 to vector<2x32xf32>
    %458 = arith.mulf %457, %456 : vector<2x32xf32>
    %cst_159 = arith.constant 5.000000e-01 : f32
    %459 = vector.broadcast %cst_159 : f32 to vector<2x32xf32>
    %460 = arith.addf %458, %459 : vector<2x32xf32>
    %461 = vector.extract_strided_slice %445 {offsets = [0, 64], sizes = [2, 32], strides = [1, 1]} : vector<2x128xf32> to vector<2x32xf32>
    %462 = vector.extract_strided_slice %445 {offsets = [0, 96], sizes = [2, 32], strides = [1, 1]} : vector<2x128xf32> to vector<2x32xf32>
    %cst_160 = arith.constant 5.000000e-01 : f32
    %463 = vector.broadcast %cst_160 : f32 to vector<2x32xf32>
    %464 = arith.mulf %463, %462 : vector<2x32xf32>
    %cst_161 = arith.constant 5.000000e-01 : f32
    %465 = vector.broadcast %cst_161 : f32 to vector<2x32xf32>
    %466 = arith.addf %464, %465 : vector<2x32xf32>
    %467 = arith.mulf %460, %408 : vector<2x32xf32>
    %468 = arith.mulf %455, %461 : vector<2x32xf32>
    %469 = arith.addf %467, %468 : vector<2x32xf32>
    %470 = math.tanh %469 : vector<2x32xf32>
    %471 = arith.mulf %466, %470 : vector<2x32xf32>
    %472 = vector.extract_strided_slice %450 {offsets = [0, 0], sizes = [2, 32], strides = [1, 1]} : vector<2x128xf32> to vector<2x32xf32>
    %cst_162 = arith.constant 5.000000e-01 : f32
    %473 = vector.broadcast %cst_162 : f32 to vector<2x32xf32>
    %474 = arith.mulf %473, %472 : vector<2x32xf32>
    %cst_163 = arith.constant 5.000000e-01 : f32
    %475 = vector.broadcast %cst_163 : f32 to vector<2x32xf32>
    %476 = arith.addf %474, %475 : vector<2x32xf32>
    %477 = vector.extract_strided_slice %450 {offsets = [0, 32], sizes = [2, 32], strides = [1, 1]} : vector<2x128xf32> to vector<2x32xf32>
    %cst_164 = arith.constant 5.000000e-01 : f32
    %478 = vector.broadcast %cst_164 : f32 to vector<2x32xf32>
    %479 = arith.mulf %478, %477 : vector<2x32xf32>
    %cst_165 = arith.constant 5.000000e-01 : f32
    %480 = vector.broadcast %cst_165 : f32 to vector<2x32xf32>
    %481 = arith.addf %479, %480 : vector<2x32xf32>
    %482 = vector.extract_strided_slice %450 {offsets = [0, 64], sizes = [2, 32], strides = [1, 1]} : vector<2x128xf32> to vector<2x32xf32>
    %483 = vector.extract_strided_slice %450 {offsets = [0, 96], sizes = [2, 32], strides = [1, 1]} : vector<2x128xf32> to vector<2x32xf32>
    %cst_166 = arith.constant 5.000000e-01 : f32
    %484 = vector.broadcast %cst_166 : f32 to vector<2x32xf32>
    %485 = arith.mulf %484, %483 : vector<2x32xf32>
    %cst_167 = arith.constant 5.000000e-01 : f32
    %486 = vector.broadcast %cst_167 : f32 to vector<2x32xf32>
    %487 = arith.addf %485, %486 : vector<2x32xf32>
    %488 = arith.mulf %481, %429 : vector<2x32xf32>
    %489 = arith.mulf %476, %482 : vector<2x32xf32>
    %490 = arith.addf %488, %489 : vector<2x32xf32>
    %491 = math.tanh %490 : vector<2x32xf32>
    %492 = arith.mulf %487, %491 : vector<2x32xf32>
    %493 = arith.index_cast %438 : i32 to index
    %c0_168 = arith.constant 0 : index
    %494 = vector.load %arg13[%493, %c0_168] : memref<16x32xf32, #tpu.memory_space<vmem>>, vector<2x32xf32>
    tpu.vector_store %arg13[%493, %c0_168], %471 {strides = array<i32>} : memref<16x32xf32, #tpu.memory_space<vmem>>, vector<2x32xf32>,
    %495 = arith.index_cast %440 : i32 to index
    %c0_169 = arith.constant 0 : index
    %496 = vector.load %arg14[%495, %c0_169] : memref<16x32xf32, #tpu.memory_space<vmem>>, vector<2x32xf32>
    tpu.vector_store %arg14[%495, %c0_169], %492 {strides = array<i32>} : memref<16x32xf32, #tpu.memory_space<vmem>>, vector<2x32xf32>,
    %497 = tpu.concatenate %471, %492 in 1 : vector<2x32xf32>, vector<2x32xf32> -> vector<2x64xf32>
    %c8_i32 = arith.constant 8 : i32
    %c0_170 = arith.constant 0 : index
    %c0_171 = arith.constant 0 : index
    %498 = vector.load %arg13[%c0_170, %c0_171] : memref<16x32xf32, #tpu.memory_space<vmem>>, vector<16x32xf32>
    %c0_172 = arith.constant 0 : index
    %c0_173 = arith.constant 0 : index
    %499 = vector.load %arg4[%c0_172, %c0_173] : memref<32x256xf32, #tpu.memory_space<vmem>>, vector<32x256xf32>
    %cst_174 = arith.constant dense<0.000000e+00> : vector<16x256xf32>
    %500 = tpu.matmul %498, %499, %cst_174 {dimension_numbers = #tpu.dot_dimension_numbers<[1], [0], [0], [1], [0, 0, 1, 1], [], []>} : vector<16x32xf32>, vector<32x256xf32>, vector<16x256xf32> -> vector<16x256xf32>
    %c0_175 = arith.constant 0 : index
    %c0_176 = arith.constant 0 : index
    %501 = vector.load %arg14[%c0_175, %c0_176] : memref<16x32xf32, #tpu.memory_space<vmem>>, vector<16x32xf32>
    %c0_177 = arith.constant 0 : index
    %c0_178 = arith.constant 0 : index
    %502 = vector.load %arg5[%c0_177, %c0_178] : memref<32x256xf32, #tpu.memory_space<vmem>>, vector<32x256xf32>
    %cst_179 = arith.constant dense<0.000000e+00> : vector<16x256xf32>
    %503 = tpu.matmul %501, %502, %cst_179 {dimension_numbers = #tpu.dot_dimension_numbers<[1], [0], [0], [1], [0, 0, 1, 1], [], []>} : vector<16x32xf32>, vector<32x256xf32>, vector<16x256xf32> -> vector<16x256xf32>
    %504 = arith.addf %500, %503 : vector<16x256xf32>
    %c0_180 = arith.constant 0 : index
    %c0_181 = arith.constant 0 : index
    %505 = vector.load %arg7[%c0_180, %c0_181] : memref<1x256xf32, #tpu.memory_space<vmem>>, vector<1x256xf32>
    %506 = vector.broadcast %505 : vector<1x256xf32> to vector<16x256xf32>
    %507 = arith.addf %504, %506 : vector<16x256xf32>
    %c0_182 = arith.constant 0 : index
    %c0_183 = arith.constant 0 : index
    %508 = vector.load %arg12[%c0_182, %c0_183] : memref<16x256xf32, #tpu.memory_space<vmem>>, vector<16x256xf32>
    tpu.vector_store %arg12[%c0_182, %c0_183], %507 {strides = array<i32>} : memref<16x256xf32, #tpu.memory_space<vmem>>, vector<16x256xf32>,
    %c0_184 = arith.constant 0 : index
    %c0_185 = arith.constant 0 : index
    %509 = vector.load %arg6[%c0_184, %c0_185] : memref<64x256xf32, #tpu.memory_space<vmem>>, vector<64x256xf32>
    %cst_186 = arith.constant 0.000000e+00 : f32
    %510 = vector.broadcast %cst_186 : f32 to vector<2x64xf32>
    %cst_187 = arith.constant 0.000000e+00 : f32
    %511 = vector.broadcast %cst_187 : f32 to vector<2x32xf32>
    %c0_i32_188 = arith.constant 0 : i32
    %cst_189 = arith.constant dense<0.000000e+00> : vector<2x256xf32>
    %512 = tpu.matmul %510, %509, %cst_189 {dimension_numbers = #tpu.dot_dimension_numbers<[1], [0], [0], [1], [0, 0, 1, 1], [], []>} : vector<2x64xf32>, vector<64x256xf32>, vector<2x256xf32> -> vector<2x256xf32>
    %c2_i32_190 = arith.constant 2 : i32
    %513 = arith.muli %c0_i32_188, %c2_i32_190 : i32
    %c7_i32_191 = arith.constant 7 : i32
    %514 = arith.subi %c7_i32_191, %c0_i32_188 : i32
    %c2_i32_192 = arith.constant 2 : i32
    %515 = arith.muli %514, %c2_i32_192 : i32
    %516 = vector.extract_strided_slice %512 {offsets = [0, 0], sizes = [2, 128], strides = [1, 1]} : vector<2x256xf32> to vector<2x128xf32>
    %517 = arith.index_cast %513 : i32 to index
    %c0_193 = arith.constant 0 : index
    %518 = vector.load %arg12[%517, %c0_193] : memref<16x256xf32, #tpu.memory_space<vmem>>, vector<2x128xf32>
    %519 = arith.addf %516, %518 : vector<2x128xf32>
    %520 = math.tanh %519 : vector<2x128xf32>
    %521 = vector.extract_strided_slice %512 {offsets = [0, 128], sizes = [2, 128], strides = [1, 1]} : vector<2x256xf32> to vector<2x128xf32>
    %522 = arith.index_cast %515 : i32 to index
    %c128_194 = arith.constant 128 : index
    %523 = vector.load %arg12[%522, %c128_194] : memref<16x256xf32, #tpu.memory_space<vmem>>, vector<2x128xf32>
    %524 = arith.addf %521, %523 : vector<2x128xf32>
    %525 = math.tanh %524 : vector<2x128xf32>
    %526 = vector.extract_strided_slice %520 {offsets = [0, 0], sizes = [2, 32], strides = [1, 1]} : vector<2x128xf32> to vector<2x32xf32>
    %cst_195 = arith.constant 5.000000e-01 : f32
    %527 = vector.broadcast %cst_195 : f32 to vector<2x32xf32>
    %528 = arith.mulf %527, %526 : vector<2x32xf32>
    %cst_196 = arith.constant 5.000000e-01 : f32
    %529 = vector.broadcast %cst_196 : f32 to vector<2x32xf32>
    %530 = arith.addf %528, %529 : vector<2x32xf32>
    %531 = vector.extract_strided_slice %520 {offsets = [0, 32], sizes = [2, 32], strides = [1, 1]} : vector<2x128xf32> to vector<2x32xf32>
    %cst_197 = arith.constant 5.000000e-01 : f32
    %532 = vector.broadcast %cst_197 : f32 to vector<2x32xf32>
    %533 = arith.mulf %532, %531 : vector<2x32xf32>
    %cst_198 = arith.constant 5.000000e-01 : f32
    %534 = vector.broadcast %cst_198 : f32 to vector<2x32xf32>
    %535 = arith.addf %533, %534 : vector<2x32xf32>
    %536 = vector.extract_strided_slice %520 {offsets = [0, 64], sizes = [2, 32], strides = [1, 1]} : vector<2x128xf32> to vector<2x32xf32>
    %537 = vector.extract_strided_slice %520 {offsets = [0, 96], sizes = [2, 32], strides = [1, 1]} : vector<2x128xf32> to vector<2x32xf32>
    %cst_199 = arith.constant 5.000000e-01 : f32
    %538 = vector.broadcast %cst_199 : f32 to vector<2x32xf32>
    %539 = arith.mulf %538, %537 : vector<2x32xf32>
    %cst_200 = arith.constant 5.000000e-01 : f32
    %540 = vector.broadcast %cst_200 : f32 to vector<2x32xf32>
    %541 = arith.addf %539, %540 : vector<2x32xf32>
    %542 = arith.mulf %535, %511 : vector<2x32xf32>
    %543 = arith.mulf %530, %536 : vector<2x32xf32>
    %544 = arith.addf %542, %543 : vector<2x32xf32>
    %545 = math.tanh %544 : vector<2x32xf32>
    %546 = arith.mulf %541, %545 : vector<2x32xf32>
    %547 = vector.extract_strided_slice %525 {offsets = [0, 0], sizes = [2, 32], strides = [1, 1]} : vector<2x128xf32> to vector<2x32xf32>
    %cst_201 = arith.constant 5.000000e-01 : f32
    %548 = vector.broadcast %cst_201 : f32 to vector<2x32xf32>
    %549 = arith.mulf %548, %547 : vector<2x32xf32>
    %cst_202 = arith.constant 5.000000e-01 : f32
    %550 = vector.broadcast %cst_202 : f32 to vector<2x32xf32>
    %551 = arith.addf %549, %550 : vector<2x32xf32>
    %552 = vector.extract_strided_slice %525 {offsets = [0, 32], sizes = [2, 32], strides = [1, 1]} : vector<2x128xf32> to vector<2x32xf32>
    %cst_203 = arith.constant 5.000000e-01 : f32
    %553 = vector.broadcast %cst_203 : f32 to vector<2x32xf32>
    %554 = arith.mulf %553, %552 : vector<2x32xf32>
    %cst_204 = arith.constant 5.000000e-01 : f32
    %555 = vector.broadcast %cst_204 : f32 to vector<2x32xf32>
    %556 = arith.addf %554, %555 : vector<2x32xf32>
    %557 = vector.extract_strided_slice %525 {offsets = [0, 64], sizes = [2, 32], strides = [1, 1]} : vector<2x128xf32> to vector<2x32xf32>
    %558 = vector.extract_strided_slice %525 {offsets = [0, 96], sizes = [2, 32], strides = [1, 1]} : vector<2x128xf32> to vector<2x32xf32>
    %cst_205 = arith.constant 5.000000e-01 : f32
    %559 = vector.broadcast %cst_205 : f32 to vector<2x32xf32>
    %560 = arith.mulf %559, %558 : vector<2x32xf32>
    %cst_206 = arith.constant 5.000000e-01 : f32
    %561 = vector.broadcast %cst_206 : f32 to vector<2x32xf32>
    %562 = arith.addf %560, %561 : vector<2x32xf32>
    %563 = arith.mulf %556, %511 : vector<2x32xf32>
    %564 = arith.mulf %551, %557 : vector<2x32xf32>
    %565 = arith.addf %563, %564 : vector<2x32xf32>
    %566 = math.tanh %565 : vector<2x32xf32>
    %567 = arith.mulf %562, %566 : vector<2x32xf32>
    %568 = arith.index_cast %513 : i32 to index
    %c0_207 = arith.constant 0 : index
    %569 = vector.load %arg13[%568, %c0_207] : memref<16x32xf32, #tpu.memory_space<vmem>>, vector<2x32xf32>
    tpu.vector_store %arg13[%568, %c0_207], %546 {strides = array<i32>} : memref<16x32xf32, #tpu.memory_space<vmem>>, vector<2x32xf32>,
    %570 = arith.index_cast %515 : i32 to index
    %c0_208 = arith.constant 0 : index
    %571 = vector.load %arg14[%570, %c0_208] : memref<16x32xf32, #tpu.memory_space<vmem>>, vector<2x32xf32>
    tpu.vector_store %arg14[%570, %c0_208], %567 {strides = array<i32>} : memref<16x32xf32, #tpu.memory_space<vmem>>, vector<2x32xf32>,
    %572 = tpu.concatenate %546, %567 in 1 : vector<2x32xf32>, vector<2x32xf32> -> vector<2x64xf32>
    %c1_i32_209 = arith.constant 1 : i32
    %cst_210 = arith.constant dense<0.000000e+00> : vector<2x256xf32>
    %573 = tpu.matmul %572, %509, %cst_210 {dimension_numbers = #tpu.dot_dimension_numbers<[1], [0], [0], [1], [0, 0, 1, 1], [], []>} : vector<2x64xf32>, vector<64x256xf32>, vector<2x256xf32> -> vector<2x256xf32>
    %c2_i32_211 = arith.constant 2 : i32
    %574 = arith.muli %c1_i32_209, %c2_i32_211 : i32
    %c7_i32_212 = arith.constant 7 : i32
    %575 = arith.subi %c7_i32_212, %c1_i32_209 : i32
    %c2_i32_213 = arith.constant 2 : i32
    %576 = arith.muli %575, %c2_i32_213 : i32
    %577 = vector.extract_strided_slice %573 {offsets = [0, 0], sizes = [2, 128], strides = [1, 1]} : vector<2x256xf32> to vector<2x128xf32>
    %578 = arith.index_cast %574 : i32 to index
    %c0_214 = arith.constant 0 : index
    %579 = vector.load %arg12[%578, %c0_214] : memref<16x256xf32, #tpu.memory_space<vmem>>, vector<2x128xf32>
    %580 = arith.addf %577, %579 : vector<2x128xf32>
    %581 = math.tanh %580 : vector<2x128xf32>
    %582 = vector.extract_strided_slice %573 {offsets = [0, 128], sizes = [2, 128], strides = [1, 1]} : vector<2x256xf32> to vector<2x128xf32>
    %583 = arith.index_cast %576 : i32 to index
    %c128_215 = arith.constant 128 : index
    %584 = vector.load %arg12[%583, %c128_215] : memref<16x256xf32, #tpu.memory_space<vmem>>, vector<2x128xf32>
    %585 = arith.addf %582, %584 : vector<2x128xf32>
    %586 = math.tanh %585 : vector<2x128xf32>
    %587 = vector.extract_strided_slice %581 {offsets = [0, 0], sizes = [2, 32], strides = [1, 1]} : vector<2x128xf32> to vector<2x32xf32>
    %cst_216 = arith.constant 5.000000e-01 : f32
    %588 = vector.broadcast %cst_216 : f32 to vector<2x32xf32>
    %589 = arith.mulf %588, %587 : vector<2x32xf32>
    %cst_217 = arith.constant 5.000000e-01 : f32
    %590 = vector.broadcast %cst_217 : f32 to vector<2x32xf32>
    %591 = arith.addf %589, %590 : vector<2x32xf32>
    %592 = vector.extract_strided_slice %581 {offsets = [0, 32], sizes = [2, 32], strides = [1, 1]} : vector<2x128xf32> to vector<2x32xf32>
    %cst_218 = arith.constant 5.000000e-01 : f32
    %593 = vector.broadcast %cst_218 : f32 to vector<2x32xf32>
    %594 = arith.mulf %593, %592 : vector<2x32xf32>
    %cst_219 = arith.constant 5.000000e-01 : f32
    %595 = vector.broadcast %cst_219 : f32 to vector<2x32xf32>
    %596 = arith.addf %594, %595 : vector<2x32xf32>
    %597 = vector.extract_strided_slice %581 {offsets = [0, 64], sizes = [2, 32], strides = [1, 1]} : vector<2x128xf32> to vector<2x32xf32>
    %598 = vector.extract_strided_slice %581 {offsets = [0, 96], sizes = [2, 32], strides = [1, 1]} : vector<2x128xf32> to vector<2x32xf32>
    %cst_220 = arith.constant 5.000000e-01 : f32
    %599 = vector.broadcast %cst_220 : f32 to vector<2x32xf32>
    %600 = arith.mulf %599, %598 : vector<2x32xf32>
    %cst_221 = arith.constant 5.000000e-01 : f32
    %601 = vector.broadcast %cst_221 : f32 to vector<2x32xf32>
    %602 = arith.addf %600, %601 : vector<2x32xf32>
    %603 = arith.mulf %596, %544 : vector<2x32xf32>
    %604 = arith.mulf %591, %597 : vector<2x32xf32>
    %605 = arith.addf %603, %604 : vector<2x32xf32>
    %606 = math.tanh %605 : vector<2x32xf32>
    %607 = arith.mulf %602, %606 : vector<2x32xf32>
    %608 = vector.extract_strided_slice %586 {offsets = [0, 0], sizes = [2, 32], strides = [1, 1]} : vector<2x128xf32> to vector<2x32xf32>
    %cst_222 = arith.constant 5.000000e-01 : f32
    %609 = vector.broadcast %cst_222 : f32 to vector<2x32xf32>
    %610 = arith.mulf %609, %608 : vector<2x32xf32>
    %cst_223 = arith.constant 5.000000e-01 : f32
    %611 = vector.broadcast %cst_223 : f32 to vector<2x32xf32>
    %612 = arith.addf %610, %611 : vector<2x32xf32>
    %613 = vector.extract_strided_slice %586 {offsets = [0, 32], sizes = [2, 32], strides = [1, 1]} : vector<2x128xf32> to vector<2x32xf32>
    %cst_224 = arith.constant 5.000000e-01 : f32
    %614 = vector.broadcast %cst_224 : f32 to vector<2x32xf32>
    %615 = arith.mulf %614, %613 : vector<2x32xf32>
    %cst_225 = arith.constant 5.000000e-01 : f32
    %616 = vector.broadcast %cst_225 : f32 to vector<2x32xf32>
    %617 = arith.addf %615, %616 : vector<2x32xf32>
    %618 = vector.extract_strided_slice %586 {offsets = [0, 64], sizes = [2, 32], strides = [1, 1]} : vector<2x128xf32> to vector<2x32xf32>
    %619 = vector.extract_strided_slice %586 {offsets = [0, 96], sizes = [2, 32], strides = [1, 1]} : vector<2x128xf32> to vector<2x32xf32>
    %cst_226 = arith.constant 5.000000e-01 : f32
    %620 = vector.broadcast %cst_226 : f32 to vector<2x32xf32>
    %621 = arith.mulf %620, %619 : vector<2x32xf32>
    %cst_227 = arith.constant 5.000000e-01 : f32
    %622 = vector.broadcast %cst_227 : f32 to vector<2x32xf32>
    %623 = arith.addf %621, %622 : vector<2x32xf32>
    %624 = arith.mulf %617, %565 : vector<2x32xf32>
    %625 = arith.mulf %612, %618 : vector<2x32xf32>
    %626 = arith.addf %624, %625 : vector<2x32xf32>
    %627 = math.tanh %626 : vector<2x32xf32>
    %628 = arith.mulf %623, %627 : vector<2x32xf32>
    %629 = arith.index_cast %574 : i32 to index
    %c0_228 = arith.constant 0 : index
    %630 = vector.load %arg13[%629, %c0_228] : memref<16x32xf32, #tpu.memory_space<vmem>>, vector<2x32xf32>
    tpu.vector_store %arg13[%629, %c0_228], %607 {strides = array<i32>} : memref<16x32xf32, #tpu.memory_space<vmem>>, vector<2x32xf32>,
    %631 = arith.index_cast %576 : i32 to index
    %c0_229 = arith.constant 0 : index
    %632 = vector.load %arg14[%631, %c0_229] : memref<16x32xf32, #tpu.memory_space<vmem>>, vector<2x32xf32>
    tpu.vector_store %arg14[%631, %c0_229], %628 {strides = array<i32>} : memref<16x32xf32, #tpu.memory_space<vmem>>, vector<2x32xf32>,
    %633 = tpu.concatenate %607, %628 in 1 : vector<2x32xf32>, vector<2x32xf32> -> vector<2x64xf32>
    %c2_i32_230 = arith.constant 2 : i32
    %cst_231 = arith.constant dense<0.000000e+00> : vector<2x256xf32>
    %634 = tpu.matmul %633, %509, %cst_231 {dimension_numbers = #tpu.dot_dimension_numbers<[1], [0], [0], [1], [0, 0, 1, 1], [], []>} : vector<2x64xf32>, vector<64x256xf32>, vector<2x256xf32> -> vector<2x256xf32>
    %c2_i32_232 = arith.constant 2 : i32
    %635 = arith.muli %c2_i32_230, %c2_i32_232 : i32
    %c7_i32_233 = arith.constant 7 : i32
    %636 = arith.subi %c7_i32_233, %c2_i32_230 : i32
    %c2_i32_234 = arith.constant 2 : i32
    %637 = arith.muli %636, %c2_i32_234 : i32
    %638 = vector.extract_strided_slice %634 {offsets = [0, 0], sizes = [2, 128], strides = [1, 1]} : vector<2x256xf32> to vector<2x128xf32>
    %639 = arith.index_cast %635 : i32 to index
    %c0_235 = arith.constant 0 : index
    %640 = vector.load %arg12[%639, %c0_235] : memref<16x256xf32, #tpu.memory_space<vmem>>, vector<2x128xf32>
    %641 = arith.addf %638, %640 : vector<2x128xf32>
    %642 = math.tanh %641 : vector<2x128xf32>
    %643 = vector.extract_strided_slice %634 {offsets = [0, 128], sizes = [2, 128], strides = [1, 1]} : vector<2x256xf32> to vector<2x128xf32>
    %644 = arith.index_cast %637 : i32 to index
    %c128_236 = arith.constant 128 : index
    %645 = vector.load %arg12[%644, %c128_236] : memref<16x256xf32, #tpu.memory_space<vmem>>, vector<2x128xf32>
    %646 = arith.addf %643, %645 : vector<2x128xf32>
    %647 = math.tanh %646 : vector<2x128xf32>
    %648 = vector.extract_strided_slice %642 {offsets = [0, 0], sizes = [2, 32], strides = [1, 1]} : vector<2x128xf32> to vector<2x32xf32>
    %cst_237 = arith.constant 5.000000e-01 : f32
    %649 = vector.broadcast %cst_237 : f32 to vector<2x32xf32>
    %650 = arith.mulf %649, %648 : vector<2x32xf32>
    %cst_238 = arith.constant 5.000000e-01 : f32
    %651 = vector.broadcast %cst_238 : f32 to vector<2x32xf32>
    %652 = arith.addf %650, %651 : vector<2x32xf32>
    %653 = vector.extract_strided_slice %642 {offsets = [0, 32], sizes = [2, 32], strides = [1, 1]} : vector<2x128xf32> to vector<2x32xf32>
    %cst_239 = arith.constant 5.000000e-01 : f32
    %654 = vector.broadcast %cst_239 : f32 to vector<2x32xf32>
    %655 = arith.mulf %654, %653 : vector<2x32xf32>
    %cst_240 = arith.constant 5.000000e-01 : f32
    %656 = vector.broadcast %cst_240 : f32 to vector<2x32xf32>
    %657 = arith.addf %655, %656 : vector<2x32xf32>
    %658 = vector.extract_strided_slice %642 {offsets = [0, 64], sizes = [2, 32], strides = [1, 1]} : vector<2x128xf32> to vector<2x32xf32>
    %659 = vector.extract_strided_slice %642 {offsets = [0, 96], sizes = [2, 32], strides = [1, 1]} : vector<2x128xf32> to vector<2x32xf32>
    %cst_241 = arith.constant 5.000000e-01 : f32
    %660 = vector.broadcast %cst_241 : f32 to vector<2x32xf32>
    %661 = arith.mulf %660, %659 : vector<2x32xf32>
    %cst_242 = arith.constant 5.000000e-01 : f32
    %662 = vector.broadcast %cst_242 : f32 to vector<2x32xf32>
    %663 = arith.addf %661, %662 : vector<2x32xf32>
    %664 = arith.mulf %657, %605 : vector<2x32xf32>
    %665 = arith.mulf %652, %658 : vector<2x32xf32>
    %666 = arith.addf %664, %665 : vector<2x32xf32>
    %667 = math.tanh %666 : vector<2x32xf32>
    %668 = arith.mulf %663, %667 : vector<2x32xf32>
    %669 = vector.extract_strided_slice %647 {offsets = [0, 0], sizes = [2, 32], strides = [1, 1]} : vector<2x128xf32> to vector<2x32xf32>
    %cst_243 = arith.constant 5.000000e-01 : f32
    %670 = vector.broadcast %cst_243 : f32 to vector<2x32xf32>
    %671 = arith.mulf %670, %669 : vector<2x32xf32>
    %cst_244 = arith.constant 5.000000e-01 : f32
    %672 = vector.broadcast %cst_244 : f32 to vector<2x32xf32>
    %673 = arith.addf %671, %672 : vector<2x32xf32>
    %674 = vector.extract_strided_slice %647 {offsets = [0, 32], sizes = [2, 32], strides = [1, 1]} : vector<2x128xf32> to vector<2x32xf32>
    %cst_245 = arith.constant 5.000000e-01 : f32
    %675 = vector.broadcast %cst_245 : f32 to vector<2x32xf32>
    %676 = arith.mulf %675, %674 : vector<2x32xf32>
    %cst_246 = arith.constant 5.000000e-01 : f32
    %677 = vector.broadcast %cst_246 : f32 to vector<2x32xf32>
    %678 = arith.addf %676, %677 : vector<2x32xf32>
    %679 = vector.extract_strided_slice %647 {offsets = [0, 64], sizes = [2, 32], strides = [1, 1]} : vector<2x128xf32> to vector<2x32xf32>
    %680 = vector.extract_strided_slice %647 {offsets = [0, 96], sizes = [2, 32], strides = [1, 1]} : vector<2x128xf32> to vector<2x32xf32>
    %cst_247 = arith.constant 5.000000e-01 : f32
    %681 = vector.broadcast %cst_247 : f32 to vector<2x32xf32>
    %682 = arith.mulf %681, %680 : vector<2x32xf32>
    %cst_248 = arith.constant 5.000000e-01 : f32
    %683 = vector.broadcast %cst_248 : f32 to vector<2x32xf32>
    %684 = arith.addf %682, %683 : vector<2x32xf32>
    %685 = arith.mulf %678, %626 : vector<2x32xf32>
    %686 = arith.mulf %673, %679 : vector<2x32xf32>
    %687 = arith.addf %685, %686 : vector<2x32xf32>
    %688 = math.tanh %687 : vector<2x32xf32>
    %689 = arith.mulf %684, %688 : vector<2x32xf32>
    %690 = arith.index_cast %635 : i32 to index
    %c0_249 = arith.constant 0 : index
    %691 = vector.load %arg13[%690, %c0_249] : memref<16x32xf32, #tpu.memory_space<vmem>>, vector<2x32xf32>
    tpu.vector_store %arg13[%690, %c0_249], %668 {strides = array<i32>} : memref<16x32xf32, #tpu.memory_space<vmem>>, vector<2x32xf32>,
    %692 = arith.index_cast %637 : i32 to index
    %c0_250 = arith.constant 0 : index
    %693 = vector.load %arg14[%692, %c0_250] : memref<16x32xf32, #tpu.memory_space<vmem>>, vector<2x32xf32>
    tpu.vector_store %arg14[%692, %c0_250], %689 {strides = array<i32>} : memref<16x32xf32, #tpu.memory_space<vmem>>, vector<2x32xf32>,
    %694 = tpu.concatenate %668, %689 in 1 : vector<2x32xf32>, vector<2x32xf32> -> vector<2x64xf32>
    %c3_i32_251 = arith.constant 3 : i32
    %cst_252 = arith.constant dense<0.000000e+00> : vector<2x256xf32>
    %695 = tpu.matmul %694, %509, %cst_252 {dimension_numbers = #tpu.dot_dimension_numbers<[1], [0], [0], [1], [0, 0, 1, 1], [], []>} : vector<2x64xf32>, vector<64x256xf32>, vector<2x256xf32> -> vector<2x256xf32>
    %c2_i32_253 = arith.constant 2 : i32
    %696 = arith.muli %c3_i32_251, %c2_i32_253 : i32
    %c7_i32_254 = arith.constant 7 : i32
    %697 = arith.subi %c7_i32_254, %c3_i32_251 : i32
    %c2_i32_255 = arith.constant 2 : i32
    %698 = arith.muli %697, %c2_i32_255 : i32
    %699 = vector.extract_strided_slice %695 {offsets = [0, 0], sizes = [2, 128], strides = [1, 1]} : vector<2x256xf32> to vector<2x128xf32>
    %700 = arith.index_cast %696 : i32 to index
    %c0_256 = arith.constant 0 : index
    %701 = vector.load %arg12[%700, %c0_256] : memref<16x256xf32, #tpu.memory_space<vmem>>, vector<2x128xf32>
    %702 = arith.addf %699, %701 : vector<2x128xf32>
    %703 = math.tanh %702 : vector<2x128xf32>
    %704 = vector.extract_strided_slice %695 {offsets = [0, 128], sizes = [2, 128], strides = [1, 1]} : vector<2x256xf32> to vector<2x128xf32>
    %705 = arith.index_cast %698 : i32 to index
    %c128_257 = arith.constant 128 : index
    %706 = vector.load %arg12[%705, %c128_257] : memref<16x256xf32, #tpu.memory_space<vmem>>, vector<2x128xf32>
    %707 = arith.addf %704, %706 : vector<2x128xf32>
    %708 = math.tanh %707 : vector<2x128xf32>
    %709 = vector.extract_strided_slice %703 {offsets = [0, 0], sizes = [2, 32], strides = [1, 1]} : vector<2x128xf32> to vector<2x32xf32>
    %cst_258 = arith.constant 5.000000e-01 : f32
    %710 = vector.broadcast %cst_258 : f32 to vector<2x32xf32>
    %711 = arith.mulf %710, %709 : vector<2x32xf32>
    %cst_259 = arith.constant 5.000000e-01 : f32
    %712 = vector.broadcast %cst_259 : f32 to vector<2x32xf32>
    %713 = arith.addf %711, %712 : vector<2x32xf32>
    %714 = vector.extract_strided_slice %703 {offsets = [0, 32], sizes = [2, 32], strides = [1, 1]} : vector<2x128xf32> to vector<2x32xf32>
    %cst_260 = arith.constant 5.000000e-01 : f32
    %715 = vector.broadcast %cst_260 : f32 to vector<2x32xf32>
    %716 = arith.mulf %715, %714 : vector<2x32xf32>
    %cst_261 = arith.constant 5.000000e-01 : f32
    %717 = vector.broadcast %cst_261 : f32 to vector<2x32xf32>
    %718 = arith.addf %716, %717 : vector<2x32xf32>
    %719 = vector.extract_strided_slice %703 {offsets = [0, 64], sizes = [2, 32], strides = [1, 1]} : vector<2x128xf32> to vector<2x32xf32>
    %720 = vector.extract_strided_slice %703 {offsets = [0, 96], sizes = [2, 32], strides = [1, 1]} : vector<2x128xf32> to vector<2x32xf32>
    %cst_262 = arith.constant 5.000000e-01 : f32
    %721 = vector.broadcast %cst_262 : f32 to vector<2x32xf32>
    %722 = arith.mulf %721, %720 : vector<2x32xf32>
    %cst_263 = arith.constant 5.000000e-01 : f32
    %723 = vector.broadcast %cst_263 : f32 to vector<2x32xf32>
    %724 = arith.addf %722, %723 : vector<2x32xf32>
    %725 = arith.mulf %718, %666 : vector<2x32xf32>
    %726 = arith.mulf %713, %719 : vector<2x32xf32>
    %727 = arith.addf %725, %726 : vector<2x32xf32>
    %728 = math.tanh %727 : vector<2x32xf32>
    %729 = arith.mulf %724, %728 : vector<2x32xf32>
    %730 = vector.extract_strided_slice %708 {offsets = [0, 0], sizes = [2, 32], strides = [1, 1]} : vector<2x128xf32> to vector<2x32xf32>
    %cst_264 = arith.constant 5.000000e-01 : f32
    %731 = vector.broadcast %cst_264 : f32 to vector<2x32xf32>
    %732 = arith.mulf %731, %730 : vector<2x32xf32>
    %cst_265 = arith.constant 5.000000e-01 : f32
    %733 = vector.broadcast %cst_265 : f32 to vector<2x32xf32>
    %734 = arith.addf %732, %733 : vector<2x32xf32>
    %735 = vector.extract_strided_slice %708 {offsets = [0, 32], sizes = [2, 32], strides = [1, 1]} : vector<2x128xf32> to vector<2x32xf32>
    %cst_266 = arith.constant 5.000000e-01 : f32
    %736 = vector.broadcast %cst_266 : f32 to vector<2x32xf32>
    %737 = arith.mulf %736, %735 : vector<2x32xf32>
    %cst_267 = arith.constant 5.000000e-01 : f32
    %738 = vector.broadcast %cst_267 : f32 to vector<2x32xf32>
    %739 = arith.addf %737, %738 : vector<2x32xf32>
    %740 = vector.extract_strided_slice %708 {offsets = [0, 64], sizes = [2, 32], strides = [1, 1]} : vector<2x128xf32> to vector<2x32xf32>
    %741 = vector.extract_strided_slice %708 {offsets = [0, 96], sizes = [2, 32], strides = [1, 1]} : vector<2x128xf32> to vector<2x32xf32>
    %cst_268 = arith.constant 5.000000e-01 : f32
    %742 = vector.broadcast %cst_268 : f32 to vector<2x32xf32>
    %743 = arith.mulf %742, %741 : vector<2x32xf32>
    %cst_269 = arith.constant 5.000000e-01 : f32
    %744 = vector.broadcast %cst_269 : f32 to vector<2x32xf32>
    %745 = arith.addf %743, %744 : vector<2x32xf32>
    %746 = arith.mulf %739, %687 : vector<2x32xf32>
    %747 = arith.mulf %734, %740 : vector<2x32xf32>
    %748 = arith.addf %746, %747 : vector<2x32xf32>
    %749 = math.tanh %748 : vector<2x32xf32>
    %750 = arith.mulf %745, %749 : vector<2x32xf32>
    %751 = arith.index_cast %696 : i32 to index
    %c0_270 = arith.constant 0 : index
    %752 = vector.load %arg13[%751, %c0_270] : memref<16x32xf32, #tpu.memory_space<vmem>>, vector<2x32xf32>
    tpu.vector_store %arg13[%751, %c0_270], %729 {strides = array<i32>} : memref<16x32xf32, #tpu.memory_space<vmem>>, vector<2x32xf32>,
    %753 = arith.index_cast %698 : i32 to index
    %c0_271 = arith.constant 0 : index
    %754 = vector.load %arg14[%753, %c0_271] : memref<16x32xf32, #tpu.memory_space<vmem>>, vector<2x32xf32>
    tpu.vector_store %arg14[%753, %c0_271], %750 {strides = array<i32>} : memref<16x32xf32, #tpu.memory_space<vmem>>, vector<2x32xf32>,
    %755 = tpu.concatenate %729, %750 in 1 : vector<2x32xf32>, vector<2x32xf32> -> vector<2x64xf32>
    %c4_i32_272 = arith.constant 4 : i32
    %cst_273 = arith.constant dense<0.000000e+00> : vector<2x256xf32>
    %756 = tpu.matmul %755, %509, %cst_273 {dimension_numbers = #tpu.dot_dimension_numbers<[1], [0], [0], [1], [0, 0, 1, 1], [], []>} : vector<2x64xf32>, vector<64x256xf32>, vector<2x256xf32> -> vector<2x256xf32>
    %c2_i32_274 = arith.constant 2 : i32
    %757 = arith.muli %c4_i32_272, %c2_i32_274 : i32
    %c7_i32_275 = arith.constant 7 : i32
    %758 = arith.subi %c7_i32_275, %c4_i32_272 : i32
    %c2_i32_276 = arith.constant 2 : i32
    %759 = arith.muli %758, %c2_i32_276 : i32
    %760 = vector.extract_strided_slice %756 {offsets = [0, 0], sizes = [2, 128], strides = [1, 1]} : vector<2x256xf32> to vector<2x128xf32>
    %761 = arith.index_cast %757 : i32 to index
    %c0_277 = arith.constant 0 : index
    %762 = vector.load %arg12[%761, %c0_277] : memref<16x256xf32, #tpu.memory_space<vmem>>, vector<2x128xf32>
    %763 = arith.addf %760, %762 : vector<2x128xf32>
    %764 = math.tanh %763 : vector<2x128xf32>
    %765 = vector.extract_strided_slice %756 {offsets = [0, 128], sizes = [2, 128], strides = [1, 1]} : vector<2x256xf32> to vector<2x128xf32>
    %766 = arith.index_cast %759 : i32 to index
    %c128_278 = arith.constant 128 : index
    %767 = vector.load %arg12[%766, %c128_278] : memref<16x256xf32, #tpu.memory_space<vmem>>, vector<2x128xf32>
    %768 = arith.addf %765, %767 : vector<2x128xf32>
    %769 = math.tanh %768 : vector<2x128xf32>
    %770 = vector.extract_strided_slice %764 {offsets = [0, 0], sizes = [2, 32], strides = [1, 1]} : vector<2x128xf32> to vector<2x32xf32>
    %cst_279 = arith.constant 5.000000e-01 : f32
    %771 = vector.broadcast %cst_279 : f32 to vector<2x32xf32>
    %772 = arith.mulf %771, %770 : vector<2x32xf32>
    %cst_280 = arith.constant 5.000000e-01 : f32
    %773 = vector.broadcast %cst_280 : f32 to vector<2x32xf32>
    %774 = arith.addf %772, %773 : vector<2x32xf32>
    %775 = vector.extract_strided_slice %764 {offsets = [0, 32], sizes = [2, 32], strides = [1, 1]} : vector<2x128xf32> to vector<2x32xf32>
    %cst_281 = arith.constant 5.000000e-01 : f32
    %776 = vector.broadcast %cst_281 : f32 to vector<2x32xf32>
    %777 = arith.mulf %776, %775 : vector<2x32xf32>
    %cst_282 = arith.constant 5.000000e-01 : f32
    %778 = vector.broadcast %cst_282 : f32 to vector<2x32xf32>
    %779 = arith.addf %777, %778 : vector<2x32xf32>
    %780 = vector.extract_strided_slice %764 {offsets = [0, 64], sizes = [2, 32], strides = [1, 1]} : vector<2x128xf32> to vector<2x32xf32>
    %781 = vector.extract_strided_slice %764 {offsets = [0, 96], sizes = [2, 32], strides = [1, 1]} : vector<2x128xf32> to vector<2x32xf32>
    %cst_283 = arith.constant 5.000000e-01 : f32
    %782 = vector.broadcast %cst_283 : f32 to vector<2x32xf32>
    %783 = arith.mulf %782, %781 : vector<2x32xf32>
    %cst_284 = arith.constant 5.000000e-01 : f32
    %784 = vector.broadcast %cst_284 : f32 to vector<2x32xf32>
    %785 = arith.addf %783, %784 : vector<2x32xf32>
    %786 = arith.mulf %779, %727 : vector<2x32xf32>
    %787 = arith.mulf %774, %780 : vector<2x32xf32>
    %788 = arith.addf %786, %787 : vector<2x32xf32>
    %789 = math.tanh %788 : vector<2x32xf32>
    %790 = arith.mulf %785, %789 : vector<2x32xf32>
    %791 = vector.extract_strided_slice %769 {offsets = [0, 0], sizes = [2, 32], strides = [1, 1]} : vector<2x128xf32> to vector<2x32xf32>
    %cst_285 = arith.constant 5.000000e-01 : f32
    %792 = vector.broadcast %cst_285 : f32 to vector<2x32xf32>
    %793 = arith.mulf %792, %791 : vector<2x32xf32>
    %cst_286 = arith.constant 5.000000e-01 : f32
    %794 = vector.broadcast %cst_286 : f32 to vector<2x32xf32>
    %795 = arith.addf %793, %794 : vector<2x32xf32>
    %796 = vector.extract_strided_slice %769 {offsets = [0, 32], sizes = [2, 32], strides = [1, 1]} : vector<2x128xf32> to vector<2x32xf32>
    %cst_287 = arith.constant 5.000000e-01 : f32
    %797 = vector.broadcast %cst_287 : f32 to vector<2x32xf32>
    %798 = arith.mulf %797, %796 : vector<2x32xf32>
    %cst_288 = arith.constant 5.000000e-01 : f32
    %799 = vector.broadcast %cst_288 : f32 to vector<2x32xf32>
    %800 = arith.addf %798, %799 : vector<2x32xf32>
    %801 = vector.extract_strided_slice %769 {offsets = [0, 64], sizes = [2, 32], strides = [1, 1]} : vector<2x128xf32> to vector<2x32xf32>
    %802 = vector.extract_strided_slice %769 {offsets = [0, 96], sizes = [2, 32], strides = [1, 1]} : vector<2x128xf32> to vector<2x32xf32>
    %cst_289 = arith.constant 5.000000e-01 : f32
    %803 = vector.broadcast %cst_289 : f32 to vector<2x32xf32>
    %804 = arith.mulf %803, %802 : vector<2x32xf32>
    %cst_290 = arith.constant 5.000000e-01 : f32
    %805 = vector.broadcast %cst_290 : f32 to vector<2x32xf32>
    %806 = arith.addf %804, %805 : vector<2x32xf32>
    %807 = arith.mulf %800, %748 : vector<2x32xf32>
    %808 = arith.mulf %795, %801 : vector<2x32xf32>
    %809 = arith.addf %807, %808 : vector<2x32xf32>
    %810 = math.tanh %809 : vector<2x32xf32>
    %811 = arith.mulf %806, %810 : vector<2x32xf32>
    %812 = arith.index_cast %757 : i32 to index
    %c0_291 = arith.constant 0 : index
    %813 = vector.load %arg13[%812, %c0_291] : memref<16x32xf32, #tpu.memory_space<vmem>>, vector<2x32xf32>
    tpu.vector_store %arg13[%812, %c0_291], %790 {strides = array<i32>} : memref<16x32xf32, #tpu.memory_space<vmem>>, vector<2x32xf32>,
    %814 = arith.index_cast %759 : i32 to index
    %c0_292 = arith.constant 0 : index
    %815 = vector.load %arg14[%814, %c0_292] : memref<16x32xf32, #tpu.memory_space<vmem>>, vector<2x32xf32>
    tpu.vector_store %arg14[%814, %c0_292], %811 {strides = array<i32>} : memref<16x32xf32, #tpu.memory_space<vmem>>, vector<2x32xf32>,
    %816 = tpu.concatenate %790, %811 in 1 : vector<2x32xf32>, vector<2x32xf32> -> vector<2x64xf32>
    %c5_i32_293 = arith.constant 5 : i32
    %cst_294 = arith.constant dense<0.000000e+00> : vector<2x256xf32>
    %817 = tpu.matmul %816, %509, %cst_294 {dimension_numbers = #tpu.dot_dimension_numbers<[1], [0], [0], [1], [0, 0, 1, 1], [], []>} : vector<2x64xf32>, vector<64x256xf32>, vector<2x256xf32> -> vector<2x256xf32>
    %c2_i32_295 = arith.constant 2 : i32
    %818 = arith.muli %c5_i32_293, %c2_i32_295 : i32
    %c7_i32_296 = arith.constant 7 : i32
    %819 = arith.subi %c7_i32_296, %c5_i32_293 : i32
    %c2_i32_297 = arith.constant 2 : i32
    %820 = arith.muli %819, %c2_i32_297 : i32
    %821 = vector.extract_strided_slice %817 {offsets = [0, 0], sizes = [2, 128], strides = [1, 1]} : vector<2x256xf32> to vector<2x128xf32>
    %822 = arith.index_cast %818 : i32 to index
    %c0_298 = arith.constant 0 : index
    %823 = vector.load %arg12[%822, %c0_298] : memref<16x256xf32, #tpu.memory_space<vmem>>, vector<2x128xf32>
    %824 = arith.addf %821, %823 : vector<2x128xf32>
    %825 = math.tanh %824 : vector<2x128xf32>
    %826 = vector.extract_strided_slice %817 {offsets = [0, 128], sizes = [2, 128], strides = [1, 1]} : vector<2x256xf32> to vector<2x128xf32>
    %827 = arith.index_cast %820 : i32 to index
    %c128_299 = arith.constant 128 : index
    %828 = vector.load %arg12[%827, %c128_299] : memref<16x256xf32, #tpu.memory_space<vmem>>, vector<2x128xf32>
    %829 = arith.addf %826, %828 : vector<2x128xf32>
    %830 = math.tanh %829 : vector<2x128xf32>
    %831 = vector.extract_strided_slice %825 {offsets = [0, 0], sizes = [2, 32], strides = [1, 1]} : vector<2x128xf32> to vector<2x32xf32>
    %cst_300 = arith.constant 5.000000e-01 : f32
    %832 = vector.broadcast %cst_300 : f32 to vector<2x32xf32>
    %833 = arith.mulf %832, %831 : vector<2x32xf32>
    %cst_301 = arith.constant 5.000000e-01 : f32
    %834 = vector.broadcast %cst_301 : f32 to vector<2x32xf32>
    %835 = arith.addf %833, %834 : vector<2x32xf32>
    %836 = vector.extract_strided_slice %825 {offsets = [0, 32], sizes = [2, 32], strides = [1, 1]} : vector<2x128xf32> to vector<2x32xf32>
    %cst_302 = arith.constant 5.000000e-01 : f32
    %837 = vector.broadcast %cst_302 : f32 to vector<2x32xf32>
    %838 = arith.mulf %837, %836 : vector<2x32xf32>
    %cst_303 = arith.constant 5.000000e-01 : f32
    %839 = vector.broadcast %cst_303 : f32 to vector<2x32xf32>
    %840 = arith.addf %838, %839 : vector<2x32xf32>
    %841 = vector.extract_strided_slice %825 {offsets = [0, 64], sizes = [2, 32], strides = [1, 1]} : vector<2x128xf32> to vector<2x32xf32>
    %842 = vector.extract_strided_slice %825 {offsets = [0, 96], sizes = [2, 32], strides = [1, 1]} : vector<2x128xf32> to vector<2x32xf32>
    %cst_304 = arith.constant 5.000000e-01 : f32
    %843 = vector.broadcast %cst_304 : f32 to vector<2x32xf32>
    %844 = arith.mulf %843, %842 : vector<2x32xf32>
    %cst_305 = arith.constant 5.000000e-01 : f32
    %845 = vector.broadcast %cst_305 : f32 to vector<2x32xf32>
    %846 = arith.addf %844, %845 : vector<2x32xf32>
    %847 = arith.mulf %840, %788 : vector<2x32xf32>
    %848 = arith.mulf %835, %841 : vector<2x32xf32>
    %849 = arith.addf %847, %848 : vector<2x32xf32>
    %850 = math.tanh %849 : vector<2x32xf32>
    %851 = arith.mulf %846, %850 : vector<2x32xf32>
    %852 = vector.extract_strided_slice %830 {offsets = [0, 0], sizes = [2, 32], strides = [1, 1]} : vector<2x128xf32> to vector<2x32xf32>
    %cst_306 = arith.constant 5.000000e-01 : f32
    %853 = vector.broadcast %cst_306 : f32 to vector<2x32xf32>
    %854 = arith.mulf %853, %852 : vector<2x32xf32>
    %cst_307 = arith.constant 5.000000e-01 : f32
    %855 = vector.broadcast %cst_307 : f32 to vector<2x32xf32>
    %856 = arith.addf %854, %855 : vector<2x32xf32>
    %857 = vector.extract_strided_slice %830 {offsets = [0, 32], sizes = [2, 32], strides = [1, 1]} : vector<2x128xf32> to vector<2x32xf32>
    %cst_308 = arith.constant 5.000000e-01 : f32
    %858 = vector.broadcast %cst_308 : f32 to vector<2x32xf32>
    %859 = arith.mulf %858, %857 : vector<2x32xf32>
    %cst_309 = arith.constant 5.000000e-01 : f32
    %860 = vector.broadcast %cst_309 : f32 to vector<2x32xf32>
    %861 = arith.addf %859, %860 : vector<2x32xf32>
    %862 = vector.extract_strided_slice %830 {offsets = [0, 64], sizes = [2, 32], strides = [1, 1]} : vector<2x128xf32> to vector<2x32xf32>
    %863 = vector.extract_strided_slice %830 {offsets = [0, 96], sizes = [2, 32], strides = [1, 1]} : vector<2x128xf32> to vector<2x32xf32>
    %cst_310 = arith.constant 5.000000e-01 : f32
    %864 = vector.broadcast %cst_310 : f32 to vector<2x32xf32>
    %865 = arith.mulf %864, %863 : vector<2x32xf32>
    %cst_311 = arith.constant 5.000000e-01 : f32
    %866 = vector.broadcast %cst_311 : f32 to vector<2x32xf32>
    %867 = arith.addf %865, %866 : vector<2x32xf32>
    %868 = arith.mulf %861, %809 : vector<2x32xf32>
    %869 = arith.mulf %856, %862 : vector<2x32xf32>
    %870 = arith.addf %868, %869 : vector<2x32xf32>
    %871 = math.tanh %870 : vector<2x32xf32>
    %872 = arith.mulf %867, %871 : vector<2x32xf32>
    %873 = arith.index_cast %818 : i32 to index
    %c0_312 = arith.constant 0 : index
    %874 = vector.load %arg13[%873, %c0_312] : memref<16x32xf32, #tpu.memory_space<vmem>>, vector<2x32xf32>
    tpu.vector_store %arg13[%873, %c0_312], %851 {strides = array<i32>} : memref<16x32xf32, #tpu.memory_space<vmem>>, vector<2x32xf32>,
    %875 = arith.index_cast %820 : i32 to index
    %c0_313 = arith.constant 0 : index
    %876 = vector.load %arg14[%875, %c0_313] : memref<16x32xf32, #tpu.memory_space<vmem>>, vector<2x32xf32>
    tpu.vector_store %arg14[%875, %c0_313], %872 {strides = array<i32>} : memref<16x32xf32, #tpu.memory_space<vmem>>, vector<2x32xf32>,
    %877 = tpu.concatenate %851, %872 in 1 : vector<2x32xf32>, vector<2x32xf32> -> vector<2x64xf32>
    %c6_i32_314 = arith.constant 6 : i32
    %cst_315 = arith.constant dense<0.000000e+00> : vector<2x256xf32>
    %878 = tpu.matmul %877, %509, %cst_315 {dimension_numbers = #tpu.dot_dimension_numbers<[1], [0], [0], [1], [0, 0, 1, 1], [], []>} : vector<2x64xf32>, vector<64x256xf32>, vector<2x256xf32> -> vector<2x256xf32>
    %c2_i32_316 = arith.constant 2 : i32
    %879 = arith.muli %c6_i32_314, %c2_i32_316 : i32
    %c7_i32_317 = arith.constant 7 : i32
    %880 = arith.subi %c7_i32_317, %c6_i32_314 : i32
    %c2_i32_318 = arith.constant 2 : i32
    %881 = arith.muli %880, %c2_i32_318 : i32
    %882 = vector.extract_strided_slice %878 {offsets = [0, 0], sizes = [2, 128], strides = [1, 1]} : vector<2x256xf32> to vector<2x128xf32>
    %883 = arith.index_cast %879 : i32 to index
    %c0_319 = arith.constant 0 : index
    %884 = vector.load %arg12[%883, %c0_319] : memref<16x256xf32, #tpu.memory_space<vmem>>, vector<2x128xf32>
    %885 = arith.addf %882, %884 : vector<2x128xf32>
    %886 = math.tanh %885 : vector<2x128xf32>
    %887 = vector.extract_strided_slice %878 {offsets = [0, 128], sizes = [2, 128], strides = [1, 1]} : vector<2x256xf32> to vector<2x128xf32>
    %888 = arith.index_cast %881 : i32 to index
    %c128_320 = arith.constant 128 : index
    %889 = vector.load %arg12[%888, %c128_320] : memref<16x256xf32, #tpu.memory_space<vmem>>, vector<2x128xf32>
    %890 = arith.addf %887, %889 : vector<2x128xf32>
    %891 = math.tanh %890 : vector<2x128xf32>
    %892 = vector.extract_strided_slice %886 {offsets = [0, 0], sizes = [2, 32], strides = [1, 1]} : vector<2x128xf32> to vector<2x32xf32>
    %cst_321 = arith.constant 5.000000e-01 : f32
    %893 = vector.broadcast %cst_321 : f32 to vector<2x32xf32>
    %894 = arith.mulf %893, %892 : vector<2x32xf32>
    %cst_322 = arith.constant 5.000000e-01 : f32
    %895 = vector.broadcast %cst_322 : f32 to vector<2x32xf32>
    %896 = arith.addf %894, %895 : vector<2x32xf32>
    %897 = vector.extract_strided_slice %886 {offsets = [0, 32], sizes = [2, 32], strides = [1, 1]} : vector<2x128xf32> to vector<2x32xf32>
    %cst_323 = arith.constant 5.000000e-01 : f32
    %898 = vector.broadcast %cst_323 : f32 to vector<2x32xf32>
    %899 = arith.mulf %898, %897 : vector<2x32xf32>
    %cst_324 = arith.constant 5.000000e-01 : f32
    %900 = vector.broadcast %cst_324 : f32 to vector<2x32xf32>
    %901 = arith.addf %899, %900 : vector<2x32xf32>
    %902 = vector.extract_strided_slice %886 {offsets = [0, 64], sizes = [2, 32], strides = [1, 1]} : vector<2x128xf32> to vector<2x32xf32>
    %903 = vector.extract_strided_slice %886 {offsets = [0, 96], sizes = [2, 32], strides = [1, 1]} : vector<2x128xf32> to vector<2x32xf32>
    %cst_325 = arith.constant 5.000000e-01 : f32
    %904 = vector.broadcast %cst_325 : f32 to vector<2x32xf32>
    %905 = arith.mulf %904, %903 : vector<2x32xf32>
    %cst_326 = arith.constant 5.000000e-01 : f32
    %906 = vector.broadcast %cst_326 : f32 to vector<2x32xf32>
    %907 = arith.addf %905, %906 : vector<2x32xf32>
    %908 = arith.mulf %901, %849 : vector<2x32xf32>
    %909 = arith.mulf %896, %902 : vector<2x32xf32>
    %910 = arith.addf %908, %909 : vector<2x32xf32>
    %911 = math.tanh %910 : vector<2x32xf32>
    %912 = arith.mulf %907, %911 : vector<2x32xf32>
    %913 = vector.extract_strided_slice %891 {offsets = [0, 0], sizes = [2, 32], strides = [1, 1]} : vector<2x128xf32> to vector<2x32xf32>
    %cst_327 = arith.constant 5.000000e-01 : f32
    %914 = vector.broadcast %cst_327 : f32 to vector<2x32xf32>
    %915 = arith.mulf %914, %913 : vector<2x32xf32>
    %cst_328 = arith.constant 5.000000e-01 : f32
    %916 = vector.broadcast %cst_328 : f32 to vector<2x32xf32>
    %917 = arith.addf %915, %916 : vector<2x32xf32>
    %918 = vector.extract_strided_slice %891 {offsets = [0, 32], sizes = [2, 32], strides = [1, 1]} : vector<2x128xf32> to vector<2x32xf32>
    %cst_329 = arith.constant 5.000000e-01 : f32
    %919 = vector.broadcast %cst_329 : f32 to vector<2x32xf32>
    %920 = arith.mulf %919, %918 : vector<2x32xf32>
    %cst_330 = arith.constant 5.000000e-01 : f32
    %921 = vector.broadcast %cst_330 : f32 to vector<2x32xf32>
    %922 = arith.addf %920, %921 : vector<2x32xf32>
    %923 = vector.extract_strided_slice %891 {offsets = [0, 64], sizes = [2, 32], strides = [1, 1]} : vector<2x128xf32> to vector<2x32xf32>
    %924 = vector.extract_strided_slice %891 {offsets = [0, 96], sizes = [2, 32], strides = [1, 1]} : vector<2x128xf32> to vector<2x32xf32>
    %cst_331 = arith.constant 5.000000e-01 : f32
    %925 = vector.broadcast %cst_331 : f32 to vector<2x32xf32>
    %926 = arith.mulf %925, %924 : vector<2x32xf32>
    %cst_332 = arith.constant 5.000000e-01 : f32
    %927 = vector.broadcast %cst_332 : f32 to vector<2x32xf32>
    %928 = arith.addf %926, %927 : vector<2x32xf32>
    %929 = arith.mulf %922, %870 : vector<2x32xf32>
    %930 = arith.mulf %917, %923 : vector<2x32xf32>
    %931 = arith.addf %929, %930 : vector<2x32xf32>
    %932 = math.tanh %931 : vector<2x32xf32>
    %933 = arith.mulf %928, %932 : vector<2x32xf32>
    %934 = arith.index_cast %879 : i32 to index
    %c0_333 = arith.constant 0 : index
    %935 = vector.load %arg13[%934, %c0_333] : memref<16x32xf32, #tpu.memory_space<vmem>>, vector<2x32xf32>
    tpu.vector_store %arg13[%934, %c0_333], %912 {strides = array<i32>} : memref<16x32xf32, #tpu.memory_space<vmem>>, vector<2x32xf32>,
    %936 = arith.index_cast %881 : i32 to index
    %c0_334 = arith.constant 0 : index
    %937 = vector.load %arg14[%936, %c0_334] : memref<16x32xf32, #tpu.memory_space<vmem>>, vector<2x32xf32>
    tpu.vector_store %arg14[%936, %c0_334], %933 {strides = array<i32>} : memref<16x32xf32, #tpu.memory_space<vmem>>, vector<2x32xf32>,
    %938 = tpu.concatenate %912, %933 in 1 : vector<2x32xf32>, vector<2x32xf32> -> vector<2x64xf32>
    %c7_i32_335 = arith.constant 7 : i32
    %cst_336 = arith.constant dense<0.000000e+00> : vector<2x256xf32>
    %939 = tpu.matmul %938, %509, %cst_336 {dimension_numbers = #tpu.dot_dimension_numbers<[1], [0], [0], [1], [0, 0, 1, 1], [], []>} : vector<2x64xf32>, vector<64x256xf32>, vector<2x256xf32> -> vector<2x256xf32>
    %c2_i32_337 = arith.constant 2 : i32
    %940 = arith.muli %c7_i32_335, %c2_i32_337 : i32
    %c7_i32_338 = arith.constant 7 : i32
    %941 = arith.subi %c7_i32_338, %c7_i32_335 : i32
    %c2_i32_339 = arith.constant 2 : i32
    %942 = arith.muli %941, %c2_i32_339 : i32
    %943 = vector.extract_strided_slice %939 {offsets = [0, 0], sizes = [2, 128], strides = [1, 1]} : vector<2x256xf32> to vector<2x128xf32>
    %944 = arith.index_cast %940 : i32 to index
    %c0_340 = arith.constant 0 : index
    %945 = vector.load %arg12[%944, %c0_340] : memref<16x256xf32, #tpu.memory_space<vmem>>, vector<2x128xf32>
    %946 = arith.addf %943, %945 : vector<2x128xf32>
    %947 = math.tanh %946 : vector<2x128xf32>
    %948 = vector.extract_strided_slice %939 {offsets = [0, 128], sizes = [2, 128], strides = [1, 1]} : vector<2x256xf32> to vector<2x128xf32>
    %949 = arith.index_cast %942 : i32 to index
    %c128_341 = arith.constant 128 : index
    %950 = vector.load %arg12[%949, %c128_341] : memref<16x256xf32, #tpu.memory_space<vmem>>, vector<2x128xf32>
    %951 = arith.addf %948, %950 : vector<2x128xf32>
    %952 = math.tanh %951 : vector<2x128xf32>
    %953 = vector.extract_strided_slice %947 {offsets = [0, 0], sizes = [2, 32], strides = [1, 1]} : vector<2x128xf32> to vector<2x32xf32>
    %cst_342 = arith.constant 5.000000e-01 : f32
    %954 = vector.broadcast %cst_342 : f32 to vector<2x32xf32>
    %955 = arith.mulf %954, %953 : vector<2x32xf32>
    %cst_343 = arith.constant 5.000000e-01 : f32
    %956 = vector.broadcast %cst_343 : f32 to vector<2x32xf32>
    %957 = arith.addf %955, %956 : vector<2x32xf32>
    %958 = vector.extract_strided_slice %947 {offsets = [0, 32], sizes = [2, 32], strides = [1, 1]} : vector<2x128xf32> to vector<2x32xf32>
    %cst_344 = arith.constant 5.000000e-01 : f32
    %959 = vector.broadcast %cst_344 : f32 to vector<2x32xf32>
    %960 = arith.mulf %959, %958 : vector<2x32xf32>
    %cst_345 = arith.constant 5.000000e-01 : f32
    %961 = vector.broadcast %cst_345 : f32 to vector<2x32xf32>
    %962 = arith.addf %960, %961 : vector<2x32xf32>
    %963 = vector.extract_strided_slice %947 {offsets = [0, 64], sizes = [2, 32], strides = [1, 1]} : vector<2x128xf32> to vector<2x32xf32>
    %964 = vector.extract_strided_slice %947 {offsets = [0, 96], sizes = [2, 32], strides = [1, 1]} : vector<2x128xf32> to vector<2x32xf32>
    %cst_346 = arith.constant 5.000000e-01 : f32
    %965 = vector.broadcast %cst_346 : f32 to vector<2x32xf32>
    %966 = arith.mulf %965, %964 : vector<2x32xf32>
    %cst_347 = arith.constant 5.000000e-01 : f32
    %967 = vector.broadcast %cst_347 : f32 to vector<2x32xf32>
    %968 = arith.addf %966, %967 : vector<2x32xf32>
    %969 = arith.mulf %962, %910 : vector<2x32xf32>
    %970 = arith.mulf %957, %963 : vector<2x32xf32>
    %971 = arith.addf %969, %970 : vector<2x32xf32>
    %972 = math.tanh %971 : vector<2x32xf32>
    %973 = arith.mulf %968, %972 : vector<2x32xf32>
    %974 = vector.extract_strided_slice %952 {offsets = [0, 0], sizes = [2, 32], strides = [1, 1]} : vector<2x128xf32> to vector<2x32xf32>
    %cst_348 = arith.constant 5.000000e-01 : f32
    %975 = vector.broadcast %cst_348 : f32 to vector<2x32xf32>
    %976 = arith.mulf %975, %974 : vector<2x32xf32>
    %cst_349 = arith.constant 5.000000e-01 : f32
    %977 = vector.broadcast %cst_349 : f32 to vector<2x32xf32>
    %978 = arith.addf %976, %977 : vector<2x32xf32>
    %979 = vector.extract_strided_slice %952 {offsets = [0, 32], sizes = [2, 32], strides = [1, 1]} : vector<2x128xf32> to vector<2x32xf32>
    %cst_350 = arith.constant 5.000000e-01 : f32
    %980 = vector.broadcast %cst_350 : f32 to vector<2x32xf32>
    %981 = arith.mulf %980, %979 : vector<2x32xf32>
    %cst_351 = arith.constant 5.000000e-01 : f32
    %982 = vector.broadcast %cst_351 : f32 to vector<2x32xf32>
    %983 = arith.addf %981, %982 : vector<2x32xf32>
    %984 = vector.extract_strided_slice %952 {offsets = [0, 64], sizes = [2, 32], strides = [1, 1]} : vector<2x128xf32> to vector<2x32xf32>
    %985 = vector.extract_strided_slice %952 {offsets = [0, 96], sizes = [2, 32], strides = [1, 1]} : vector<2x128xf32> to vector<2x32xf32>
    %cst_352 = arith.constant 5.000000e-01 : f32
    %986 = vector.broadcast %cst_352 : f32 to vector<2x32xf32>
    %987 = arith.mulf %986, %985 : vector<2x32xf32>
    %cst_353 = arith.constant 5.000000e-01 : f32
    %988 = vector.broadcast %cst_353 : f32 to vector<2x32xf32>
    %989 = arith.addf %987, %988 : vector<2x32xf32>
    %990 = arith.mulf %983, %931 : vector<2x32xf32>
    %991 = arith.mulf %978, %984 : vector<2x32xf32>
    %992 = arith.addf %990, %991 : vector<2x32xf32>
    %993 = math.tanh %992 : vector<2x32xf32>
    %994 = arith.mulf %989, %993 : vector<2x32xf32>
    %995 = arith.index_cast %940 : i32 to index
    %c0_354 = arith.constant 0 : index
    %996 = vector.load %arg13[%995, %c0_354] : memref<16x32xf32, #tpu.memory_space<vmem>>, vector<2x32xf32>
    tpu.vector_store %arg13[%995, %c0_354], %973 {strides = array<i32>} : memref<16x32xf32, #tpu.memory_space<vmem>>, vector<2x32xf32>,
    %997 = arith.index_cast %942 : i32 to index
    %c0_355 = arith.constant 0 : index
    %998 = vector.load %arg14[%997, %c0_355] : memref<16x32xf32, #tpu.memory_space<vmem>>, vector<2x32xf32>
    tpu.vector_store %arg14[%997, %c0_355], %994 {strides = array<i32>} : memref<16x32xf32, #tpu.memory_space<vmem>>, vector<2x32xf32>,
    %999 = tpu.concatenate %973, %994 in 1 : vector<2x32xf32>, vector<2x32xf32> -> vector<2x64xf32>
    %c8_i32_356 = arith.constant 8 : i32
    %c0_357 = arith.constant 0 : index
    %c0_358 = arith.constant 0 : index
    %1000 = vector.load %arg13[%c0_357, %c0_358] : memref<16x32xf32, #tpu.memory_space<vmem>>, vector<16x32xf32>
    %c0_359 = arith.constant 0 : index
    %c0_360 = arith.constant 0 : index
    %1001 = vector.load %arg8[%c0_359, %c0_360] : memref<1x32xf32, #tpu.memory_space<vmem>>, vector<1x32xf32>
    %1002 = vector.broadcast %1001 : vector<1x32xf32> to vector<16x32xf32>
    %1003 = arith.mulf %1000, %1002 : vector<16x32xf32>
    %cst_361 = arith.constant dense<0.000000e+00> : vector<16xf32>
    %1004 = vector.multi_reduction <add>, %1003, %cst_361 [1] : vector<16x32xf32> to vector<16xf32>
    %1005 = vector.shape_cast %1004 : vector<16xf32> to vector<16x1xf32>
    %c0_362 = arith.constant 0 : index
    %c0_363 = arith.constant 0 : index
    %1006 = vector.load %arg14[%c0_362, %c0_363] : memref<16x32xf32, #tpu.memory_space<vmem>>, vector<16x32xf32>
    %c0_364 = arith.constant 0 : index
    %c0_365 = arith.constant 0 : index
    %1007 = vector.load %arg9[%c0_364, %c0_365] : memref<1x32xf32, #tpu.memory_space<vmem>>, vector<1x32xf32>
    %1008 = vector.broadcast %1007 : vector<1x32xf32> to vector<16x32xf32>
    %1009 = arith.mulf %1006, %1008 : vector<16x32xf32>
    %cst_366 = arith.constant dense<0.000000e+00> : vector<16xf32>
    %1010 = vector.multi_reduction <add>, %1009, %cst_366 [1] : vector<16x32xf32> to vector<16xf32>
    %1011 = vector.shape_cast %1010 : vector<16xf32> to vector<16x1xf32>
    %1012 = arith.addf %1005, %1011 : vector<16x1xf32>
    %c0_367 = arith.constant 0 : index
    %c0_368 = arith.constant 0 : index
    %1013 = vector.load %arg10[%c0_367, %c0_368] : memref<1x1xf32, #tpu.memory_space<vmem>>, vector<1x1xf32>
    %1014 = vector.broadcast %1013 : vector<1x1xf32> to vector<16x1xf32>
    %1015 = arith.addf %1012, %1014 : vector<16x1xf32>
    %1016 = arith.negf %1015 : vector<16x1xf32>
    %1017 = math.exp %1016 : vector<16x1xf32>
    %cst_369 = arith.constant 1.000000e+00 : f32
    %1018 = vector.broadcast %cst_369 : f32 to vector<16x1xf32>
    %1019 = arith.addf %1018, %1017 : vector<16x1xf32>
    %1020 = arith.divf %1018, %1019 : vector<16x1xf32>
    %c0_370 = arith.constant 0 : index
    %c0_371 = arith.constant 0 : index
    %1021 = vector.load %arg11[%c0_370, %c0_371] : memref<16x1xf32, #tpu.memory_space<vmem>>, vector<16x1xf32>
    tpu.vector_store %arg11[%c0_370, %c0_371], %1020 {strides = array<i32>} : memref<16x1xf32, #tpu.memory_space<vmem>>, vector<16x1xf32>,
    return
  }
}

</mosaic_0001>

<llo_original>
// kernel: birnn_char_tagger_forward.1
$region0: #{birnn_char_tagger_forward.1}
  #allocation0 [shape = 'u32[]', space=smem, size = 0x4, offset = 0x4, fixed_abs, tag = 'smem constant byte address 0x4 - core index']
  #allocation1 [shape = 'u32[144,128]{1,0:T(1,128)}', space=vmem, size = 0x12000, scoped, tag = 'internal scratch']
  #allocation2 [shape = 'f32[16,256]{1,0:T(8,128)}', space=vmem, size = 0x4000, scoped, tag = 'scratch operand']
  #allocation3 [shape = 'f32[16,32]{1,0:T(8,128)}', space=vmem, size = 0x2000, scoped, tag = 'scratch operand']
  #allocation4 [shape = 'f32[16,32]{1,0:T(8,128)}', space=vmem, size = 0x2000, scoped, tag = 'scratch operand']
  #allocation5 [shape = 'f32[1,1]{1,0:T(1,128)S(1)}', space=vmem, size = 0x200, scoped, tag = 'scoped memory for birnn_char_tagger_forward.1']
  %s0 = inlined_call_operand.vmem [shape: f32[16,16], index: 0, kind: input, shape index: {}]
  %s1 = inlined_call_operand.vmem [shape: f32[16,256], index: 1, kind: input, shape index: {}]
  %s2 = inlined_call_operand.hbm [shape: f32[64,256], index: 2, kind: input, shape index: {}]
  %s3 = inlined_call_operand.vmem [shape: f32[1,256], index: 3, kind: input, shape index: {}]
  %s4 = inlined_call_operand.hbm [shape: f32[32,256], index: 4, kind: input, shape index: {}]
  %s5 = inlined_call_operand.hbm [shape: f32[32,256], index: 5, kind: input, shape index: {}]
  %s6 = inlined_call_operand.hbm [shape: f32[64,256], index: 6, kind: input, shape index: {}]
  %s7 = inlined_call_operand.vmem [shape: f32[1,256], index: 7, kind: input, shape index: {}]
  %s8 = inlined_call_operand.vmem [shape: f32[1,32], index: 8, kind: input, shape index: {}]
  %s9 = inlined_call_operand.vmem [shape: f32[1,32], index: 9, kind: input, shape index: {}]
  %s10 = inlined_call_operand.<no memory space> [shape: f32[1,1], index: 10, kind: input, shape index: {}]
  %s11 = inlined_call_operand.vmem [shape: f32[16,1], index: 11, kind: output, shape index: {}]
  %s12 = sld [smem:[#allocation0]]
  $region70: #{birnn_char_tagger_forward.1} parent=0
    _
  %s14 = ssub.s32 1, %s12
  %s15 = scalar_select 0, %s14, %s12
  %v16 = vstv %s10
  %17 = vst [vmem:[#allocation5] sm:$0x1] %v16
  $region1: #{birnn_char_tagger_forward.1} parent=0
    #allocation6 [shape = 'u8[65536]{0}', space=vmem, size = 0x10000, scoped, tag = 'input window, operand 2, single buffered']
    #allocation7 [shape = 's32[1]{0}', space=sflag, size = 0x4, scoped, tag = 'scoped memory for birnn_char_tagger_forward.1']
    #allocation8 [shape = 'u8[32768]{0}', space=vmem, size = 0x8000, scoped, tag = 'input window, operand 4, single buffered']
    #allocation9 [shape = 's32[1]{0}', space=sflag, size = 0x4, scoped, tag = 'scoped memory for birnn_char_tagger_forward.1']
    #allocation10 [shape = 'u8[32768]{0}', space=vmem, size = 0x8000, scoped, tag = 'input window, operand 5, single buffered']
    #allocation11 [shape = 'u8[65536]{0}', space=vmem, size = 0x10000, scoped, tag = 'input window, operand 6, single buffered']
    #allocation12 [shape = 's32[1]{0}', space=sflag, size = 0x4, scoped, tag = 'scoped memory for birnn_char_tagger_forward.1']
    %18 = vsyncpa [#allocation7], 0
    %19 = vsyncpa [#allocation9], 0
    %20 = vsyncpa [#allocation12], 0
    // Predicated region
    $region2: #{birnn_char_tagger_forward.1} parent=1 // pred_check
      _
    $region3: #{birnn_char_tagger_forward.1} parent=1 // pred_check_branch
      %22 = sbr.rel (0) target = $region5
    $region4: #{birnn_char_tagger_forward.1} parent=1 // pred_region
      _
    $region5: #{birnn_char_tagger_forward.1} parent=1 // pred_fallthru
      _
    // Predicated region
    $region6: #{birnn_char_tagger_forward.1} parent=1 // pred_check
      _
    $region7: #{birnn_char_tagger_forward.1} parent=1 // pred_check_branch
      %24 = sbr.rel (0) target = $region9
    $region8: #{birnn_char_tagger_forward.1} parent=1 // pred_region
      _
    $region9: #{birnn_char_tagger_forward.1} parent=1 // pred_fallthru
      _
    // Predicated region
    $region10: #{birnn_char_tagger_forward.1} parent=1 // pred_check
      _
    $region11: #{birnn_char_tagger_forward.1} parent=1 // pred_check_branch
      %26 = sbr.rel (0) target = $region13
    $region12: #{birnn_char_tagger_forward.1} parent=1 // pred_region
      %s28 = ssub.s32 2048, 2048
      %29 = vsyncadd [#allocation7], %s28
      %s30 = sshll.u32 [#allocation6], 4
      %s31 = int_to_ptr.vmem [resolvable:$true] %s30
      %36 = dma.hbm_to_vmem [thread:$0]  %s2, 2048, %s31, [#allocation7], 256, 256, 16
    $region13: #{birnn_char_tagger_forward.1} parent=1 // pred_fallthru
      _
    // Predicated region
    $region14: #{birnn_char_tagger_forward.1} parent=1 // pred_check
      _
    $region15: #{birnn_char_tagger_forward.1} parent=1 // pred_check_branch
      %38 = sbr.rel (0) target = $region17
    $region16: #{birnn_char_tagger_forward.1} parent=1 // pred_region
      _
    $region17: #{birnn_char_tagger_forward.1} parent=1 // pred_fallthru
      _
    // Predicated region
    $region18: #{birnn_char_tagger_forward.1} parent=1 // pred_check
      _
    $region19: #{birnn_char_tagger_forward.1} parent=1 // pred_check_branch
      %40 = sbr.rel (0) target = $region21
    $region20: #{birnn_char_tagger_forward.1} parent=1 // pred_region
      %s42 = ssub.s32 1024, 1024
      %43 = vsyncadd [#allocation9], %s42
      %s44 = sshll.u32 [#allocation8], 4
      %s45 = int_to_ptr.vmem [resolvable:$true] %s44
      %50 = dma.hbm_to_vmem [thread:$0]  %s4, 1024, %s45, [#allocation9], 256, 256, 16
    $region21: #{birnn_char_tagger_forward.1} parent=1 // pred_fallthru
      _
    // Predicated region
    $region22: #{birnn_char_tagger_forward.1} parent=1 // pred_check
      _
    $region23: #{birnn_char_tagger_forward.1} parent=1 // pred_check_branch
      %52 = sbr.rel (0) target = $region25
    $region24: #{birnn_char_tagger_forward.1} parent=1 // pred_region
      %s54 = ssub.s32 1024, 1024
      %55 = vsyncadd [#allocation9], %s54
      %s56 = sshll.u32 [#allocation10], 4
      %s57 = int_to_ptr.vmem [resolvable:$true] %s56
      %62 = dma.hbm_to_vmem [thread:$0]  %s5, 1024, %s57, [#allocation9], 256, 256, 16
    $region25: #{birnn_char_tagger_forward.1} parent=1 // pred_fallthru
      _
    // Predicated region
    $region26: #{birnn_char_tagger_forward.1} parent=1 // pred_check
      _
    $region27: #{birnn_char_tagger_forward.1} parent=1 // pred_check_branch
      %64 = sbr.rel (0) target = $region29
    $region28: #{birnn_char_tagger_forward.1} parent=1 // pred_region
      %s66 = ssub.s32 2048, 2048
      %67 = vsyncadd [#allocation12], %s66
      %s68 = sshll.u32 [#allocation11], 4
      %s69 = int_to_ptr.vmem [resolvable:$true] %s68
      %74 = dma.hbm_to_vmem [thread:$0]  %s6, 2048, %s69, [#allocation12], 256, 256, 16
    $region29: #{birnn_char_tagger_forward.1} parent=1 // pred_fallthru
      _
    // Predicated region
    $region30: #{birnn_char_tagger_forward.1} parent=1 // pred_check
      _
    $region31: #{birnn_char_tagger_forward.1} parent=1 // pred_check_branch
      %76 = sbr.rel (0) target = $region33
    $region32: #{birnn_char_tagger_forward.1} parent=1 // pred_region
      _
    $region33: #{birnn_char_tagger_forward.1} parent=1 // pred_fallthru
      _
    // Predicated region
    $region34: #{birnn_char_tagger_forward.1} parent=1 // pred_check
      _
    $region35: #{birnn_char_tagger_forward.1} parent=1 // pred_check_branch
      %78 = sbr.rel (0) target = $region37
    $region36: #{birnn_char_tagger_forward.1} parent=1 // pred_region
      _
    $region37: #{birnn_char_tagger_forward.1} parent=1 // pred_fallthru
      _
    // Predicated region
    $region38: #{birnn_char_tagger_forward.1} parent=1 // pred_check
      _
    $region39: #{birnn_char_tagger_forward.1} parent=1 // pred_check_branch
      %80 = sbr.rel (0) target = $region41
    $region40: #{birnn_char_tagger_forward.1} parent=1 // pred_region
      _
    $region41: #{birnn_char_tagger_forward.1} parent=1 // pred_fallthru
      _
    // Predicated region
    $region42: #{birnn_char_tagger_forward.1} parent=1 // pred_check
      _
    $region43: #{birnn_char_tagger_forward.1} parent=1 // pred_check_branch
      %82 = sbr.rel (0) target = $region45
    $region44: #{birnn_char_tagger_forward.1} parent=1 // pred_region
      _
    $region45: #{birnn_char_tagger_forward.1} parent=1 // pred_fallthru
      _
    // Predicated region
    $region46: #{birnn_char_tagger_forward.1} parent=1 // pred_check
      _
    $region47: #{birnn_char_tagger_forward.1} parent=1 // pred_check_branch
      %84 = sbr.rel (0) target = $region49
    $region48: #{birnn_char_tagger_forward.1} parent=1 // pred_region
      %85 = dma.done [#allocation7], 2048
    $region49: #{birnn_char_tagger_forward.1} parent=1 // pred_fallthru
      _
    // Predicated region
    $region50: #{birnn_char_tagger_forward.1} parent=1 // pred_check
      _
    $region51: #{birnn_char_tagger_forward.1} parent=1 // pred_check_branch
      %87 = sbr.rel (0) target = $region53
    $region52: #{birnn_char_tagger_forward.1} parent=1 // pred_region
      %88 = dma.done [#allocation9], 1024
    $region53: #{birnn_char_tagger_forward.1} parent=1 // pred_fallthru
      _
    // Predicated region
    $region54: #{birnn_char_tagger_forward.1} parent=1 // pred_check
      _
    $region55: #{birnn_char_tagger_forward.1} parent=1 // pred_check_branch
      %90 = sbr.rel (0) target = $region57
    $region56: #{birnn_char_tagger_forward.1} parent=1 // pred_region
      %91 = dma.done [#allocation9], 1024
    $region57: #{birnn_char_tagger_forward.1} parent=1 // pred_fallthru
      _
    // Predicated region
    $region58: #{birnn_char_tagger_forward.1} parent=1 // pred_check
      _
    $region59: #{birnn_char_tagger_forward.1} parent=1 // pred_check_branch
      %93 = sbr.rel (0) target = $region61
    $region60: #{birnn_char_tagger_forward.1} parent=1 // pred_region
      %94 = dma.done [#allocation12], 2048
    $region61: #{birnn_char_tagger_forward.1} parent=1 // pred_fallthru
      _
    %v95 = vld [vmem:[%s0] sm:$0xff]
    %v96 = vld [vmem:[%s0 + $0x8] sm:$0xff]
    %v97 = vld [vmem:[%s1] sm:$0xff]
    %v98 = vld [vmem:[%s1 + $0x8] sm:$0xff]
    %v99 = vld [vmem:[%s1 + $0x10] sm:$0xff]
    %v100 = vld [vmem:[%s1 + $0x18] sm:$0xff]
    %v101 = vld [vmem:[%s3] sm:$0x3]
    %v103 = vlaneseq
    %v104 = vshrl.u32 %v103, 7
    %v105 = vsub.s32 0, %v104
    %v106 = vrot.slane %v101, %v105
    %v107 = vlaneseq
    %v108 = vshrl.u32 %v107, 7
    %v109 = vsub.s32 1, %v108
    %v110 = vrot.slane %v101, %v109
    %vm113 = vcmask 130048
    %v115 = vsel %vm113, %v95, 0
    %v118 = vsel %vm113, %v96, 0
    %120 = vmatprep.subr.mxu0 0.0
    %121 = vmatpush1.msra.mxu0 0.0
    %122 = vmatprep.subr.mxu0 0.0
    %123 = vmatpush1.msra.mxu0 0.0
    %124 = vmatprep.subr.mxu0 0.0
    %125 = vmatpush1.msra.mxu0 0.0
    %126 = vmatprep.subr.mxu0 0.0
    %127 = vmatpush1.msra.mxu0 0.0
    %128 = vmatprep.subr.mxu0 0.0
    %129 = vmatpush1.msra.mxu0 0.0
    %130 = vmatprep.subr.mxu0 0.0
    %131 = vmatpush1.msra.mxu0 0.0
    %132 = vmatprep.subr.mxu0 0.0
    %133 = vmatpush1.msra.mxu0 0.0
    %134 = vmatprep.subr.mxu0 0.0
    %135 = vmatpush1.msra.mxu0 0.0
    %136 = vmatprep.subr.mxu0 0.0
    %137 = vmatpush1.msra.mxu0 0.0
    %138 = vmatprep.subr.mxu0 0.0
    %139 = vmatpush1.msra.mxu0 0.0
    %140 = vmatprep.subr.mxu0 0.0
    %141 = vmatpush1.msra.mxu0 0.0
    %142 = vmatprep.subr.mxu0 0.0
    %143 = vmatpush1.msra.mxu0 0.0
    %144 = vmatprep.subr.mxu0 0.0
    %145 = vmatpush1.msra.mxu0 0.0
    %146 = vmatprep.subr.mxu0 0.0
    %147 = vmatpush1.msra.mxu0 0.0
    %148 = vmatprep.subr.mxu0 %v100
    %149 = vmatpush1.msra.mxu0 %v99
    %150 = vmatprep.subr.mxu0 %v98
    %151 = vmatpush1.msra.mxu0 %v97
    %152 = vmatprep.subr.mxu0 0.0
    %153 = vmatpush2.msra.mxu0 0.0
    %154 = vmatprep.subr.mxu0 0.0
    %155 = vmatpush2.msra.mxu0 0.0
    %156 = vmatprep.subr.mxu0 0.0
    %157 = vmatpush2.msra.mxu0 0.0
    %158 = vmatprep.subr.mxu0 0.0
    %159 = vmatpush2.msra.mxu0 0.0
    %160 = vmatprep.subr.mxu0 0.0
    %161 = vmatpush2.msra.mxu0 0.0
    %162 = vmatprep.subr.mxu0 0.0
    %163 = vmatpush2.msra.mxu0 0.0
    %164 = vmatprep.subr.mxu0 0.0
    %165 = vmatpush2.msra.mxu0 0.0
    %166 = vmatprep.subr.mxu0 0.0
    %167 = vmatpush2.msra.mxu0 0.0
    %168 = vmatprep.subr.mxu0 0.0
    %169 = vmatpush2.msra.mxu0 0.0
    %170 = vmatprep.subr.mxu0 0.0
    %171 = vmatpush2.msra.mxu0 0.0
    %172 = vmatprep.subr.mxu0 0.0
    %173 = vmatpush2.msra.mxu0 0.0
    %174 = vmatprep.subr.mxu0 0.0
    %175 = vmatpush2.msra.mxu0 0.0
    %176 = vmatprep.subr.mxu0 0.0
    %177 = vmatpush2.msra.mxu0 0.0
    %178 = vmatprep.subr.mxu0 0.0
    %179 = vmatpush2.msra.mxu0 0.0
    %180 = vmatprep.subr.mxu0 0.0
    %181 = vmatpush2.msra.mxu0 0.0
    %182 = vmatprep.subr.mxu0 0.0
    %183 = vmatpush2.msra.mxu0 0.0
    %184 = vmatprep.mubr.f32.mxu0 0.0
    %185 = vmatmul.mubr.f32.gmra.mxu0 %v115
    %v186 = vpop.f32.mrf.mxu0
    %v187 = vadd.f32 %v106, %v186
    %v188 = vpop.f32.mrf.mxu0
    %v189 = vadd.f32 %v110, %v188
    %190 = vmatprep.mubr.f32.mxu0 0.0
    %191 = vmatmul.mubr.f32.gmra.mxu0 %v118
    %v192 = vpop.f32.mrf.mxu0
    %v193 = vadd.f32 %v106, %v192
    %v194 = vpop.f32.mrf.mxu0
    %v195 = vadd.f32 %v110, %v194
    %196 = vdwg.mxu0
    %197 = vst [vmem:[#allocation2] sm:$0xff] %v187
    %198 = vst [vmem:[#allocation2 + $0x8] sm:$0xff] %v189
    %199 = vst [vmem:[#allocation2 + $0x10] sm:$0xff] %v193
    %200 = vst [vmem:[#allocation2 + $0x18] sm:$0xff] %v195
    %v201 = vld [vmem:[#allocation6] sm:$0xff]
    %v202 = vld [vmem:[#allocation6 + $0x8] sm:$0xff]
    %v203 = vld [vmem:[#allocation6 + $0x10] sm:$0xff]
    %v204 = vld [vmem:[#allocation6 + $0x18] sm:$0xff]
    %v205 = vld [vmem:[#allocation6 + $0x20] sm:$0xff]
    %v206 = vld [vmem:[#allocation6 + $0x28] sm:$0xff]
    %v207 = vld [vmem:[#allocation6 + $0x30] sm:$0xff]
    %v208 = vld [vmem:[#allocation6 + $0x38] sm:$0xff]
    %v209 = vld [vmem:[#allocation6 + $0x40] sm:$0xff]
    %v210 = vld [vmem:[#allocation6 + $0x48] sm:$0xff]
    %v211 = vld [vmem:[#allocation6 + $0x50] sm:$0xff]
    %v212 = vld [vmem:[#allocation6 + $0x58] sm:$0xff]
    %v213 = vld [vmem:[#allocation6 + $0x60] sm:$0xff]
    %v214 = vld [vmem:[#allocation6 + $0x68] sm:$0xff]
    %v215 = vld [vmem:[#allocation6 + $0x70] sm:$0xff]
    %v216 = vld [vmem:[#allocation6 + $0x78] sm:$0xff]
    %vm217 = vcmask 523264
    %v219 = vsel %vm217, 0.0, 0
    %221 = vmatprep.subr.mxu0 0.0
    %222 = vmatpush1.msra.mxu0 0.0
    %223 = vmatprep.subr.mxu0 0.0
    %224 = vmatpush1.msra.mxu0 0.0
    %225 = vmatprep.subr.mxu0 0.0
    %226 = vmatpush1.msra.mxu0 0.0
    %227 = vmatprep.subr.mxu0 0.0
    %228 = vmatpush1.msra.mxu0 0.0
    %229 = vmatprep.subr.mxu0 0.0
    %230 = vmatpush1.msra.mxu0 0.0
    %231 = vmatprep.subr.mxu0 0.0
    %232 = vmatpush1.msra.mxu0 0.0
    %233 = vmatprep.subr.mxu0 0.0
    %234 = vmatpush1.msra.mxu0 0.0
    %235 = vmatprep.subr.mxu0 0.0
    %236 = vmatpush1.msra.mxu0 0.0
    %237 = vmatprep.subr.mxu0 %v216
    %238 = vmatpush1.msra.mxu0 %v215
    %239 = vmatprep.subr.mxu0 %v214
    %240 = vmatpush1.msra.mxu0 %v213
    %241 = vmatprep.subr.mxu0 %v212
    %242 = vmatpush1.msra.mxu0 %v211
    %243 = vmatprep.subr.mxu0 %v210
    %244 = vmatpush1.msra.mxu0 %v209
    %245 = vmatprep.subr.mxu0 %v208
    %246 = vmatpush1.msra.mxu0 %v207
    %247 = vmatprep.subr.mxu0 %v206
    %248 = vmatpush1.msra.mxu0 %v205
    %249 = vmatprep.subr.mxu0 %v204
    %250 = vmatpush1.msra.mxu0 %v203
    %251 = vmatprep.subr.mxu0 %v202
    %252 = vmatpush1.msra.mxu0 %v201
    %253 = vmatprep.subr.mxu0 0.0
    %254 = vmatpush2.msra.mxu0 0.0
    %255 = vmatprep.subr.mxu0 0.0
    %256 = vmatpush2.msra.mxu0 0.0
    %257 = vmatprep.subr.mxu0 0.0
    %258 = vmatpush2.msra.mxu0 0.0
    %259 = vmatprep.subr.mxu0 0.0
    %260 = vmatpush2.msra.mxu0 0.0
    %261 = vmatprep.subr.mxu0 0.0
    %262 = vmatpush2.msra.mxu0 0.0
    %263 = vmatprep.subr.mxu0 0.0
    %264 = vmatpush2.msra.mxu0 0.0
    %265 = vmatprep.subr.mxu0 0.0
    %266 = vmatpush2.msra.mxu0 0.0
    %267 = vmatprep.subr.mxu0 0.0
    %268 = vmatpush2.msra.mxu0 0.0
    %269 = vmatprep.subr.mxu0 0.0
    %270 = vmatpush2.msra.mxu0 0.0
    %271 = vmatprep.subr.mxu0 0.0
    %272 = vmatpush2.msra.mxu0 0.0
    %273 = vmatprep.subr.mxu0 0.0
    %274 = vmatpush2.msra.mxu0 0.0
    %275 = vmatprep.subr.mxu0 0.0
    %276 = vmatpush2.msra.mxu0 0.0
    %277 = vmatprep.subr.mxu0 0.0
    %278 = vmatpush2.msra.mxu0 0.0
    %279 = vmatprep.subr.mxu0 0.0
    %280 = vmatpush2.msra.mxu0 0.0
    %281 = vmatprep.subr.mxu0 0.0
    %282 = vmatpush2.msra.mxu0 0.0
    %283 = vmatprep.subr.mxu0 0.0
    %284 = vmatpush2.msra.mxu0 0.0
    %285 = vmatprep.mubr.f32.mxu0 0.0
    %286 = vmatmul.mubr.f32.gmra.mxu0 %v219
    %v287 = vpop.f32.mrf.mxu0
    %v288 = vadd.f32 0.0, %v287
    %v289 = vpop.f32.mrf.mxu0
    %v290 = vadd.f32 0.0, %v289
    %291 = vdwg.mxu0
    %v292 = vld [vmem:[#allocation2] sm:$0x3]
    %v293 = vadd.f32 %v288, %v292
    %v294 = vtanh.pop %v293
    %v295 = vld [vmem:[#allocation2 + $0x18] sm:$0xc0]
    %v297 = vrot.slane %v295, 6
    %v299 = vadd.f32 %v290, %v297
    %v300 = vtanh.pop %v299
    %v301 = vmul.f32 %v294, 0.5
    %v302 = vadd.f32 %v301, 0.5
    %v303 = vmul.f32 %v302, 0.0
    %305 = vrot.lane.b32.xlu0 %v294, 64
    %v306 = vpop.permute.xlu0 %305
    %v308 = vmul.f32 %v302, %v306
    %310 = vrot.lane.b32.xlu0 %v308, 32
    %v311 = vpop.permute.xlu0 %310
    %v313 = vadd.f32 %v303, %v311
    %v314 = vtanh.pop %v313
    %316 = vrot.lane.b32.xlu0 %v314, 64
    %v317 = vpop.permute.xlu0 %316
    %v319 = vmul.f32 %v302, %v317
    %v320 = vmul.f32 %v300, 0.5
    %v321 = vadd.f32 %v320, 0.5
    %v322 = vmul.f32 %v321, 0.0
    %324 = vrot.lane.b32.xlu0 %v300, 64
    %v325 = vpop.permute.xlu0 %324
    %v327 = vmul.f32 %v321, %v325
    %329 = vrot.lane.b32.xlu0 %v327, 32
    %v330 = vpop.permute.xlu0 %329
    %v332 = vadd.f32 %v322, %v330
    %v333 = vtanh.pop %v332
    %335 = vrot.lane.b32.xlu0 %v333, 64
    %v336 = vpop.permute.xlu0 %335
    %v338 = vmul.f32 %v321, %v336
    %340 = vrot.lane.b32.xlu0 %v319, 32
    %v341 = vpop.permute.xlu0 %340
    %vm343 = vcmask 254976
    %344 = vst.msk [vmem:[#allocation3] sm:$0x3] %vm343, %v341
    %346 = vrot.lane.b32.xlu0 %v338, 32
    %v347 = vpop.permute.xlu0 %346
    %349 = vst.msk [vmem:[#allocation4 + $0xe] sm:$0x3] %vm343, %v347
    %350 = vrot.lane.b32.xlu0 %v338, 64
    %v351 = vpop.permute.xlu0 %350
    %vm353 = vcmask 261120
    %v354 = vsel %vm353, %v341, %v351
    %v356 = vsel %vm217, %v354, 0
    %358 = vmatprep.subr.mxu0 0.0
    %359 = vmatpush1.msra.mxu0 0.0
    %360 = vmatprep.subr.mxu0 0.0
    %361 = vmatpush1.msra.mxu0 0.0
    %362 = vmatprep.subr.mxu0 0.0
    %363 = vmatpush1.msra.mxu0 0.0
    %364 = vmatprep.subr.mxu0 0.0
    %365 = vmatpush1.msra.mxu0 0.0
    %366 = vmatprep.subr.mxu0 0.0
    %367 = vmatpush1.msra.mxu0 0.0
    %368 = vmatprep.subr.mxu0 0.0
    %369 = vmatpush1.msra.mxu0 0.0
    %370 = vmatprep.subr.mxu0 0.0
    %371 = vmatpush1.msra.mxu0 0.0
    %372 = vmatprep.subr.mxu0 0.0
    %373 = vmatpush1.msra.mxu0 0.0
    %374 = vmatprep.subr.mxu0 %v216
    %375 = vmatpush1.msra.mxu0 %v215
    %376 = vmatprep.subr.mxu0 %v214
    %377 = vmatpush1.msra.mxu0 %v213
    %378 = vmatprep.subr.mxu0 %v212
    %379 = vmatpush1.msra.mxu0 %v211
    %380 = vmatprep.subr.mxu0 %v210
    %381 = vmatpush1.msra.mxu0 %v209
    %382 = vmatprep.subr.mxu0 %v208
    %383 = vmatpush1.msra.mxu0 %v207
    %384 = vmatprep.subr.mxu0 %v206
    %385 = vmatpush1.msra.mxu0 %v205
    %386 = vmatprep.subr.mxu0 %v204
    %387 = vmatpush1.msra.mxu0 %v203
    %388 = vmatprep.subr.mxu0 %v202
    %389 = vmatpush1.msra.mxu0 %v201
    %390 = vmatprep.subr.mxu0 0.0
    %391 = vmatpush2.msra.mxu0 0.0
    %392 = vmatprep.subr.mxu0 0.0
    %393 = vmatpush2.msra.mxu0 0.0
    %394 = vmatprep.subr.mxu0 0.0
    %395 = vmatpush2.msra.mxu0 0.0
    %396 = vmatprep.subr.mxu0 0.0
    %397 = vmatpush2.msra.mxu0 0.0
    %398 = vmatprep.subr.mxu0 0.0
    %399 = vmatpush2.msra.mxu0 0.0
    %400 = vmatprep.subr.mxu0 0.0
    %401 = vmatpush2.msra.mxu0 0.0
    %402 = vmatprep.subr.mxu0 0.0
    %403 = vmatpush2.msra.mxu0 0.0
    %404 = vmatprep.subr.mxu0 0.0
    %405 = vmatpush2.msra.mxu0 0.0
    %406 = vmatprep.subr.mxu0 0.0
    %407 = vmatpush2.msra.mxu0 0.0
    %408 = vmatprep.subr.mxu0 0.0
    %409 = vmatpush2.msra.mxu0 0.0
    %410 = vmatprep.subr.mxu0 0.0
    %411 = vmatpush2.msra.mxu0 0.0
    %412 = vmatprep.subr.mxu0 0.0
    %413 = vmatpush2.msra.mxu0 0.0
    %414 = vmatprep.subr.mxu0 0.0
    %415 = vmatpush2.msra.mxu0 0.0
    %416 = vmatprep.subr.mxu0 0.0
    %417 = vmatpush2.msra.mxu0 0.0
    %418 = vmatprep.subr.mxu0 0.0
    %419 = vmatpush2.msra.mxu0 0.0
    %420 = vmatprep.subr.mxu0 0.0
    %421 = vmatpush2.msra.mxu0 0.0
    %422 = vmatprep.mubr.f32.mxu0 0.0
    %423 = vmatmul.mubr.f32.gmra.mxu0 %v356
    %v424 = vpop.f32.mrf.mxu0
    %v425 = vadd.f32 0.0, %v424
    %v426 = vpop.f32.mrf.mxu0
    %v427 = vadd.f32 0.0, %v426
    %428 = vdwg.mxu0
    %v429 = vld [vmem:[#allocation2] sm:$0xc]
    %v431 = vrot.slane %v429, 2
    %v433 = vadd.f32 %v425, %v431
    %v434 = vtanh.pop %v433
    %v435 = vld [vmem:[#allocation2 + $0x18] sm:$0x30]
    %v437 = vrot.slane %v435, 4
    %v439 = vadd.f32 %v427, %v437
    %v440 = vtanh.pop %v439
    %v441 = vmul.f32 %v434, 0.5
    %v442 = vadd.f32 %v441, 0.5
    %v443 = vmul.f32 %v442, %v313
    %445 = vrot.lane.b32.xlu0 %v434, 64
    %v446 = vpop.permute.xlu0 %445
    %v448 = vmul.f32 %v442, %v446
    %450 = vrot.lane.b32.xlu0 %v448, 32
    %v451 = vpop.permute.xlu0 %450
    %v453 = vadd.f32 %v443, %v451
    %v454 = vtanh.pop %v453
    %456 = vrot.lane.b32.xlu0 %v454, 64
    %v457 = vpop.permute.xlu0 %456
    %v459 = vmul.f32 %v442, %v457
    %v460 = vmul.f32 %v440, 0.5
    %v461 = vadd.f32 %v460, 0.5
    %v462 = vmul.f32 %v461, %v332
    %464 = vrot.lane.b32.xlu0 %v440, 64
    %v465 = vpop.permute.xlu0 %464
    %v467 = vmul.f32 %v461, %v465
    %469 = vrot.lane.b32.xlu0 %v467, 32
    %v470 = vpop.permute.xlu0 %469
    %v472 = vadd.f32 %v462, %v470
    %v473 = vtanh.pop %v472
    %475 = vrot.lane.b32.xlu0 %v473, 64
    %v476 = vpop.permute.xlu0 %475
    %v478 = vmul.f32 %v461, %v476
    %480 = vrot.lane.b32.xlu0 %v459, 32
    %v481 = vpop.permute.xlu0 %480
    %483 = vst.msk [vmem:[#allocation3 + $0x2] sm:$0x3] %vm343, %v481
    %485 = vrot.lane.b32.xlu0 %v478, 32
    %v486 = vpop.permute.xlu0 %485
    %488 = vst.msk [vmem:[#allocation4 + $0xc] sm:$0x3] %vm343, %v486
    %489 = vrot.lane.b32.xlu0 %v478, 64
    %v490 = vpop.permute.xlu0 %489
    %v492 = vsel %vm353, %v481, %v490
    %v494 = vsel %vm217, %v492, 0
    %496 = vmatprep.subr.mxu0 0.0
    %497 = vmatpush1.msra.mxu0 0.0
    %498 = vmatprep.subr.mxu0 0.0
    %499 = vmatpush1.msra.mxu0 0.0
    %500 = vmatprep.subr.mxu0 0.0
    %501 = vmatpush1.msra.mxu0 0.0
    %502 = vmatprep.subr.mxu0 0.0
    %503 = vmatpush1.msra.mxu0 0.0
    %504 = vmatprep.subr.mxu0 0.0
    %505 = vmatpush1.msra.mxu0 0.0
    %506 = vmatprep.subr.mxu0 0.0
    %507 = vmatpush1.msra.mxu0 0.0
    %508 = vmatprep.subr.mxu0 0.0
    %509 = vmatpush1.msra.mxu0 0.0
    %510 = vmatprep.subr.mxu0 0.0
    %511 = vmatpush1.msra.mxu0 0.0
    %512 = vmatprep.subr.mxu0 %v216
    %513 = vmatpush1.msra.mxu0 %v215
    %514 = vmatprep.subr.mxu0 %v214
    %515 = vmatpush1.msra.mxu0 %v213
    %516 = vmatprep.subr.mxu0 %v212
    %517 = vmatpush1.msra.mxu0 %v211
    %518 = vmatprep.subr.mxu0 %v210
    %519 = vmatpush1.msra.mxu0 %v209
    %520 = vmatprep.subr.mxu0 %v208
    %521 = vmatpush1.msra.mxu0 %v207
    %522 = vmatprep.subr.mxu0 %v206
    %523 = vmatpush1.msra.mxu0 %v205
    %524 = vmatprep.subr.mxu0 %v204
    %525 = vmatpush1.msra.mxu0 %v203
    %526 = vmatprep.subr.mxu0 %v202
    %527 = vmatpush1.msra.mxu0 %v201
    %528 = vmatprep.subr.mxu0 0.0
    %529 = vmatpush2.msra.mxu0 0.0
    %530 = vmatprep.subr.mxu0 0.0
    %531 = vmatpush2.msra.mxu0 0.0
    %532 = vmatprep.subr.mxu0 0.0
    %533 = vmatpush2.msra.mxu0 0.0
    %534 = vmatprep.subr.mxu0 0.0
    %535 = vmatpush2.msra.mxu0 0.0
    %536 = vmatprep.subr.mxu0 0.0
    %537 = vmatpush2.msra.mxu0 0.0
    %538 = vmatprep.subr.mxu0 0.0
    %539 = vmatpush2.msra.mxu0 0.0
    %540 = vmatprep.subr.mxu0 0.0
    %541 = vmatpush2.msra.mxu0 0.0
    %542 = vmatprep.subr.mxu0 0.0
    %543 = vmatpush2.msra.mxu0 0.0
    %544 = vmatprep.subr.mxu0 0.0
    %545 = vmatpush2.msra.mxu0 0.0
    %546 = vmatprep.subr.mxu0 0.0
    %547 = vmatpush2.msra.mxu0 0.0
    %548 = vmatprep.subr.mxu0 0.0
    %549 = vmatpush2.msra.mxu0 0.0
    %550 = vmatprep.subr.mxu0 0.0
    %551 = vmatpush2.msra.mxu0 0.0
    %552 = vmatprep.subr.mxu0 0.0
    %553 = vmatpush2.msra.mxu0 0.0
    %554 = vmatprep.subr.mxu0 0.0
    %555 = vmatpush2.msra.mxu0 0.0
    %556 = vmatprep.subr.mxu0 0.0
    %557 = vmatpush2.msra.mxu0 0.0
    %558 = vmatprep.subr.mxu0 0.0
    %559 = vmatpush2.msra.mxu0 0.0
    %560 = vmatprep.mubr.f32.mxu0 0.0
    %561 = vmatmul.mubr.f32.gmra.mxu0 %v494
    %v562 = vpop.f32.mrf.mxu0
    %v563 = vadd.f32 0.0, %v562
    %v564 = vpop.f32.mrf.mxu0
    %v565 = vadd.f32 0.0, %v564
    %566 = vdwg.mxu0
    %v567 = vld [vmem:[#allocation2] sm:$0x30]
    %v569 = vrot.slane %v567, 4
    %v571 = vadd.f32 %v563, %v569
    %v572 = vtanh.pop %v571
    %v573 = vld [vmem:[#allocation2 + $0x18] sm:$0xc]
    %v575 = vrot.slane %v573, 2
    %v577 = vadd.f32 %v565, %v575
    %v578 = vtanh.pop %v577
    %v579 = vmul.f32 %v572, 0.5
    %v580 = vadd.f32 %v579, 0.5
    %v581 = vmul.f32 %v580, %v453
    %583 = vrot.lane.b32.xlu0 %v572, 64
    %v584 = vpop.permute.xlu0 %583
    %v586 = vmul.f32 %v580, %v584
    %588 = vrot.lane.b32.xlu0 %v586, 32
    %v589 = vpop.permute.xlu0 %588
    %v591 = vadd.f32 %v581, %v589
    %v592 = vtanh.pop %v591
    %594 = vrot.lane.b32.xlu0 %v592, 64
    %v595 = vpop.permute.xlu0 %594
    %v597 = vmul.f32 %v580, %v595
    %v598 = vmul.f32 %v578, 0.5
    %v599 = vadd.f32 %v598, 0.5
    %v600 = vmul.f32 %v599, %v472
    %602 = vrot.lane.b32.xlu0 %v578, 64
    %v603 = vpop.permute.xlu0 %602
    %v605 = vmul.f32 %v599, %v603
    %607 = vrot.lane.b32.xlu0 %v605, 32
    %v608 = vpop.permute.xlu0 %607
    %v610 = vadd.f32 %v600, %v608
    %v611 = vtanh.pop %v610
    %613 = vrot.lane.b32.xlu0 %v611, 64
    %v614 = vpop.permute.xlu0 %613
    %v616 = vmul.f32 %v599, %v614
    %618 = vrot.lane.b32.xlu0 %v597, 32
    %v619 = vpop.permute.xlu0 %618
    %621 = vst.msk [vmem:[#allocation3 + $0x4] sm:$0x3] %vm343, %v619
    %623 = vrot.lane.b32.xlu0 %v616, 32
    %v624 = vpop.permute.xlu0 %623
    %626 = vst.msk [vmem:[#allocation4 + $0xa] sm:$0x3] %vm343, %v624
    %627 = vrot.lane.b32.xlu0 %v616, 64
    %v628 = vpop.permute.xlu0 %627
    %v630 = vsel %vm353, %v619, %v628
    %v632 = vsel %vm217, %v630, 0
    %634 = vmatprep.subr.mxu0 0.0
    %635 = vmatpush1.msra.mxu0 0.0
    %636 = vmatprep.subr.mxu0 0.0
    %637 = vmatpush1.msra.mxu0 0.0
    %638 = vmatprep.subr.mxu0 0.0
    %639 = vmatpush1.msra.mxu0 0.0
    %640 = vmatprep.subr.mxu0 0.0
    %641 = vmatpush1.msra.mxu0 0.0
    %642 = vmatprep.subr.mxu0 0.0
    %643 = vmatpush1.msra.mxu0 0.0
    %644 = vmatprep.subr.mxu0 0.0
    %645 = vmatpush1.msra.mxu0 0.0
    %646 = vmatprep.subr.mxu0 0.0
    %647 = vmatpush1.msra.mxu0 0.0
    %648 = vmatprep.subr.mxu0 0.0
    %649 = vmatpush1.msra.mxu0 0.0
    %650 = vmatprep.subr.mxu0 %v216
    %651 = vmatpush1.msra.mxu0 %v215
    %652 = vmatprep.subr.mxu0 %v214
    %653 = vmatpush1.msra.mxu0 %v213
    %654 = vmatprep.subr.mxu0 %v212
    %655 = vmatpush1.msra.mxu0 %v211
    %656 = vmatprep.subr.mxu0 %v210
    %657 = vmatpush1.msra.mxu0 %v209
    %658 = vmatprep.subr.mxu0 %v208
    %659 = vmatpush1.msra.mxu0 %v207
    %660 = vmatprep.subr.mxu0 %v206
    %661 = vmatpush1.msra.mxu0 %v205
    %662 = vmatprep.subr.mxu0 %v204
    %663 = vmatpush1.msra.mxu0 %v203
    %664 = vmatprep.subr.mxu0 %v202
    %665 = vmatpush1.msra.mxu0 %v201
    %666 = vmatprep.subr.mxu0 0.0
    %667 = vmatpush2.msra.mxu0 0.0
    %668 = vmatprep.subr.mxu0 0.0
    %669 = vmatpush2.msra.mxu0 0.0
    %670 = vmatprep.subr.mxu0 0.0
    %671 = vmatpush2.msra.mxu0 0.0
    %672 = vmatprep.subr.mxu0 0.0
    %673 = vmatpush2.msra.mxu0 0.0
    %674 = vmatprep.subr.mxu0 0.0
    %675 = vmatpush2.msra.mxu0 0.0
    %676 = vmatprep.subr.mxu0 0.0
    %677 = vmatpush2.msra.mxu0 0.0
    %678 = vmatprep.subr.mxu0 0.0
    %679 = vmatpush2.msra.mxu0 0.0
    %680 = vmatprep.subr.mxu0 0.0
    %681 = vmatpush2.msra.mxu0 0.0
    %682 = vmatprep.subr.mxu0 0.0
    %683 = vmatpush2.msra.mxu0 0.0
    %684 = vmatprep.subr.mxu0 0.0
    %685 = vmatpush2.msra.mxu0 0.0
    %686 = vmatprep.subr.mxu0 0.0
    %687 = vmatpush2.msra.mxu0 0.0
    %688 = vmatprep.subr.mxu0 0.0
    %689 = vmatpush2.msra.mxu0 0.0
    %690 = vmatprep.subr.mxu0 0.0
    %691 = vmatpush2.msra.mxu0 0.0
    %692 = vmatprep.subr.mxu0 0.0
    %693 = vmatpush2.msra.mxu0 0.0
    %694 = vmatprep.subr.mxu0 0.0
    %695 = vmatpush2.msra.mxu0 0.0
    %696 = vmatprep.subr.mxu0 0.0
    %697 = vmatpush2.msra.mxu0 0.0
    %698 = vmatprep.mubr.f32.mxu0 0.0
    %699 = vmatmul.mubr.f32.gmra.mxu0 %v632
    %v700 = vpop.f32.mrf.mxu0
    %v701 = vadd.f32 0.0, %v700
    %v702 = vpop.f32.mrf.mxu0
    %v703 = vadd.f32 0.0, %v702
    %704 = vdwg.mxu0
    %v705 = vld [vmem:[#allocation2] sm:$0xc0]
    %v707 = vrot.slane %v705, 6
    %v709 = vadd.f32 %v701, %v707
    %v710 = vtanh.pop %v709
    %v711 = vld [vmem:[#allocation2 + $0x18] sm:$0x3]
    %v712 = vadd.f32 %v703, %v711
    %v713 = vtanh.pop %v712
    %v714 = vmul.f32 %v710, 0.5
    %v715 = vadd.f32 %v714, 0.5
    %v716 = vmul.f32 %v715, %v591
    %718 = vrot.lane.b32.xlu0 %v710, 64
    %v719 = vpop.permute.xlu0 %718
    %v721 = vmul.f32 %v715, %v719
    %723 = vrot.lane.b32.xlu0 %v721, 32
    %v724 = vpop.permute.xlu0 %723
    %v726 = vadd.f32 %v716, %v724
    %v727 = vtanh.pop %v726
    %729 = vrot.lane.b32.xlu0 %v727, 64
    %v730 = vpop.permute.xlu0 %729
    %v732 = vmul.f32 %v715, %v730
    %v733 = vmul.f32 %v713, 0.5
    %v734 = vadd.f32 %v733, 0.5
    %v735 = vmul.f32 %v734, %v610
    %737 = vrot.lane.b32.xlu0 %v713, 64
    %v738 = vpop.permute.xlu0 %737
    %v740 = vmul.f32 %v734, %v738
    %742 = vrot.lane.b32.xlu0 %v740, 32
    %v743 = vpop.permute.xlu0 %742
    %v745 = vadd.f32 %v735, %v743
    %v746 = vtanh.pop %v745
    %748 = vrot.lane.b32.xlu0 %v746, 64
    %v749 = vpop.permute.xlu0 %748
    %v751 = vmul.f32 %v734, %v749
    %753 = vrot.lane.b32.xlu0 %v732, 32
    %v754 = vpop.permute.xlu0 %753
    %756 = vst.msk [vmem:[#allocation3 + $0x6] sm:$0x3] %vm343, %v754
    %758 = vrot.lane.b32.xlu0 %v751, 32
    %v759 = vpop.permute.xlu0 %758
    %761 = vst.msk [vmem:[#allocation4 + $0x8] sm:$0x3] %vm343, %v759
    %762 = vrot.lane.b32.xlu0 %v751, 64
    %v763 = vpop.permute.xlu0 %762
    %v765 = vsel %vm353, %v754, %v763
    %v767 = vsel %vm217, %v765, 0
    %769 = vmatprep.subr.mxu0 0.0
    %770 = vmatpush1.msra.mxu0 0.0
    %771 = vmatprep.subr.mxu0 0.0
    %772 = vmatpush1.msra.mxu0 0.0
    %773 = vmatprep.subr.mxu0 0.0
    %774 = vmatpush1.msra.mxu0 0.0
    %775 = vmatprep.subr.mxu0 0.0
    %776 = vmatpush1.msra.mxu0 0.0
    %777 = vmatprep.subr.mxu0 0.0
    %778 = vmatpush1.msra.mxu0 0.0
    %779 = vmatprep.subr.mxu0 0.0
    %780 = vmatpush1.msra.mxu0 0.0
    %781 = vmatprep.subr.mxu0 0.0
    %782 = vmatpush1.msra.mxu0 0.0
    %783 = vmatprep.subr.mxu0 0.0
    %784 = vmatpush1.msra.mxu0 0.0
    %785 = vmatprep.subr.mxu0 %v216
    %786 = vmatpush1.msra.mxu0 %v215
    %787 = vmatprep.subr.mxu0 %v214
    %788 = vmatpush1.msra.mxu0 %v213
    %789 = vmatprep.subr.mxu0 %v212
    %790 = vmatpush1.msra.mxu0 %v211
    %791 = vmatprep.subr.mxu0 %v210
    %792 = vmatpush1.msra.mxu0 %v209
    %793 = vmatprep.subr.mxu0 %v208
    %794 = vmatpush1.msra.mxu0 %v207
    %795 = vmatprep.subr.mxu0 %v206
    %796 = vmatpush1.msra.mxu0 %v205
    %797 = vmatprep.subr.mxu0 %v204
    %798 = vmatpush1.msra.mxu0 %v203
    %799 = vmatprep.subr.mxu0 %v202
    %800 = vmatpush1.msra.mxu0 %v201
    %801 = vmatprep.subr.mxu0 0.0
    %802 = vmatpush2.msra.mxu0 0.0
    %803 = vmatprep.subr.mxu0 0.0
    %804 = vmatpush2.msra.mxu0 0.0
    %805 = vmatprep.subr.mxu0 0.0
    %806 = vmatpush2.msra.mxu0 0.0
    %807 = vmatprep.subr.mxu0 0.0
    %808 = vmatpush2.msra.mxu0 0.0
    %809 = vmatprep.subr.mxu0 0.0
    %810 = vmatpush2.msra.mxu0 0.0
    %811 = vmatprep.subr.mxu0 0.0
    %812 = vmatpush2.msra.mxu0 0.0
    %813 = vmatprep.subr.mxu0 0.0
    %814 = vmatpush2.msra.mxu0 0.0
    %815 = vmatprep.subr.mxu0 0.0
    %816 = vmatpush2.msra.mxu0 0.0
    %817 = vmatprep.subr.mxu0 0.0
    %818 = vmatpush2.msra.mxu0 0.0
    %819 = vmatprep.subr.mxu0 0.0
    %820 = vmatpush2.msra.mxu0 0.0
    %821 = vmatprep.subr.mxu0 0.0
    %822 = vmatpush2.msra.mxu0 0.0
    %823 = vmatprep.subr.mxu0 0.0
    %824 = vmatpush2.msra.mxu0 0.0
    %825 = vmatprep.subr.mxu0 0.0
    %826 = vmatpush2.msra.mxu0 0.0
    %827 = vmatprep.subr.mxu0 0.0
    %828 = vmatpush2.msra.mxu0 0.0
    %829 = vmatprep.subr.mxu0 0.0
    %830 = vmatpush2.msra.mxu0 0.0
    %831 = vmatprep.subr.mxu0 0.0
    %832 = vmatpush2.msra.mxu0 0.0
    %833 = vmatprep.mubr.f32.mxu0 0.0
    %834 = vmatmul.mubr.f32.gmra.mxu0 %v767
    %v835 = vpop.f32.mrf.mxu0
    %v836 = vadd.f32 0.0, %v835
    %v837 = vpop.f32.mrf.mxu0
    %v838 = vadd.f32 0.0, %v837
    %839 = vdwg.mxu0
    %v840 = vld [vmem:[#allocation2 + $0x10] sm:$0x3]
    %v841 = vadd.f32 %v836, %v840
    %v842 = vtanh.pop %v841
    %v843 = vld [vmem:[#allocation2 + $0x8] sm:$0xc0]
    %v845 = vrot.slane %v843, 6
    %v847 = vadd.f32 %v838, %v845
    %v848 = vtanh.pop %v847
    %v849 = vmul.f32 %v842, 0.5
    %v850 = vadd.f32 %v849, 0.5
    %v851 = vmul.f32 %v850, %v726
    %853 = vrot.lane.b32.xlu0 %v842, 64
    %v854 = vpop.permute.xlu0 %853
    %v856 = vmul.f32 %v850, %v854
    %858 = vrot.lane.b32.xlu0 %v856, 32
    %v859 = vpop.permute.xlu0 %858
    %v861 = vadd.f32 %v851, %v859
    %v862 = vtanh.pop %v861
    %864 = vrot.lane.b32.xlu0 %v862, 64
    %v865 = vpop.permute.xlu0 %864
    %v867 = vmul.f32 %v850, %v865
    %v868 = vmul.f32 %v848, 0.5
    %v869 = vadd.f32 %v868, 0.5
    %v870 = vmul.f32 %v869, %v745
    %872 = vrot.lane.b32.xlu0 %v848, 64
    %v873 = vpop.permute.xlu0 %872
    %v875 = vmul.f32 %v869, %v873
    %877 = vrot.lane.b32.xlu0 %v875, 32
    %v878 = vpop.permute.xlu0 %877
    %v880 = vadd.f32 %v870, %v878
    %v881 = vtanh.pop %v880
    %883 = vrot.lane.b32.xlu0 %v881, 64
    %v884 = vpop.permute.xlu0 %883
    %v886 = vmul.f32 %v869, %v884
    %888 = vrot.lane.b32.xlu0 %v867, 32
    %v889 = vpop.permute.xlu0 %888
    %891 = vst.msk [vmem:[#allocation3 + $0x8] sm:$0x3] %vm343, %v889
    %893 = vrot.lane.b32.xlu0 %v886, 32
    %v894 = vpop.permute.xlu0 %893
    %896 = vst.msk [vmem:[#allocation4 + $0x6] sm:$0x3] %vm343, %v894
    %897 = vrot.lane.b32.xlu0 %v886, 64
    %v898 = vpop.permute.xlu0 %897
    %v900 = vsel %vm353, %v889, %v898
    %v902 = vsel %vm217, %v900, 0
    %904 = vmatprep.subr.mxu0 0.0
    %905 = vmatpush1.msra.mxu0 0.0
    %906 = vmatprep.subr.mxu0 0.0
    %907 = vmatpush1.msra.mxu0 0.0
    %908 = vmatprep.subr.mxu0 0.0
    %909 = vmatpush1.msra.mxu0 0.0
    %910 = vmatprep.subr.mxu0 0.0
    %911 = vmatpush1.msra.mxu0 0.0
    %912 = vmatprep.subr.mxu0 0.0
    %913 = vmatpush1.msra.mxu0 0.0
    %914 = vmatprep.subr.mxu0 0.0
    %915 = vmatpush1.msra.mxu0 0.0
    %916 = vmatprep.subr.mxu0 0.0
    %917 = vmatpush1.msra.mxu0 0.0
    %918 = vmatprep.subr.mxu0 0.0
    %919 = vmatpush1.msra.mxu0 0.0
    %920 = vmatprep.subr.mxu0 %v216
    %921 = vmatpush1.msra.mxu0 %v215
    %922 = vmatprep.subr.mxu0 %v214
    %923 = vmatpush1.msra.mxu0 %v213
    %924 = vmatprep.subr.mxu0 %v212
    %925 = vmatpush1.msra.mxu0 %v211
    %926 = vmatprep.subr.mxu0 %v210
    %927 = vmatpush1.msra.mxu0 %v209
    %928 = vmatprep.subr.mxu0 %v208
    %929 = vmatpush1.msra.mxu0 %v207
    %930 = vmatprep.subr.mxu0 %v206
    %931 = vmatpush1.msra.mxu0 %v205
    %932 = vmatprep.subr.mxu0 %v204
    %933 = vmatpush1.msra.mxu0 %v203
    %934 = vmatprep.subr.mxu0 %v202
    %935 = vmatpush1.msra.mxu0 %v201
    %936 = vmatprep.subr.mxu0 0.0
    %937 = vmatpush2.msra.mxu0 0.0
    %938 = vmatprep.subr.mxu0 0.0
    %939 = vmatpush2.msra.mxu0 0.0
    %940 = vmatprep.subr.mxu0 0.0
    %941 = vmatpush2.msra.mxu0 0.0
    %942 = vmatprep.subr.mxu0 0.0
    %943 = vmatpush2.msra.mxu0 0.0
    %944 = vmatprep.subr.mxu0 0.0
    %945 = vmatpush2.msra.mxu0 0.0
    %946 = vmatprep.subr.mxu0 0.0
    %947 = vmatpush2.msra.mxu0 0.0
    %948 = vmatprep.subr.mxu0 0.0
    %949 = vmatpush2.msra.mxu0 0.0
    %950 = vmatprep.subr.mxu0 0.0
    %951 = vmatpush2.msra.mxu0 0.0
    %952 = vmatprep.subr.mxu0 0.0
    %953 = vmatpush2.msra.mxu0 0.0
    %954 = vmatprep.subr.mxu0 0.0
    %955 = vmatpush2.msra.mxu0 0.0
    %956 = vmatprep.subr.mxu0 0.0
    %957 = vmatpush2.msra.mxu0 0.0
    %958 = vmatprep.subr.mxu0 0.0
    %959 = vmatpush2.msra.mxu0 0.0
    %960 = vmatprep.subr.mxu0 0.0
    %961 = vmatpush2.msra.mxu0 0.0
    %962 = vmatprep.subr.mxu0 0.0
    %963 = vmatpush2.msra.mxu0 0.0
    %964 = vmatprep.subr.mxu0 0.0
    %965 = vmatpush2.msra.mxu0 0.0
    %966 = vmatprep.subr.mxu0 0.0
    %967 = vmatpush2.msra.mxu0 0.0
    %968 = vmatprep.mubr.f32.mxu0 0.0
    %969 = vmatmul.mubr.f32.gmra.mxu0 %v902
    %v970 = vpop.f32.mrf.mxu0
    %v971 = vadd.f32 0.0, %v970
    %v972 = vpop.f32.mrf.mxu0
    %v973 = vadd.f32 0.0, %v972
    %974 = vdwg.mxu0
    %v975 = vld [vmem:[#allocation2 + $0x10] sm:$0xc]
    %v977 = vrot.slane %v975, 2
    %v979 = vadd.f32 %v971, %v977
    %v980 = vtanh.pop %v979
    %v981 = vld [vmem:[#allocation2 + $0x8] sm:$0x30]
    %v983 = vrot.slane %v981, 4
    %v985 = vadd.f32 %v973, %v983
    %v986 = vtanh.pop %v985
    %v987 = vmul.f32 %v980, 0.5
    %v988 = vadd.f32 %v987, 0.5
    %v989 = vmul.f32 %v988, %v861
    %991 = vrot.lane.b32.xlu0 %v980, 64
    %v992 = vpop.permute.xlu0 %991
    %v994 = vmul.f32 %v988, %v992
    %996 = vrot.lane.b32.xlu0 %v994, 32
    %v997 = vpop.permute.xlu0 %996
    %v999 = vadd.f32 %v989, %v997
    %v1000 = vtanh.pop %v999
    %1002 = vrot.lane.b32.xlu0 %v1000, 64
    %v1003 = vpop.permute.xlu0 %1002
    %v1005 = vmul.f32 %v988, %v1003
    %v1006 = vmul.f32 %v986, 0.5
    %v1007 = vadd.f32 %v1006, 0.5
    %v1008 = vmul.f32 %v1007, %v880
    %1010 = vrot.lane.b32.xlu0 %v986, 64
    %v1011 = vpop.permute.xlu0 %1010
    %v1013 = vmul.f32 %v1007, %v1011
    %1015 = vrot.lane.b32.xlu0 %v1013, 32
    %v1016 = vpop.permute.xlu0 %1015
    %v1018 = vadd.f32 %v1008, %v1016
    %v1019 = vtanh.pop %v1018
    %1021 = vrot.lane.b32.xlu0 %v1019, 64
    %v1022 = vpop.permute.xlu0 %1021
    %v1024 = vmul.f32 %v1007, %v1022
    %1026 = vrot.lane.b32.xlu0 %v1005, 32
    %v1027 = vpop.permute.xlu0 %1026
    %1029 = vst.msk [vmem:[#allocation3 + $0xa] sm:$0x3] %vm343, %v1027
    %1031 = vrot.lane.b32.xlu0 %v1024, 32
    %v1032 = vpop.permute.xlu0 %1031
    %1034 = vst.msk [vmem:[#allocation4 + $0x4] sm:$0x3] %vm343, %v1032
    %1035 = vrot.lane.b32.xlu0 %v1024, 64
    %v1036 = vpop.permute.xlu0 %1035
    %v1038 = vsel %vm353, %v1027, %v1036
    %v1040 = vsel %vm217, %v1038, 0
    %1042 = vmatprep.subr.mxu0 0.0
    %1043 = vmatpush1.msra.mxu0 0.0
    %1044 = vmatprep.subr.mxu0 0.0
    %1045 = vmatpush1.msra.mxu0 0.0
    %1046 = vmatprep.subr.mxu0 0.0
    %1047 = vmatpush1.msra.mxu0 0.0
    %1048 = vmatprep.subr.mxu0 0.0
    %1049 = vmatpush1.msra.mxu0 0.0
    %1050 = vmatprep.subr.mxu0 0.0
    %1051 = vmatpush1.msra.mxu0 0.0
    %1052 = vmatprep.subr.mxu0 0.0
    %1053 = vmatpush1.msra.mxu0 0.0
    %1054 = vmatprep.subr.mxu0 0.0
    %1055 = vmatpush1.msra.mxu0 0.0
    %1056 = vmatprep.subr.mxu0 0.0
    %1057 = vmatpush1.msra.mxu0 0.0
    %1058 = vmatprep.subr.mxu0 %v216
    %1059 = vmatpush1.msra.mxu0 %v215
    %1060 = vmatprep.subr.mxu0 %v214
    %1061 = vmatpush1.msra.mxu0 %v213
    %1062 = vmatprep.subr.mxu0 %v212
    %1063 = vmatpush1.msra.mxu0 %v211
    %1064 = vmatprep.subr.mxu0 %v210
    %1065 = vmatpush1.msra.mxu0 %v209
    %1066 = vmatprep.subr.mxu0 %v208
    %1067 = vmatpush1.msra.mxu0 %v207
    %1068 = vmatprep.subr.mxu0 %v206
    %1069 = vmatpush1.msra.mxu0 %v205
    %1070 = vmatprep.subr.mxu0 %v204
    %1071 = vmatpush1.msra.mxu0 %v203
    %1072 = vmatprep.subr.mxu0 %v202
    %1073 = vmatpush1.msra.mxu0 %v201
    %1074 = vmatprep.subr.mxu0 0.0
    %1075 = vmatpush2.msra.mxu0 0.0
    %1076 = vmatprep.subr.mxu0 0.0
    %1077 = vmatpush2.msra.mxu0 0.0
    %1078 = vmatprep.subr.mxu0 0.0
    %1079 = vmatpush2.msra.mxu0 0.0
    %1080 = vmatprep.subr.mxu0 0.0
    %1081 = vmatpush2.msra.mxu0 0.0
    %1082 = vmatprep.subr.mxu0 0.0
    %1083 = vmatpush2.msra.mxu0 0.0
    %1084 = vmatprep.subr.mxu0 0.0
    %1085 = vmatpush2.msra.mxu0 0.0
    %1086 = vmatprep.subr.mxu0 0.0
    %1087 = vmatpush2.msra.mxu0 0.0
    %1088 = vmatprep.subr.mxu0 0.0
    %1089 = vmatpush2.msra.mxu0 0.0
    %1090 = vmatprep.subr.mxu0 0.0
    %1091 = vmatpush2.msra.mxu0 0.0
    %1092 = vmatprep.subr.mxu0 0.0
    %1093 = vmatpush2.msra.mxu0 0.0
    %1094 = vmatprep.subr.mxu0 0.0
    %1095 = vmatpush2.msra.mxu0 0.0
    %1096 = vmatprep.subr.mxu0 0.0
    %1097 = vmatpush2.msra.mxu0 0.0
    %1098 = vmatprep.subr.mxu0 0.0
    %1099 = vmatpush2.msra.mxu0 0.0
    %1100 = vmatprep.subr.mxu0 0.0
    %1101 = vmatpush2.msra.mxu0 0.0
    %1102 = vmatprep.subr.mxu0 0.0
    %1103 = vmatpush2.msra.mxu0 0.0
    %1104 = vmatprep.subr.mxu0 0.0
    %1105 = vmatpush2.msra.mxu0 0.0
    %1106 = vmatprep.mubr.f32.mxu0 0.0
    %1107 = vmatmul.mubr.f32.gmra.mxu0 %v1040
    %v1108 = vpop.f32.mrf.mxu0
    %v1109 = vadd.f32 0.0, %v1108
    %v1110 = vpop.f32.mrf.mxu0
    %v1111 = vadd.f32 0.0, %v1110
    %1112 = vdwg.mxu0
    %v1113 = vld [vmem:[#allocation2 + $0x10] sm:$0x30]
    %v1115 = vrot.slane %v1113, 4
    %v1117 = vadd.f32 %v1109, %v1115
    %v1118 = vtanh.pop %v1117
    %v1119 = vld [vmem:[#allocation2 + $0x8] sm:$0xc]
    %v1121 = vrot.slane %v1119, 2
    %v1123 = vadd.f32 %v1111, %v1121
    %v1124 = vtanh.pop %v1123
    %v1125 = vmul.f32 %v1118, 0.5
    %v1126 = vadd.f32 %v1125, 0.5
    %v1127 = vmul.f32 %v1126, %v999
    %1129 = vrot.lane.b32.xlu0 %v1118, 64
    %v1130 = vpop.permute.xlu0 %1129
    %v1132 = vmul.f32 %v1126, %v1130
    %1134 = vrot.lane.b32.xlu0 %v1132, 32
    %v1135 = vpop.permute.xlu0 %1134
    %v1137 = vadd.f32 %v1127, %v1135
    %v1138 = vtanh.pop %v1137
    %1140 = vrot.lane.b32.xlu0 %v1138, 64
    %v1141 = vpop.permute.xlu0 %1140
    %v1143 = vmul.f32 %v1126, %v1141
    %v1144 = vmul.f32 %v1124, 0.5
    %v1145 = vadd.f32 %v1144, 0.5
    %v1146 = vmul.f32 %v1145, %v1018
    %1148 = vrot.lane.b32.xlu0 %v1124, 64
    %v1149 = vpop.permute.xlu0 %1148
    %v1151 = vmul.f32 %v1145, %v1149
    %1153 = vrot.lane.b32.xlu0 %v1151, 32
    %v1154 = vpop.permute.xlu0 %1153
    %v1156 = vadd.f32 %v1146, %v1154
    %v1157 = vtanh.pop %v1156
    %1159 = vrot.lane.b32.xlu0 %v1157, 64
    %v1160 = vpop.permute.xlu0 %1159
    %v1162 = vmul.f32 %v1145, %v1160
    %1164 = vrot.lane.b32.xlu0 %v1143, 32
    %v1165 = vpop.permute.xlu0 %1164
    %1167 = vst.msk [vmem:[#allocation3 + $0xc] sm:$0x3] %vm343, %v1165
    %1169 = vrot.lane.b32.xlu0 %v1162, 32
    %v1170 = vpop.permute.xlu0 %1169
    %1172 = vst.msk [vmem:[#allocation4 + $0x2] sm:$0x3] %vm343, %v1170
    %1173 = vrot.lane.b32.xlu0 %v1162, 64
    %v1174 = vpop.permute.xlu0 %1173
    %v1176 = vsel %vm353, %v1165, %v1174
    %v1178 = vsel %vm217, %v1176, 0
    %1180 = vmatprep.subr.mxu0 0.0
    %1181 = vmatpush1.msra.mxu0 0.0
    %1182 = vmatprep.subr.mxu0 0.0
    %1183 = vmatpush1.msra.mxu0 0.0
    %1184 = vmatprep.subr.mxu0 0.0
    %1185 = vmatpush1.msra.mxu0 0.0
    %1186 = vmatprep.subr.mxu0 0.0
    %1187 = vmatpush1.msra.mxu0 0.0
    %1188 = vmatprep.subr.mxu0 0.0
    %1189 = vmatpush1.msra.mxu0 0.0
    %1190 = vmatprep.subr.mxu0 0.0
    %1191 = vmatpush1.msra.mxu0 0.0
    %1192 = vmatprep.subr.mxu0 0.0
    %1193 = vmatpush1.msra.mxu0 0.0
    %1194 = vmatprep.subr.mxu0 0.0
    %1195 = vmatpush1.msra.mxu0 0.0
    %1196 = vmatprep.subr.mxu0 %v216
    %1197 = vmatpush1.msra.mxu0 %v215
    %1198 = vmatprep.subr.mxu0 %v214
    %1199 = vmatpush1.msra.mxu0 %v213
    %1200 = vmatprep.subr.mxu0 %v212
    %1201 = vmatpush1.msra.mxu0 %v211
    %1202 = vmatprep.subr.mxu0 %v210
    %1203 = vmatpush1.msra.mxu0 %v209
    %1204 = vmatprep.subr.mxu0 %v208
    %1205 = vmatpush1.msra.mxu0 %v207
    %1206 = vmatprep.subr.mxu0 %v206
    %1207 = vmatpush1.msra.mxu0 %v205
    %1208 = vmatprep.subr.mxu0 %v204
    %1209 = vmatpush1.msra.mxu0 %v203
    %1210 = vmatprep.subr.mxu0 %v202
    %1211 = vmatpush1.msra.mxu0 %v201
    %1212 = vmatprep.subr.mxu0 0.0
    %1213 = vmatpush2.msra.mxu0 0.0
    %1214 = vmatprep.subr.mxu0 0.0
    %1215 = vmatpush2.msra.mxu0 0.0
    %1216 = vmatprep.subr.mxu0 0.0
    %1217 = vmatpush2.msra.mxu0 0.0
    %1218 = vmatprep.subr.mxu0 0.0
    %1219 = vmatpush2.msra.mxu0 0.0
    %1220 = vmatprep.subr.mxu0 0.0
    %1221 = vmatpush2.msra.mxu0 0.0
    %1222 = vmatprep.subr.mxu0 0.0
    %1223 = vmatpush2.msra.mxu0 0.0
    %1224 = vmatprep.subr.mxu0 0.0
    %1225 = vmatpush2.msra.mxu0 0.0
    %1226 = vmatprep.subr.mxu0 0.0
    %1227 = vmatpush2.msra.mxu0 0.0
    %1228 = vmatprep.subr.mxu0 0.0
    %1229 = vmatpush2.msra.mxu0 0.0
    %1230 = vmatprep.subr.mxu0 0.0
    %1231 = vmatpush2.msra.mxu0 0.0
    %1232 = vmatprep.subr.mxu0 0.0
    %1233 = vmatpush2.msra.mxu0 0.0
    %1234 = vmatprep.subr.mxu0 0.0
    %1235 = vmatpush2.msra.mxu0 0.0
    %1236 = vmatprep.subr.mxu0 0.0
    %1237 = vmatpush2.msra.mxu0 0.0
    %1238 = vmatprep.subr.mxu0 0.0
    %1239 = vmatpush2.msra.mxu0 0.0
    %1240 = vmatprep.subr.mxu0 0.0
    %1241 = vmatpush2.msra.mxu0 0.0
    %1242 = vmatprep.subr.mxu0 0.0
    %1243 = vmatpush2.msra.mxu0 0.0
    %1244 = vmatprep.mubr.f32.mxu0 0.0
    %1245 = vmatmul.mubr.f32.gmra.mxu0 %v1178
    %v1246 = vpop.f32.mrf.mxu0
    %v1247 = vadd.f32 0.0, %v1246
    %v1248 = vpop.f32.mrf.mxu0
    %v1249 = vadd.f32 0.0, %v1248
    %1250 = vdwg.mxu0
    %v1251 = vld [vmem:[#allocation2 + $0x10] sm:$0xc0]
    %v1253 = vrot.slane %v1251, 6
    %v1255 = vadd.f32 %v1247, %v1253
    %v1256 = vtanh.pop %v1255
    %v1257 = vld [vmem:[#allocation2 + $0x8] sm:$0x3]
    %v1258 = vadd.f32 %v1249, %v1257
    %v1259 = vtanh.pop %v1258
    %v1260 = vmul.f32 %v1256, 0.5
    %v1261 = vadd.f32 %v1260, 0.5
    %v1262 = vmul.f32 %v1261, %v1137
    %1264 = vrot.lane.b32.xlu0 %v1256, 64
    %v1265 = vpop.permute.xlu0 %1264
    %v1267 = vmul.f32 %v1261, %v1265
    %1269 = vrot.lane.b32.xlu0 %v1267, 32
    %v1270 = vpop.permute.xlu0 %1269
    %v1272 = vadd.f32 %v1262, %v1270
    %v1273 = vtanh.pop %v1272
    %1275 = vrot.lane.b32.xlu0 %v1273, 64
    %v1276 = vpop.permute.xlu0 %1275
    %v1278 = vmul.f32 %v1261, %v1276
    %v1279 = vmul.f32 %v1259, 0.5
    %v1280 = vadd.f32 %v1279, 0.5
    %v1281 = vmul.f32 %v1280, %v1156
    %1283 = vrot.lane.b32.xlu0 %v1259, 64
    %v1284 = vpop.permute.xlu0 %1283
    %v1286 = vmul.f32 %v1280, %v1284
    %1288 = vrot.lane.b32.xlu0 %v1286, 32
    %v1289 = vpop.permute.xlu0 %1288
    %v1291 = vadd.f32 %v1281, %v1289
    %v1292 = vtanh.pop %v1291
    %1294 = vrot.lane.b32.xlu0 %v1292, 64
    %v1295 = vpop.permute.xlu0 %1294
    %v1297 = vmul.f32 %v1280, %v1295
    %1299 = vrot.lane.b32.xlu0 %v1278, 32
    %v1300 = vpop.permute.xlu0 %1299
    %1302 = vst.msk [vmem:[#allocation3 + $0xe] sm:$0x3] %vm343, %v1300
    %1304 = vrot.lane.b32.xlu0 %v1297, 32
    %v1305 = vpop.permute.xlu0 %1304
    %1307 = vst.msk [vmem:[#allocation4] sm:$0x3] %vm343, %v1305
    %v1308 = vld [vmem:[#allocation3] sm:$0xff]
    %v1309 = vld [vmem:[#allocation3 + $0x8] sm:$0xff]
    %v1310 = vld [vmem:[#allocation8] sm:$0xff]
    %v1311 = vld [vmem:[#allocation8 + $0x8] sm:$0xff]
    %v1312 = vld [vmem:[#allocation8 + $0x10] sm:$0xff]
    %v1313 = vld [vmem:[#allocation8 + $0x18] sm:$0xff]
    %v1314 = vld [vmem:[#allocation8 + $0x20] sm:$0xff]
    %v1315 = vld [vmem:[#allocation8 + $0x28] sm:$0xff]
    %v1316 = vld [vmem:[#allocation8 + $0x30] sm:$0xff]
    %v1317 = vld [vmem:[#allocation8 + $0x38] sm:$0xff]
    %v1318 = vld [vmem:[#allocation4] sm:$0xff]
    %v1319 = vld [vmem:[#allocation4 + $0x8] sm:$0xff]
    %v1320 = vld [vmem:[#allocation10] sm:$0xff]
    %v1321 = vld [vmem:[#allocation10 + $0x8] sm:$0xff]
    %v1322 = vld [vmem:[#allocation10 + $0x10] sm:$0xff]
    %v1323 = vld [vmem:[#allocation10 + $0x18] sm:$0xff]
    %v1324 = vld [vmem:[#allocation10 + $0x20] sm:$0xff]
    %v1325 = vld [vmem:[#allocation10 + $0x28] sm:$0xff]
    %v1326 = vld [vmem:[#allocation10 + $0x30] sm:$0xff]
    %v1327 = vld [vmem:[#allocation10 + $0x38] sm:$0xff]
    %v1329 = vsel %vm353, %v1318, 0
    %v1332 = vsel %vm353, %v1319, 0
    %1334 = vmatprep.subr.mxu0 0.0
    %1335 = vmatpush1.msra.mxu0 0.0
    %1336 = vmatprep.subr.mxu0 0.0
    %1337 = vmatpush1.msra.mxu0 0.0
    %1338 = vmatprep.subr.mxu0 0.0
    %1339 = vmatpush1.msra.mxu0 0.0
    %1340 = vmatprep.subr.mxu0 0.0
    %1341 = vmatpush1.msra.mxu0 0.0
    %1342 = vmatprep.subr.mxu0 0.0
    %1343 = vmatpush1.msra.mxu0 0.0
    %1344 = vmatprep.subr.mxu0 0.0
    %1345 = vmatpush1.msra.mxu0 0.0
    %1346 = vmatprep.subr.mxu0 0.0
    %1347 = vmatpush1.msra.mxu0 0.0
    %1348 = vmatprep.subr.mxu0 0.0
    %1349 = vmatpush1.msra.mxu0 0.0
    %1350 = vmatprep.subr.mxu0 0.0
    %1351 = vmatpush1.msra.mxu0 0.0
    %1352 = vmatprep.subr.mxu0 0.0
    %1353 = vmatpush1.msra.mxu0 0.0
    %1354 = vmatprep.subr.mxu0 0.0
    %1355 = vmatpush1.msra.mxu0 0.0
    %1356 = vmatprep.subr.mxu0 0.0
    %1357 = vmatpush1.msra.mxu0 0.0
    %1358 = vmatprep.subr.mxu0 %v1327
    %1359 = vmatpush1.msra.mxu0 %v1326
    %1360 = vmatprep.subr.mxu0 %v1325
    %1361 = vmatpush1.msra.mxu0 %v1324
    %1362 = vmatprep.subr.mxu0 %v1323
    %1363 = vmatpush1.msra.mxu0 %v1322
    %1364 = vmatprep.subr.mxu0 %v1321
    %1365 = vmatpush1.msra.mxu0 %v1320
    %1366 = vmatprep.subr.mxu0 0.0
    %1367 = vmatpush2.msra.mxu0 0.0
    %1368 = vmatprep.subr.mxu0 0.0
    %1369 = vmatpush2.msra.mxu0 0.0
    %1370 = vmatprep.subr.mxu0 0.0
    %1371 = vmatpush2.msra.mxu0 0.0
    %1372 = vmatprep.subr.mxu0 0.0
    %1373 = vmatpush2.msra.mxu0 0.0
    %1374 = vmatprep.subr.mxu0 0.0
    %1375 = vmatpush2.msra.mxu0 0.0
    %1376 = vmatprep.subr.mxu0 0.0
    %1377 = vmatpush2.msra.mxu0 0.0
    %1378 = vmatprep.subr.mxu0 0.0
    %1379 = vmatpush2.msra.mxu0 0.0
    %1380 = vmatprep.subr.mxu0 0.0
    %1381 = vmatpush2.msra.mxu0 0.0
    %1382 = vmatprep.subr.mxu0 0.0
    %1383 = vmatpush2.msra.mxu0 0.0
    %1384 = vmatprep.subr.mxu0 0.0
    %1385 = vmatpush2.msra.mxu0 0.0
    %1386 = vmatprep.subr.mxu0 0.0
    %1387 = vmatpush2.msra.mxu0 0.0
    %1388 = vmatprep.subr.mxu0 0.0
    %1389 = vmatpush2.msra.mxu0 0.0
    %1390 = vmatprep.subr.mxu0 0.0
    %1391 = vmatpush2.msra.mxu0 0.0
    %1392 = vmatprep.subr.mxu0 0.0
    %1393 = vmatpush2.msra.mxu0 0.0
    %1394 = vmatprep.subr.mxu0 0.0
    %1395 = vmatpush2.msra.mxu0 0.0
    %1396 = vmatprep.subr.mxu0 0.0
    %1397 = vmatpush2.msra.mxu0 0.0
    %1398 = vmatprep.mubr.f32.mxu0 0.0
    %1399 = vmatmul.mubr.f32.gmra.mxu0 %v1329
    %v1400 = vpop.f32.mrf.mxu0
    %v1401 = vadd.f32 0.0, %v1400
    %v1402 = vpop.f32.mrf.mxu0
    %v1403 = vadd.f32 0.0, %v1402
    %1404 = vmatprep.mubr.f32.mxu0 0.0
    %1405 = vmatmul.mubr.f32.gmra.mxu0 %v1332
    %v1406 = vpop.f32.mrf.mxu0
    %v1407 = vadd.f32 0.0, %v1406
    %v1408 = vpop.f32.mrf.mxu0
    %v1409 = vadd.f32 0.0, %v1408
    %1410 = vdwg.mxu0
    %v1412 = vsel %vm353, %v1308, 0
    %v1415 = vsel %vm353, %v1309, 0
    %1417 = vmatprep.subr.mxu0 0.0
    %1418 = vmatpush1.msra.mxu0 0.0
    %1419 = vmatprep.subr.mxu0 0.0
    %1420 = vmatpush1.msra.mxu0 0.0
    %1421 = vmatprep.subr.mxu0 0.0
    %1422 = vmatpush1.msra.mxu0 0.0
    %1423 = vmatprep.subr.mxu0 0.0
    %1424 = vmatpush1.msra.mxu0 0.0
    %1425 = vmatprep.subr.mxu0 0.0
    %1426 = vmatpush1.msra.mxu0 0.0
    %1427 = vmatprep.subr.mxu0 0.0
    %1428 = vmatpush1.msra.mxu0 0.0
    %1429 = vmatprep.subr.mxu0 0.0
    %1430 = vmatpush1.msra.mxu0 0.0
    %1431 = vmatprep.subr.mxu0 0.0
    %1432 = vmatpush1.msra.mxu0 0.0
    %1433 = vmatprep.subr.mxu0 0.0
    %1434 = vmatpush1.msra.mxu0 0.0
    %1435 = vmatprep.subr.mxu0 0.0
    %1436 = vmatpush1.msra.mxu0 0.0
    %1437 = vmatprep.subr.mxu0 0.0
    %1438 = vmatpush1.msra.mxu0 0.0
    %1439 = vmatprep.subr.mxu0 0.0
    %1440 = vmatpush1.msra.mxu0 0.0
    %1441 = vmatprep.subr.mxu0 %v1317
    %1442 = vmatpush1.msra.mxu0 %v1316
    %1443 = vmatprep.subr.mxu0 %v1315
    %1444 = vmatpush1.msra.mxu0 %v1314
    %1445 = vmatprep.subr.mxu0 %v1313
    %1446 = vmatpush1.msra.mxu0 %v1312
    %1447 = vmatprep.subr.mxu0 %v1311
    %1448 = vmatpush1.msra.mxu0 %v1310
    %1449 = vmatprep.subr.mxu0 0.0
    %1450 = vmatpush2.msra.mxu0 0.0
    %1451 = vmatprep.subr.mxu0 0.0
    %1452 = vmatpush2.msra.mxu0 0.0
    %1453 = vmatprep.subr.mxu0 0.0
    %1454 = vmatpush2.msra.mxu0 0.0
    %1455 = vmatprep.subr.mxu0 0.0
    %1456 = vmatpush2.msra.mxu0 0.0
    %1457 = vmatprep.subr.mxu0 0.0
    %1458 = vmatpush2.msra.mxu0 0.0
    %1459 = vmatprep.subr.mxu0 0.0
    %1460 = vmatpush2.msra.mxu0 0.0
    %1461 = vmatprep.subr.mxu0 0.0
    %1462 = vmatpush2.msra.mxu0 0.0
    %1463 = vmatprep.subr.mxu0 0.0
    %1464 = vmatpush2.msra.mxu0 0.0
    %1465 = vmatprep.subr.mxu0 0.0
    %1466 = vmatpush2.msra.mxu0 0.0
    %1467 = vmatprep.subr.mxu0 0.0
    %1468 = vmatpush2.msra.mxu0 0.0
    %1469 = vmatprep.subr.mxu0 0.0
    %1470 = vmatpush2.msra.mxu0 0.0
    %1471 = vmatprep.subr.mxu0 0.0
    %1472 = vmatpush2.msra.mxu0 0.0
    %1473 = vmatprep.subr.mxu0 0.0
    %1474 = vmatpush2.msra.mxu0 0.0
    %1475 = vmatprep.subr.mxu0 0.0
    %1476 = vmatpush2.msra.mxu0 0.0
    %1477 = vmatprep.subr.mxu0 0.0
    %1478 = vmatpush2.msra.mxu0 0.0
    %1479 = vmatprep.subr.mxu0 0.0
    %1480 = vmatpush2.msra.mxu0 0.0
    %1481 = vmatprep.mubr.f32.mxu0 0.0
    %1482 = vmatmul.mubr.f32.gmra.mxu0 %v1412
    %v1483 = vpop.f32.mrf.mxu0
    %v1484 = vadd.f32 %v1401, %v1483
    %v1485 = vpop.f32.mrf.mxu0
    %v1486 = vadd.f32 %v1403, %v1485
    %1487 = vmatprep.mubr.f32.mxu0 0.0
    %1488 = vmatmul.mubr.f32.gmra.mxu0 %v1415
    %v1489 = vpop.f32.mrf.mxu0
    %v1490 = vadd.f32 %v1407, %v1489
    %v1491 = vpop.f32.mrf.mxu0
    %v1492 = vadd.f32 %v1409, %v1491
    %1493 = vdwg.mxu0
    %v1494 = vld [vmem:[%s7] sm:$0x3]
    %v1496 = vlaneseq
    %v1497 = vshrl.u32 %v1496, 7
    %v1498 = vsub.s32 0, %v1497
    %v1499 = vrot.slane %v1494, %v1498
    %v1500 = vlaneseq
    %v1501 = vshrl.u32 %v1500, 7
    %v1502 = vsub.s32 1, %v1501
    %v1503 = vrot.slane %v1494, %v1502
    %v1506 = vadd.f32 %v1484, %v1499
    %v1507 = vadd.f32 %v1486, %v1503
    %v1508 = vadd.f32 %v1490, %v1499
    %v1509 = vadd.f32 %v1492, %v1503
    %1510 = vst [vmem:[#allocation2] sm:$0xff] %v1506
    %1511 = vst [vmem:[#allocation2 + $0x8] sm:$0xff] %v1507
    %1512 = vst [vmem:[#allocation2 + $0x10] sm:$0xff] %v1508
    %1513 = vst [vmem:[#allocation2 + $0x18] sm:$0xff] %v1509
    %v1514 = vld [vmem:[#allocation11] sm:$0xff]
    %v1515 = vld [vmem:[#allocation11 + $0x8] sm:$0xff]
    %v1516 = vld [vmem:[#allocation11 + $0x10] sm:$0xff]
    %v1517 = vld [vmem:[#allocation11 + $0x18] sm:$0xff]
    %v1518 = vld [vmem:[#allocation11 + $0x20] sm:$0xff]
    %v1519 = vld [vmem:[#allocation11 + $0x28] sm:$0xff]
    %v1520 = vld [vmem:[#allocation11 + $0x30] sm:$0xff]
    %v1521 = vld [vmem:[#allocation11 + $0x38] sm:$0xff]
    %v1522 = vld [vmem:[#allocation11 + $0x40] sm:$0xff]
    %v1523 = vld [vmem:[#allocation11 + $0x48] sm:$0xff]
    %v1524 = vld [vmem:[#allocation11 + $0x50] sm:$0xff]
    %v1525 = vld [vmem:[#allocation11 + $0x58] sm:$0xff]
    %v1526 = vld [vmem:[#allocation11 + $0x60] sm:$0xff]
    %v1527 = vld [vmem:[#allocation11 + $0x68] sm:$0xff]
    %v1528 = vld [vmem:[#allocation11 + $0x70] sm:$0xff]
    %v1529 = vld [vmem:[#allocation11 + $0x78] sm:$0xff]
    %1530 = vmatprep.subr.mxu0 0.0
    %1531 = vmatpush1.msra.mxu0 0.0
    %1532 = vmatprep.subr.mxu0 0.0
    %1533 = vmatpush1.msra.mxu0 0.0
    %1534 = vmatprep.subr.mxu0 0.0
    %1535 = vmatpush1.msra.mxu0 0.0
    %1536 = vmatprep.subr.mxu0 0.0
    %1537 = vmatpush1.msra.mxu0 0.0
    %1538 = vmatprep.subr.mxu0 0.0
    %1539 = vmatpush1.msra.mxu0 0.0
    %1540 = vmatprep.subr.mxu0 0.0
    %1541 = vmatpush1.msra.mxu0 0.0
    %1542 = vmatprep.subr.mxu0 0.0
    %1543 = vmatpush1.msra.mxu0 0.0
    %1544 = vmatprep.subr.mxu0 0.0
    %1545 = vmatpush1.msra.mxu0 0.0
    %1546 = vmatprep.subr.mxu0 %v1529
    %1547 = vmatpush1.msra.mxu0 %v1528
    %1548 = vmatprep.subr.mxu0 %v1527
    %1549 = vmatpush1.msra.mxu0 %v1526
    %1550 = vmatprep.subr.mxu0 %v1525
    %1551 = vmatpush1.msra.mxu0 %v1524
    %1552 = vmatprep.subr.mxu0 %v1523
    %1553 = vmatpush1.msra.mxu0 %v1522
    %1554 = vmatprep.subr.mxu0 %v1521
    %1555 = vmatpush1.msra.mxu0 %v1520
    %1556 = vmatprep.subr.mxu0 %v1519
    %1557 = vmatpush1.msra.mxu0 %v1518
    %1558 = vmatprep.subr.mxu0 %v1517
    %1559 = vmatpush1.msra.mxu0 %v1516
    %1560 = vmatprep.subr.mxu0 %v1515
    %1561 = vmatpush1.msra.mxu0 %v1514
    %1562 = vmatprep.subr.mxu0 0.0
    %1563 = vmatpush2.msra.mxu0 0.0
    %1564 = vmatprep.subr.mxu0 0.0
    %1565 = vmatpush2.msra.mxu0 0.0
    %1566 = vmatprep.subr.mxu0 0.0
    %1567 = vmatpush2.msra.mxu0 0.0
    %1568 = vmatprep.subr.mxu0 0.0
    %1569 = vmatpush2.msra.mxu0 0.0
    %1570 = vmatprep.subr.mxu0 0.0
    %1571 = vmatpush2.msra.mxu0 0.0
    %1572 = vmatprep.subr.mxu0 0.0
    %1573 = vmatpush2.msra.mxu0 0.0
    %1574 = vmatprep.subr.mxu0 0.0
    %1575 = vmatpush2.msra.mxu0 0.0
    %1576 = vmatprep.subr.mxu0 0.0
    %1577 = vmatpush2.msra.mxu0 0.0
    %1578 = vmatprep.subr.mxu0 0.0
    %1579 = vmatpush2.msra.mxu0 0.0
    %1580 = vmatprep.subr.mxu0 0.0
    %1581 = vmatpush2.msra.mxu0 0.0
    %1582 = vmatprep.subr.mxu0 0.0
    %1583 = vmatpush2.msra.mxu0 0.0
    %1584 = vmatprep.subr.mxu0 0.0
    %1585 = vmatpush2.msra.mxu0 0.0
    %1586 = vmatprep.subr.mxu0 0.0
    %1587 = vmatpush2.msra.mxu0 0.0
    %1588 = vmatprep.subr.mxu0 0.0
    %1589 = vmatpush2.msra.mxu0 0.0
    %1590 = vmatprep.subr.mxu0 0.0
    %1591 = vmatpush2.msra.mxu0 0.0
    %1592 = vmatprep.subr.mxu0 0.0
    %1593 = vmatpush2.msra.mxu0 0.0
    %1594 = vmatprep.mubr.f32.mxu0 0.0
    %1595 = vmatmul.mubr.f32.gmra.mxu0 %v219
    %v1596 = vpop.f32.mrf.mxu0
    %v1597 = vadd.f32 0.0, %v1596
    %v1598 = vpop.f32.mrf.mxu0
    %v1599 = vadd.f32 0.0, %v1598
    %1600 = vdwg.mxu0
    %v1601 = vld [vmem:[#allocation2] sm:$0x3]
    %v1602 = vadd.f32 %v1597, %v1601
    %v1603 = vtanh.pop %v1602
    %v1604 = vld [vmem:[#allocation2 + $0x18] sm:$0xc0]
    %v1606 = vrot.slane %v1604, 6
    %v1608 = vadd.f32 %v1599, %v1606
    %v1609 = vtanh.pop %v1608
    %v1610 = vmul.f32 %v1603, 0.5
    %v1611 = vadd.f32 %v1610, 0.5
    %v1612 = vmul.f32 %v1611, 0.0
    %1614 = vrot.lane.b32.xlu0 %v1603, 64
    %v1615 = vpop.permute.xlu0 %1614
    %v1617 = vmul.f32 %v1611, %v1615
    %1619 = vrot.lane.b32.xlu0 %v1617, 32
    %v1620 = vpop.permute.xlu0 %1619
    %v1622 = vadd.f32 %v1612, %v1620
    %v1623 = vtanh.pop %v1622
    %1625 = vrot.lane.b32.xlu0 %v1623, 64
    %v1626 = vpop.permute.xlu0 %1625
    %v1628 = vmul.f32 %v1611, %v1626
    %v1629 = vmul.f32 %v1609, 0.5
    %v1630 = vadd.f32 %v1629, 0.5
    %v1631 = vmul.f32 %v1630, 0.0
    %1633 = vrot.lane.b32.xlu0 %v1609, 64
    %v1634 = vpop.permute.xlu0 %1633
    %v1636 = vmul.f32 %v1630, %v1634
    %1638 = vrot.lane.b32.xlu0 %v1636, 32
    %v1639 = vpop.permute.xlu0 %1638
    %v1641 = vadd.f32 %v1631, %v1639
    %v1642 = vtanh.pop %v1641
    %1644 = vrot.lane.b32.xlu0 %v1642, 64
    %v1645 = vpop.permute.xlu0 %1644
    %v1647 = vmul.f32 %v1630, %v1645
    %1649 = vrot.lane.b32.xlu0 %v1628, 32
    %v1650 = vpop.permute.xlu0 %1649
    %1652 = vst.msk [vmem:[#allocation3] sm:$0x3] %vm343, %v1650
    %1654 = vrot.lane.b32.xlu0 %v1647, 32
    %v1655 = vpop.permute.xlu0 %1654
    %1657 = vst.msk [vmem:[#allocation4 + $0xe] sm:$0x3] %vm343, %v1655
    %1658 = vrot.lane.b32.xlu0 %v1647, 64
    %v1659 = vpop.permute.xlu0 %1658
    %v1661 = vsel %vm353, %v1650, %v1659
    %v1663 = vsel %vm217, %v1661, 0
    %1665 = vmatprep.subr.mxu0 0.0
    %1666 = vmatpush1.msra.mxu0 0.0
    %1667 = vmatprep.subr.mxu0 0.0
    %1668 = vmatpush1.msra.mxu0 0.0
    %1669 = vmatprep.subr.mxu0 0.0
    %1670 = vmatpush1.msra.mxu0 0.0
    %1671 = vmatprep.subr.mxu0 0.0
    %1672 = vmatpush1.msra.mxu0 0.0
    %1673 = vmatprep.subr.mxu0 0.0
    %1674 = vmatpush1.msra.mxu0 0.0
    %1675 = vmatprep.subr.mxu0 0.0
    %1676 = vmatpush1.msra.mxu0 0.0
    %1677 = vmatprep.subr.mxu0 0.0
    %1678 = vmatpush1.msra.mxu0 0.0
    %1679 = vmatprep.subr.mxu0 0.0
    %1680 = vmatpush1.msra.mxu0 0.0
    %1681 = vmatprep.subr.mxu0 %v1529
    %1682 = vmatpush1.msra.mxu0 %v1528
    %1683 = vmatprep.subr.mxu0 %v1527
    %1684 = vmatpush1.msra.mxu0 %v1526
    %1685 = vmatprep.subr.mxu0 %v1525
    %1686 = vmatpush1.msra.mxu0 %v1524
    %1687 = vmatprep.subr.mxu0 %v1523
    %1688 = vmatpush1.msra.mxu0 %v1522
    %1689 = vmatprep.subr.mxu0 %v1521
    %1690 = vmatpush1.msra.mxu0 %v1520
    %1691 = vmatprep.subr.mxu0 %v1519
    %1692 = vmatpush1.msra.mxu0 %v1518
    %1693 = vmatprep.subr.mxu0 %v1517
    %1694 = vmatpush1.msra.mxu0 %v1516
    %1695 = vmatprep.subr.mxu0 %v1515
    %1696 = vmatpush1.msra.mxu0 %v1514
    %1697 = vmatprep.subr.mxu0 0.0
    %1698 = vmatpush2.msra.mxu0 0.0
    %1699 = vmatprep.subr.mxu0 0.0
    %1700 = vmatpush2.msra.mxu0 0.0
    %1701 = vmatprep.subr.mxu0 0.0
    %1702 = vmatpush2.msra.mxu0 0.0
    %1703 = vmatprep.subr.mxu0 0.0
    %1704 = vmatpush2.msra.mxu0 0.0
    %1705 = vmatprep.subr.mxu0 0.0
    %1706 = vmatpush2.msra.mxu0 0.0
    %1707 = vmatprep.subr.mxu0 0.0
    %1708 = vmatpush2.msra.mxu0 0.0
    %1709 = vmatprep.subr.mxu0 0.0
    %1710 = vmatpush2.msra.mxu0 0.0
    %1711 = vmatprep.subr.mxu0 0.0
    %1712 = vmatpush2.msra.mxu0 0.0
    %1713 = vmatprep.subr.mxu0 0.0
    %1714 = vmatpush2.msra.mxu0 0.0
    %1715 = vmatprep.subr.mxu0 0.0
    %1716 = vmatpush2.msra.mxu0 0.0
    %1717 = vmatprep.subr.mxu0 0.0
    %1718 = vmatpush2.msra.mxu0 0.0
    %1719 = vmatprep.subr.mxu0 0.0
    %1720 = vmatpush2.msra.mxu0 0.0
    %1721 = vmatprep.subr.mxu0 0.0
    %1722 = vmatpush2.msra.mxu0 0.0
    %1723 = vmatprep.subr.mxu0 0.0
    %1724 = vmatpush2.msra.mxu0 0.0
    %1725 = vmatprep.subr.mxu0 0.0
    %1726 = vmatpush2.msra.mxu0 0.0
    %1727 = vmatprep.subr.mxu0 0.0
    %1728 = vmatpush2.msra.mxu0 0.0
    %1729 = vmatprep.mubr.f32.mxu0 0.0
    %1730 = vmatmul.mubr.f32.gmra.mxu0 %v1663
    %v1731 = vpop.f32.mrf.mxu0
    %v1732 = vadd.f32 0.0, %v1731
    %v1733 = vpop.f32.mrf.mxu0
    %v1734 = vadd.f32 0.0, %v1733
    %1735 = vdwg.mxu0
    %v1736 = vld [vmem:[#allocation2] sm:$0xc]
    %v1738 = vrot.slane %v1736, 2
    %v1740 = vadd.f32 %v1732, %v1738
    %v1741 = vtanh.pop %v1740
    %v1742 = vld [vmem:[#allocation2 + $0x18] sm:$0x30]
    %v1744 = vrot.slane %v1742, 4
    %v1746 = vadd.f32 %v1734, %v1744
    %v1747 = vtanh.pop %v1746
    %v1748 = vmul.f32 %v1741, 0.5
    %v1749 = vadd.f32 %v1748, 0.5
    %v1750 = vmul.f32 %v1749, %v1622
    %1752 = vrot.lane.b32.xlu0 %v1741, 64
    %v1753 = vpop.permute.xlu0 %1752
    %v1755 = vmul.f32 %v1749, %v1753
    %1757 = vrot.lane.b32.xlu0 %v1755, 32
    %v1758 = vpop.permute.xlu0 %1757
    %v1760 = vadd.f32 %v1750, %v1758
    %v1761 = vtanh.pop %v1760
    %1763 = vrot.lane.b32.xlu0 %v1761, 64
    %v1764 = vpop.permute.xlu0 %1763
    %v1766 = vmul.f32 %v1749, %v1764
    %v1767 = vmul.f32 %v1747, 0.5
    %v1768 = vadd.f32 %v1767, 0.5
    %v1769 = vmul.f32 %v1768, %v1641
    %1771 = vrot.lane.b32.xlu0 %v1747, 64
    %v1772 = vpop.permute.xlu0 %1771
    %v1774 = vmul.f32 %v1768, %v1772
    %1776 = vrot.lane.b32.xlu0 %v1774, 32
    %v1777 = vpop.permute.xlu0 %1776
    %v1779 = vadd.f32 %v1769, %v1777
    %v1780 = vtanh.pop %v1779
    %1782 = vrot.lane.b32.xlu0 %v1780, 64
    %v1783 = vpop.permute.xlu0 %1782
    %v1785 = vmul.f32 %v1768, %v1783
    %1787 = vrot.lane.b32.xlu0 %v1766, 32
    %v1788 = vpop.permute.xlu0 %1787
    %1790 = vst.msk [vmem:[#allocation3 + $0x2] sm:$0x3] %vm343, %v1788
    %1792 = vrot.lane.b32.xlu0 %v1785, 32
    %v1793 = vpop.permute.xlu0 %1792
    %1795 = vst.msk [vmem:[#allocation4 + $0xc] sm:$0x3] %vm343, %v1793
    %1796 = vrot.lane.b32.xlu0 %v1785, 64
    %v1797 = vpop.permute.xlu0 %1796
    %v1799 = vsel %vm353, %v1788, %v1797
    %v1801 = vsel %vm217, %v1799, 0
    %1803 = vmatprep.subr.mxu0 0.0
    %1804 = vmatpush1.msra.mxu0 0.0
    %1805 = vmatprep.subr.mxu0 0.0
    %1806 = vmatpush1.msra.mxu0 0.0
    %1807 = vmatprep.subr.mxu0 0.0
    %1808 = vmatpush1.msra.mxu0 0.0
    %1809 = vmatprep.subr.mxu0 0.0
    %1810 = vmatpush1.msra.mxu0 0.0
    %1811 = vmatprep.subr.mxu0 0.0
    %1812 = vmatpush1.msra.mxu0 0.0
    %1813 = vmatprep.subr.mxu0 0.0
    %1814 = vmatpush1.msra.mxu0 0.0
    %1815 = vmatprep.subr.mxu0 0.0
    %1816 = vmatpush1.msra.mxu0 0.0
    %1817 = vmatprep.subr.mxu0 0.0
    %1818 = vmatpush1.msra.mxu0 0.0
    %1819 = vmatprep.subr.mxu0 %v1529
    %1820 = vmatpush1.msra.mxu0 %v1528
    %1821 = vmatprep.subr.mxu0 %v1527
    %1822 = vmatpush1.msra.mxu0 %v1526
    %1823 = vmatprep.subr.mxu0 %v1525
    %1824 = vmatpush1.msra.mxu0 %v1524
    %1825 = vmatprep.subr.mxu0 %v1523
    %1826 = vmatpush1.msra.mxu0 %v1522
    %1827 = vmatprep.subr.mxu0 %v1521
    %1828 = vmatpush1.msra.mxu0 %v1520
    %1829 = vmatprep.subr.mxu0 %v1519
    %1830 = vmatpush1.msra.mxu0 %v1518
    %1831 = vmatprep.subr.mxu0 %v1517
    %1832 = vmatpush1.msra.mxu0 %v1516
    %1833 = vmatprep.subr.mxu0 %v1515
    %1834 = vmatpush1.msra.mxu0 %v1514
    %1835 = vmatprep.subr.mxu0 0.0
    %1836 = vmatpush2.msra.mxu0 0.0
    %1837 = vmatprep.subr.mxu0 0.0
    %1838 = vmatpush2.msra.mxu0 0.0
    %1839 = vmatprep.subr.mxu0 0.0
    %1840 = vmatpush2.msra.mxu0 0.0
    %1841 = vmatprep.subr.mxu0 0.0
    %1842 = vmatpush2.msra.mxu0 0.0
    %1843 = vmatprep.subr.mxu0 0.0
    %1844 = vmatpush2.msra.mxu0 0.0
    %1845 = vmatprep.subr.mxu0 0.0
    %1846 = vmatpush2.msra.mxu0 0.0
    %1847 = vmatprep.subr.mxu0 0.0
    %1848 = vmatpush2.msra.mxu0 0.0
    %1849 = vmatprep.subr.mxu0 0.0
    %1850 = vmatpush2.msra.mxu0 0.0
    %1851 = vmatprep.subr.mxu0 0.0
    %1852 = vmatpush2.msra.mxu0 0.0
    %1853 = vmatprep.subr.mxu0 0.0
    %1854 = vmatpush2.msra.mxu0 0.0
    %1855 = vmatprep.subr.mxu0 0.0
    %1856 = vmatpush2.msra.mxu0 0.0
    %1857 = vmatprep.subr.mxu0 0.0
    %1858 = vmatpush2.msra.mxu0 0.0
    %1859 = vmatprep.subr.mxu0 0.0
    %1860 = vmatpush2.msra.mxu0 0.0
    %1861 = vmatprep.subr.mxu0 0.0
    %1862 = vmatpush2.msra.mxu0 0.0
    %1863 = vmatprep.subr.mxu0 0.0
    %1864 = vmatpush2.msra.mxu0 0.0
    %1865 = vmatprep.subr.mxu0 0.0
    %1866 = vmatpush2.msra.mxu0 0.0
    %1867 = vmatprep.mubr.f32.mxu0 0.0
    %1868 = vmatmul.mubr.f32.gmra.mxu0 %v1801
    %v1869 = vpop.f32.mrf.mxu0
    %v1870 = vadd.f32 0.0, %v1869
    %v1871 = vpop.f32.mrf.mxu0
    %v1872 = vadd.f32 0.0, %v1871
    %1873 = vdwg.mxu0
    %v1874 = vld [vmem:[#allocation2] sm:$0x30]
    %v1876 = vrot.slane %v1874, 4
    %v1878 = vadd.f32 %v1870, %v1876
    %v1879 = vtanh.pop %v1878
    %v1880 = vld [vmem:[#allocation2 + $0x18] sm:$0xc]
    %v1882 = vrot.slane %v1880, 2
    %v1884 = vadd.f32 %v1872, %v1882
    %v1885 = vtanh.pop %v1884
    %v1886 = vmul.f32 %v1879, 0.5
    %v1887 = vadd.f32 %v1886, 0.5
    %v1888 = vmul.f32 %v1887, %v1760
    %1890 = vrot.lane.b32.xlu0 %v1879, 64
    %v1891 = vpop.permute.xlu0 %1890
    %v1893 = vmul.f32 %v1887, %v1891
    %1895 = vrot.lane.b32.xlu0 %v1893, 32
    %v1896 = vpop.permute.xlu0 %1895
    %v1898 = vadd.f32 %v1888, %v1896
    %v1899 = vtanh.pop %v1898
    %1901 = vrot.lane.b32.xlu0 %v1899, 64
    %v1902 = vpop.permute.xlu0 %1901
    %v1904 = vmul.f32 %v1887, %v1902
    %v1905 = vmul.f32 %v1885, 0.5
    %v1906 = vadd.f32 %v1905, 0.5
    %v1907 = vmul.f32 %v1906, %v1779
    %1909 = vrot.lane.b32.xlu0 %v1885, 64
    %v1910 = vpop.permute.xlu0 %1909
    %v1912 = vmul.f32 %v1906, %v1910
    %1914 = vrot.lane.b32.xlu0 %v1912, 32
    %v1915 = vpop.permute.xlu0 %1914
    %v1917 = vadd.f32 %v1907, %v1915
    %v1918 = vtanh.pop %v1917
    %1920 = vrot.lane.b32.xlu0 %v1918, 64
    %v1921 = vpop.permute.xlu0 %1920
    %v1923 = vmul.f32 %v1906, %v1921
    %1925 = vrot.lane.b32.xlu0 %v1904, 32
    %v1926 = vpop.permute.xlu0 %1925
    %1928 = vst.msk [vmem:[#allocation3 + $0x4] sm:$0x3] %vm343, %v1926
    %1930 = vrot.lane.b32.xlu0 %v1923, 32
    %v1931 = vpop.permute.xlu0 %1930
    %1933 = vst.msk [vmem:[#allocation4 + $0xa] sm:$0x3] %vm343, %v1931
    %1934 = vrot.lane.b32.xlu0 %v1923, 64
    %v1935 = vpop.permute.xlu0 %1934
    %v1937 = vsel %vm353, %v1926, %v1935
    %v1939 = vsel %vm217, %v1937, 0
    %1941 = vmatprep.subr.mxu0 0.0
    %1942 = vmatpush1.msra.mxu0 0.0
    %1943 = vmatprep.subr.mxu0 0.0
    %1944 = vmatpush1.msra.mxu0 0.0
    %1945 = vmatprep.subr.mxu0 0.0
    %1946 = vmatpush1.msra.mxu0 0.0
    %1947 = vmatprep.subr.mxu0 0.0
    %1948 = vmatpush1.msra.mxu0 0.0
    %1949 = vmatprep.subr.mxu0 0.0
    %1950 = vmatpush1.msra.mxu0 0.0
    %1951 = vmatprep.subr.mxu0 0.0
    %1952 = vmatpush1.msra.mxu0 0.0
    %1953 = vmatprep.subr.mxu0 0.0
    %1954 = vmatpush1.msra.mxu0 0.0
    %1955 = vmatprep.subr.mxu0 0.0
    %1956 = vmatpush1.msra.mxu0 0.0
    %1957 = vmatprep.subr.mxu0 %v1529
    %1958 = vmatpush1.msra.mxu0 %v1528
    %1959 = vmatprep.subr.mxu0 %v1527
    %1960 = vmatpush1.msra.mxu0 %v1526
    %1961 = vmatprep.subr.mxu0 %v1525
    %1962 = vmatpush1.msra.mxu0 %v1524
    %1963 = vmatprep.subr.mxu0 %v1523
    %1964 = vmatpush1.msra.mxu0 %v1522
    %1965 = vmatprep.subr.mxu0 %v1521
    %1966 = vmatpush1.msra.mxu0 %v1520
    %1967 = vmatprep.subr.mxu0 %v1519
    %1968 = vmatpush1.msra.mxu0 %v1518
    %1969 = vmatprep.subr.mxu0 %v1517
    %1970 = vmatpush1.msra.mxu0 %v1516
    %1971 = vmatprep.subr.mxu0 %v1515
    %1972 = vmatpush1.msra.mxu0 %v1514
    %1973 = vmatprep.subr.mxu0 0.0
    %1974 = vmatpush2.msra.mxu0 0.0
    %1975 = vmatprep.subr.mxu0 0.0
    %1976 = vmatpush2.msra.mxu0 0.0
    %1977 = vmatprep.subr.mxu0 0.0
    %1978 = vmatpush2.msra.mxu0 0.0
    %1979 = vmatprep.subr.mxu0 0.0
    %1980 = vmatpush2.msra.mxu0 0.0
    %1981 = vmatprep.subr.mxu0 0.0
    %1982 = vmatpush2.msra.mxu0 0.0
    %1983 = vmatprep.subr.mxu0 0.0
    %1984 = vmatpush2.msra.mxu0 0.0
    %1985 = vmatprep.subr.mxu0 0.0
    %1986 = vmatpush2.msra.mxu0 0.0
    %1987 = vmatprep.subr.mxu0 0.0
    %1988 = vmatpush2.msra.mxu0 0.0
    %1989 = vmatprep.subr.mxu0 0.0
    %1990 = vmatpush2.msra.mxu0 0.0
    %1991 = vmatprep.subr.mxu0 0.0
    %1992 = vmatpush2.msra.mxu0 0.0
    %1993 = vmatprep.subr.mxu0 0.0
    %1994 = vmatpush2.msra.mxu0 0.0
    %1995 = vmatprep.subr.mxu0 0.0
    %1996 = vmatpush2.msra.mxu0 0.0
    %1997 = vmatprep.subr.mxu0 0.0
    %1998 = vmatpush2.msra.mxu0 0.0
    %1999 = vmatprep.subr.mxu0 0.0
    %2000 = vmatpush2.msra.mxu0 0.0
    %2001 = vmatprep.subr.mxu0 0.0
    %2002 = vmatpush2.msra.mxu0 0.0
    %2003 = vmatprep.subr.mxu0 0.0
    %2004 = vmatpush2.msra.mxu0 0.0
    %2005 = vmatprep.mubr.f32.mxu0 0.0
    %2006 = vmatmul.mubr.f32.gmra.mxu0 %v1939
    %v2007 = vpop.f32.mrf.mxu0
    %v2008 = vadd.f32 0.0, %v2007
    %v2009 = vpop.f32.mrf.mxu0
    %v2010 = vadd.f32 0.0, %v2009
    %2011 = vdwg.mxu0
    %v2012 = vld [vmem:[#allocation2] sm:$0xc0]
    %v2014 = vrot.slane %v2012, 6
    %v2016 = vadd.f32 %v2008, %v2014
    %v2017 = vtanh.pop %v2016
    %v2018 = vld [vmem:[#allocation2 + $0x18] sm:$0x3]
    %v2019 = vadd.f32 %v2010, %v2018
    %v2020 = vtanh.pop %v2019
    %v2021 = vmul.f32 %v2017, 0.5
    %v2022 = vadd.f32 %v2021, 0.5
    %v2023 = vmul.f32 %v2022, %v1898
    %2025 = vrot.lane.b32.xlu0 %v2017, 64
    %v2026 = vpop.permute.xlu0 %2025
    %v2028 = vmul.f32 %v2022, %v2026
    %2030 = vrot.lane.b32.xlu0 %v2028, 32
    %v2031 = vpop.permute.xlu0 %2030
    %v2033 = vadd.f32 %v2023, %v2031
    %v2034 = vtanh.pop %v2033
    %2036 = vrot.lane.b32.xlu0 %v2034, 64
    %v2037 = vpop.permute.xlu0 %2036
    %v2039 = vmul.f32 %v2022, %v2037
    %v2040 = vmul.f32 %v2020, 0.5
    %v2041 = vadd.f32 %v2040, 0.5
    %v2042 = vmul.f32 %v2041, %v1917
    %2044 = vrot.lane.b32.xlu0 %v2020, 64
    %v2045 = vpop.permute.xlu0 %2044
    %v2047 = vmul.f32 %v2041, %v2045
    %2049 = vrot.lane.b32.xlu0 %v2047, 32
    %v2050 = vpop.permute.xlu0 %2049
    %v2052 = vadd.f32 %v2042, %v2050
    %v2053 = vtanh.pop %v2052
    %2055 = vrot.lane.b32.xlu0 %v2053, 64
    %v2056 = vpop.permute.xlu0 %2055
    %v2058 = vmul.f32 %v2041, %v2056
    %2060 = vrot.lane.b32.xlu0 %v2039, 32
    %v2061 = vpop.permute.xlu0 %2060
    %2063 = vst.msk [vmem:[#allocation3 + $0x6] sm:$0x3] %vm343, %v2061
    %2065 = vrot.lane.b32.xlu0 %v2058, 32
    %v2066 = vpop.permute.xlu0 %2065
    %2068 = vst.msk [vmem:[#allocation4 + $0x8] sm:$0x3] %vm343, %v2066
    %2069 = vrot.lane.b32.xlu0 %v2058, 64
    %v2070 = vpop.permute.xlu0 %2069
    %v2072 = vsel %vm353, %v2061, %v2070
    %v2074 = vsel %vm217, %v2072, 0
    %2076 = vmatprep.subr.mxu0 0.0
    %2077 = vmatpush1.msra.mxu0 0.0
    %2078 = vmatprep.subr.mxu0 0.0
    %2079 = vmatpush1.msra.mxu0 0.0
    %2080 = vmatprep.subr.mxu0 0.0
    %2081 = vmatpush1.msra.mxu0 0.0
    %2082 = vmatprep.subr.mxu0 0.0
    %2083 = vmatpush1.msra.mxu0 0.0
    %2084 = vmatprep.subr.mxu0 0.0
    %2085 = vmatpush1.msra.mxu0 0.0
    %2086 = vmatprep.subr.mxu0 0.0
    %2087 = vmatpush1.msra.mxu0 0.0
    %2088 = vmatprep.subr.mxu0 0.0
    %2089 = vmatpush1.msra.mxu0 0.0
    %2090 = vmatprep.subr.mxu0 0.0
    %2091 = vmatpush1.msra.mxu0 0.0
    %2092 = vmatprep.subr.mxu0 %v1529
    %2093 = vmatpush1.msra.mxu0 %v1528
    %2094 = vmatprep.subr.mxu0 %v1527
    %2095 = vmatpush1.msra.mxu0 %v1526
    %2096 = vmatprep.subr.mxu0 %v1525
    %2097 = vmatpush1.msra.mxu0 %v1524
    %2098 = vmatprep.subr.mxu0 %v1523
    %2099 = vmatpush1.msra.mxu0 %v1522
    %2100 = vmatprep.subr.mxu0 %v1521
    %2101 = vmatpush1.msra.mxu0 %v1520
    %2102 = vmatprep.subr.mxu0 %v1519
    %2103 = vmatpush1.msra.mxu0 %v1518
    %2104 = vmatprep.subr.mxu0 %v1517
    %2105 = vmatpush1.msra.mxu0 %v1516
    %2106 = vmatprep.subr.mxu0 %v1515
    %2107 = vmatpush1.msra.mxu0 %v1514
    %2108 = vmatprep.subr.mxu0 0.0
    %2109 = vmatpush2.msra.mxu0 0.0
    %2110 = vmatprep.subr.mxu0 0.0
    %2111 = vmatpush2.msra.mxu0 0.0
    %2112 = vmatprep.subr.mxu0 0.0
    %2113 = vmatpush2.msra.mxu0 0.0
    %2114 = vmatprep.subr.mxu0 0.0
    %2115 = vmatpush2.msra.mxu0 0.0
    %2116 = vmatprep.subr.mxu0 0.0
    %2117 = vmatpush2.msra.mxu0 0.0
    %2118 = vmatprep.subr.mxu0 0.0
    %2119 = vmatpush2.msra.mxu0 0.0
    %2120 = vmatprep.subr.mxu0 0.0
    %2121 = vmatpush2.msra.mxu0 0.0
    %2122 = vmatprep.subr.mxu0 0.0
    %2123 = vmatpush2.msra.mxu0 0.0
    %2124 = vmatprep.subr.mxu0 0.0
    %2125 = vmatpush2.msra.mxu0 0.0
    %2126 = vmatprep.subr.mxu0 0.0
    %2127 = vmatpush2.msra.mxu0 0.0
    %2128 = vmatprep.subr.mxu0 0.0
    %2129 = vmatpush2.msra.mxu0 0.0
    %2130 = vmatprep.subr.mxu0 0.0
    %2131 = vmatpush2.msra.mxu0 0.0
    %2132 = vmatprep.subr.mxu0 0.0
    %2133 = vmatpush2.msra.mxu0 0.0
    %2134 = vmatprep.subr.mxu0 0.0
    %2135 = vmatpush2.msra.mxu0 0.0
    %2136 = vmatprep.subr.mxu0 0.0
    %2137 = vmatpush2.msra.mxu0 0.0
    %2138 = vmatprep.subr.mxu0 0.0
    %2139 = vmatpush2.msra.mxu0 0.0
    %2140 = vmatprep.mubr.f32.mxu0 0.0
    %2141 = vmatmul.mubr.f32.gmra.mxu0 %v2074
    %v2142 = vpop.f32.mrf.mxu0
    %v2143 = vadd.f32 0.0, %v2142
    %v2144 = vpop.f32.mrf.mxu0
    %v2145 = vadd.f32 0.0, %v2144
    %2146 = vdwg.mxu0
    %v2147 = vld [vmem:[#allocation2 + $0x10] sm:$0x3]
    %v2148 = vadd.f32 %v2143, %v2147
    %v2149 = vtanh.pop %v2148
    %v2150 = vld [vmem:[#allocation2 + $0x8] sm:$0xc0]
    %v2152 = vrot.slane %v2150, 6
    %v2154 = vadd.f32 %v2145, %v2152
    %v2155 = vtanh.pop %v2154
    %v2156 = vmul.f32 %v2149, 0.5
    %v2157 = vadd.f32 %v2156, 0.5
    %v2158 = vmul.f32 %v2157, %v2033
    %2160 = vrot.lane.b32.xlu0 %v2149, 64
    %v2161 = vpop.permute.xlu0 %2160
    %v2163 = vmul.f32 %v2157, %v2161
    %2165 = vrot.lane.b32.xlu0 %v2163, 32
    %v2166 = vpop.permute.xlu0 %2165
    %v2168 = vadd.f32 %v2158, %v2166
    %v2169 = vtanh.pop %v2168
    %2171 = vrot.lane.b32.xlu0 %v2169, 64
    %v2172 = vpop.permute.xlu0 %2171
    %v2174 = vmul.f32 %v2157, %v2172
    %v2175 = vmul.f32 %v2155, 0.5
    %v2176 = vadd.f32 %v2175, 0.5
    %v2177 = vmul.f32 %v2176, %v2052
    %2179 = vrot.lane.b32.xlu0 %v2155, 64
    %v2180 = vpop.permute.xlu0 %2179
    %v2182 = vmul.f32 %v2176, %v2180
    %2184 = vrot.lane.b32.xlu0 %v2182, 32
    %v2185 = vpop.permute.xlu0 %2184
    %v2187 = vadd.f32 %v2177, %v2185
    %v2188 = vtanh.pop %v2187
    %2190 = vrot.lane.b32.xlu0 %v2188, 64
    %v2191 = vpop.permute.xlu0 %2190
    %v2193 = vmul.f32 %v2176, %v2191
    %2195 = vrot.lane.b32.xlu0 %v2174, 32
    %v2196 = vpop.permute.xlu0 %2195
    %2198 = vst.msk [vmem:[#allocation3 + $0x8] sm:$0x3] %vm343, %v2196
    %2200 = vrot.lane.b32.xlu0 %v2193, 32
    %v2201 = vpop.permute.xlu0 %2200
    %2203 = vst.msk [vmem:[#allocation4 + $0x6] sm:$0x3] %vm343, %v2201
    %2204 = vrot.lane.b32.xlu0 %v2193, 64
    %v2205 = vpop.permute.xlu0 %2204
    %v2207 = vsel %vm353, %v2196, %v2205
    %v2209 = vsel %vm217, %v2207, 0
    %2211 = vmatprep.subr.mxu0 0.0
    %2212 = vmatpush1.msra.mxu0 0.0
    %2213 = vmatprep.subr.mxu0 0.0
    %2214 = vmatpush1.msra.mxu0 0.0
    %2215 = vmatprep.subr.mxu0 0.0
    %2216 = vmatpush1.msra.mxu0 0.0
    %2217 = vmatprep.subr.mxu0 0.0
    %2218 = vmatpush1.msra.mxu0 0.0
    %2219 = vmatprep.subr.mxu0 0.0
    %2220 = vmatpush1.msra.mxu0 0.0
    %2221 = vmatprep.subr.mxu0 0.0
    %2222 = vmatpush1.msra.mxu0 0.0
    %2223 = vmatprep.subr.mxu0 0.0
    %2224 = vmatpush1.msra.mxu0 0.0
    %2225 = vmatprep.subr.mxu0 0.0
    %2226 = vmatpush1.msra.mxu0 0.0
    %2227 = vmatprep.subr.mxu0 %v1529
    %2228 = vmatpush1.msra.mxu0 %v1528
    %2229 = vmatprep.subr.mxu0 %v1527
    %2230 = vmatpush1.msra.mxu0 %v1526
    %2231 = vmatprep.subr.mxu0 %v1525
    %2232 = vmatpush1.msra.mxu0 %v1524
    %2233 = vmatprep.subr.mxu0 %v1523
    %2234 = vmatpush1.msra.mxu0 %v1522
    %2235 = vmatprep.subr.mxu0 %v1521
    %2236 = vmatpush1.msra.mxu0 %v1520
    %2237 = vmatprep.subr.mxu0 %v1519
    %2238 = vmatpush1.msra.mxu0 %v1518
    %2239 = vmatprep.subr.mxu0 %v1517
    %2240 = vmatpush1.msra.mxu0 %v1516
    %2241 = vmatprep.subr.mxu0 %v1515
    %2242 = vmatpush1.msra.mxu0 %v1514
    %2243 = vmatprep.subr.mxu0 0.0
    %2244 = vmatpush2.msra.mxu0 0.0
    %2245 = vmatprep.subr.mxu0 0.0
    %2246 = vmatpush2.msra.mxu0 0.0
    %2247 = vmatprep.subr.mxu0 0.0
    %2248 = vmatpush2.msra.mxu0 0.0
    %2249 = vmatprep.subr.mxu0 0.0
    %2250 = vmatpush2.msra.mxu0 0.0
    %2251 = vmatprep.subr.mxu0 0.0
    %2252 = vmatpush2.msra.mxu0 0.0
    %2253 = vmatprep.subr.mxu0 0.0
    %2254 = vmatpush2.msra.mxu0 0.0
    %2255 = vmatprep.subr.mxu0 0.0
    %2256 = vmatpush2.msra.mxu0 0.0
    %2257 = vmatprep.subr.mxu0 0.0
    %2258 = vmatpush2.msra.mxu0 0.0
    %2259 = vmatprep.subr.mxu0 0.0
    %2260 = vmatpush2.msra.mxu0 0.0
    %2261 = vmatprep.subr.mxu0 0.0
    %2262 = vmatpush2.msra.mxu0 0.0
    %2263 = vmatprep.subr.mxu0 0.0
    %2264 = vmatpush2.msra.mxu0 0.0
    %2265 = vmatprep.subr.mxu0 0.0
    %2266 = vmatpush2.msra.mxu0 0.0
    %2267 = vmatprep.subr.mxu0 0.0
    %2268 = vmatpush2.msra.mxu0 0.0
    %2269 = vmatprep.subr.mxu0 0.0
    %2270 = vmatpush2.msra.mxu0 0.0
    %2271 = vmatprep.subr.mxu0 0.0
    %2272 = vmatpush2.msra.mxu0 0.0
    %2273 = vmatprep.subr.mxu0 0.0
    %2274 = vmatpush2.msra.mxu0 0.0
    %2275 = vmatprep.mubr.f32.mxu0 0.0
    %2276 = vmatmul.mubr.f32.gmra.mxu0 %v2209
    %v2277 = vpop.f32.mrf.mxu0
    %v2278 = vadd.f32 0.0, %v2277
    %v2279 = vpop.f32.mrf.mxu0
    %v2280 = vadd.f32 0.0, %v2279
    %2281 = vdwg.mxu0
    %v2282 = vld [vmem:[#allocation2 + $0x10] sm:$0xc]
    %v2284 = vrot.slane %v2282, 2
    %v2286 = vadd.f32 %v2278, %v2284
    %v2287 = vtanh.pop %v2286
    %v2288 = vld [vmem:[#allocation2 + $0x8] sm:$0x30]
    %v2290 = vrot.slane %v2288, 4
    %v2292 = vadd.f32 %v2280, %v2290
    %v2293 = vtanh.pop %v2292
    %v2294 = vmul.f32 %v2287, 0.5
    %v2295 = vadd.f32 %v2294, 0.5
    %v2296 = vmul.f32 %v2295, %v2168
    %2298 = vrot.lane.b32.xlu0 %v2287, 64
    %v2299 = vpop.permute.xlu0 %2298
    %v2301 = vmul.f32 %v2295, %v2299
    %2303 = vrot.lane.b32.xlu0 %v2301, 32
    %v2304 = vpop.permute.xlu0 %2303
    %v2306 = vadd.f32 %v2296, %v2304
    %v2307 = vtanh.pop %v2306
    %2309 = vrot.lane.b32.xlu0 %v2307, 64
    %v2310 = vpop.permute.xlu0 %2309
    %v2312 = vmul.f32 %v2295, %v2310
    %v2313 = vmul.f32 %v2293, 0.5
    %v2314 = vadd.f32 %v2313, 0.5
    %v2315 = vmul.f32 %v2314, %v2187
    %2317 = vrot.lane.b32.xlu0 %v2293, 64
    %v2318 = vpop.permute.xlu0 %2317
    %v2320 = vmul.f32 %v2314, %v2318
    %2322 = vrot.lane.b32.xlu0 %v2320, 32
    %v2323 = vpop.permute.xlu0 %2322
    %v2325 = vadd.f32 %v2315, %v2323
    %v2326 = vtanh.pop %v2325
    %2328 = vrot.lane.b32.xlu0 %v2326, 64
    %v2329 = vpop.permute.xlu0 %2328
    %v2331 = vmul.f32 %v2314, %v2329
    %2333 = vrot.lane.b32.xlu0 %v2312, 32
    %v2334 = vpop.permute.xlu0 %2333
    %2336 = vst.msk [vmem:[#allocation3 + $0xa] sm:$0x3] %vm343, %v2334
    %2338 = vrot.lane.b32.xlu0 %v2331, 32
    %v2339 = vpop.permute.xlu0 %2338
    %2341 = vst.msk [vmem:[#allocation4 + $0x4] sm:$0x3] %vm343, %v2339
    %2342 = vrot.lane.b32.xlu0 %v2331, 64
    %v2343 = vpop.permute.xlu0 %2342
    %v2345 = vsel %vm353, %v2334, %v2343
    %v2347 = vsel %vm217, %v2345, 0
    %2349 = vmatprep.subr.mxu0 0.0
    %2350 = vmatpush1.msra.mxu0 0.0
    %2351 = vmatprep.subr.mxu0 0.0
    %2352 = vmatpush1.msra.mxu0 0.0
    %2353 = vmatprep.subr.mxu0 0.0
    %2354 = vmatpush1.msra.mxu0 0.0
    %2355 = vmatprep.subr.mxu0 0.0
    %2356 = vmatpush1.msra.mxu0 0.0
    %2357 = vmatprep.subr.mxu0 0.0
    %2358 = vmatpush1.msra.mxu0 0.0
    %2359 = vmatprep.subr.mxu0 0.0
    %2360 = vmatpush1.msra.mxu0 0.0
    %2361 = vmatprep.subr.mxu0 0.0
    %2362 = vmatpush1.msra.mxu0 0.0
    %2363 = vmatprep.subr.mxu0 0.0
    %2364 = vmatpush1.msra.mxu0 0.0
    %2365 = vmatprep.subr.mxu0 %v1529
    %2366 = vmatpush1.msra.mxu0 %v1528
    %2367 = vmatprep.subr.mxu0 %v1527
    %2368 = vmatpush1.msra.mxu0 %v1526
    %2369 = vmatprep.subr.mxu0 %v1525
    %2370 = vmatpush1.msra.mxu0 %v1524
    %2371 = vmatprep.subr.mxu0 %v1523
    %2372 = vmatpush1.msra.mxu0 %v1522
    %2373 = vmatprep.subr.mxu0 %v1521
    %2374 = vmatpush1.msra.mxu0 %v1520
    %2375 = vmatprep.subr.mxu0 %v1519
    %2376 = vmatpush1.msra.mxu0 %v1518
    %2377 = vmatprep.subr.mxu0 %v1517
    %2378 = vmatpush1.msra.mxu0 %v1516
    %2379 = vmatprep.subr.mxu0 %v1515
    %2380 = vmatpush1.msra.mxu0 %v1514
    %2381 = vmatprep.subr.mxu0 0.0
    %2382 = vmatpush2.msra.mxu0 0.0
    %2383 = vmatprep.subr.mxu0 0.0
    %2384 = vmatpush2.msra.mxu0 0.0
    %2385 = vmatprep.subr.mxu0 0.0
    %2386 = vmatpush2.msra.mxu0 0.0
    %2387 = vmatprep.subr.mxu0 0.0
    %2388 = vmatpush2.msra.mxu0 0.0
    %2389 = vmatprep.subr.mxu0 0.0
    %2390 = vmatpush2.msra.mxu0 0.0
    %2391 = vmatprep.subr.mxu0 0.0
    %2392 = vmatpush2.msra.mxu0 0.0
    %2393 = vmatprep.subr.mxu0 0.0
    %2394 = vmatpush2.msra.mxu0 0.0
    %2395 = vmatprep.subr.mxu0 0.0
    %2396 = vmatpush2.msra.mxu0 0.0
    %2397 = vmatprep.subr.mxu0 0.0
    %2398 = vmatpush2.msra.mxu0 0.0
    %2399 = vmatprep.subr.mxu0 0.0
    %2400 = vmatpush2.msra.mxu0 0.0
    %2401 = vmatprep.subr.mxu0 0.0
    %2402 = vmatpush2.msra.mxu0 0.0
    %2403 = vmatprep.subr.mxu0 0.0
    %2404 = vmatpush2.msra.mxu0 0.0
    %2405 = vmatprep.subr.mxu0 0.0
    %2406 = vmatpush2.msra.mxu0 0.0
    %2407 = vmatprep.subr.mxu0 0.0
    %2408 = vmatpush2.msra.mxu0 0.0
    %2409 = vmatprep.subr.mxu0 0.0
    %2410 = vmatpush2.msra.mxu0 0.0
    %2411 = vmatprep.subr.mxu0 0.0
    %2412 = vmatpush2.msra.mxu0 0.0
    %2413 = vmatprep.mubr.f32.mxu0 0.0
    %2414 = vmatmul.mubr.f32.gmra.mxu0 %v2347
    %v2415 = vpop.f32.mrf.mxu0
    %v2416 = vadd.f32 0.0, %v2415
    %v2417 = vpop.f32.mrf.mxu0
    %v2418 = vadd.f32 0.0, %v2417
    %2419 = vdwg.mxu0
    %v2420 = vld [vmem:[#allocation2 + $0x10] sm:$0x30]
    %v2422 = vrot.slane %v2420, 4
    %v2424 = vadd.f32 %v2416, %v2422
    %v2425 = vtanh.pop %v2424
    %v2426 = vld [vmem:[#allocation2 + $0x8] sm:$0xc]
    %v2428 = vrot.slane %v2426, 2
    %v2430 = vadd.f32 %v2418, %v2428
    %v2431 = vtanh.pop %v2430
    %v2432 = vmul.f32 %v2425, 0.5
    %v2433 = vadd.f32 %v2432, 0.5
    %v2434 = vmul.f32 %v2433, %v2306
    %2436 = vrot.lane.b32.xlu0 %v2425, 64
    %v2437 = vpop.permute.xlu0 %2436
    %v2439 = vmul.f32 %v2433, %v2437
    %2441 = vrot.lane.b32.xlu0 %v2439, 32
    %v2442 = vpop.permute.xlu0 %2441
    %v2444 = vadd.f32 %v2434, %v2442
    %v2445 = vtanh.pop %v2444
    %2447 = vrot.lane.b32.xlu0 %v2445, 64
    %v2448 = vpop.permute.xlu0 %2447
    %v2450 = vmul.f32 %v2433, %v2448
    %v2451 = vmul.f32 %v2431, 0.5
    %v2452 = vadd.f32 %v2451, 0.5
    %v2453 = vmul.f32 %v2452, %v2325
    %2455 = vrot.lane.b32.xlu0 %v2431, 64
    %v2456 = vpop.permute.xlu0 %2455
    %v2458 = vmul.f32 %v2452, %v2456
    %2460 = vrot.lane.b32.xlu0 %v2458, 32
    %v2461 = vpop.permute.xlu0 %2460
    %v2463 = vadd.f32 %v2453, %v2461
    %v2464 = vtanh.pop %v2463
    %2466 = vrot.lane.b32.xlu0 %v2464, 64
    %v2467 = vpop.permute.xlu0 %2466
    %v2469 = vmul.f32 %v2452, %v2467
    %2471 = vrot.lane.b32.xlu0 %v2450, 32
    %v2472 = vpop.permute.xlu0 %2471
    %2474 = vst.msk [vmem:[#allocation3 + $0xc] sm:$0x3] %vm343, %v2472
    %2476 = vrot.lane.b32.xlu0 %v2469, 32
    %v2477 = vpop.permute.xlu0 %2476
    %2479 = vst.msk [vmem:[#allocation4 + $0x2] sm:$0x3] %vm343, %v2477
    %2480 = vrot.lane.b32.xlu0 %v2469, 64
    %v2481 = vpop.permute.xlu0 %2480
    %v2483 = vsel %vm353, %v2472, %v2481
    %v2485 = vsel %vm217, %v2483, 0
    %2487 = vmatprep.subr.mxu0 0.0
    %2488 = vmatpush1.msra.mxu0 0.0
    %2489 = vmatprep.subr.mxu0 0.0
    %2490 = vmatpush1.msra.mxu0 0.0
    %2491 = vmatprep.subr.mxu0 0.0
    %2492 = vmatpush1.msra.mxu0 0.0
    %2493 = vmatprep.subr.mxu0 0.0
    %2494 = vmatpush1.msra.mxu0 0.0
    %2495 = vmatprep.subr.mxu0 0.0
    %2496 = vmatpush1.msra.mxu0 0.0
    %2497 = vmatprep.subr.mxu0 0.0
    %2498 = vmatpush1.msra.mxu0 0.0
    %2499 = vmatprep.subr.mxu0 0.0
    %2500 = vmatpush1.msra.mxu0 0.0
    %2501 = vmatprep.subr.mxu0 0.0
    %2502 = vmatpush1.msra.mxu0 0.0
    %2503 = vmatprep.subr.mxu0 %v1529
    %2504 = vmatpush1.msra.mxu0 %v1528
    %2505 = vmatprep.subr.mxu0 %v1527
    %2506 = vmatpush1.msra.mxu0 %v1526
    %2507 = vmatprep.subr.mxu0 %v1525
    %2508 = vmatpush1.msra.mxu0 %v1524
    %2509 = vmatprep.subr.mxu0 %v1523
    %2510 = vmatpush1.msra.mxu0 %v1522
    %2511 = vmatprep.subr.mxu0 %v1521
    %2512 = vmatpush1.msra.mxu0 %v1520
    %2513 = vmatprep.subr.mxu0 %v1519
    %2514 = vmatpush1.msra.mxu0 %v1518
    %2515 = vmatprep.subr.mxu0 %v1517
    %2516 = vmatpush1.msra.mxu0 %v1516
    %2517 = vmatprep.subr.mxu0 %v1515
    %2518 = vmatpush1.msra.mxu0 %v1514
    %2519 = vmatprep.subr.mxu0 0.0
    %2520 = vmatpush2.msra.mxu0 0.0
    %2521 = vmatprep.subr.mxu0 0.0
    %2522 = vmatpush2.msra.mxu0 0.0
    %2523 = vmatprep.subr.mxu0 0.0
    %2524 = vmatpush2.msra.mxu0 0.0
    %2525 = vmatprep.subr.mxu0 0.0
    %2526 = vmatpush2.msra.mxu0 0.0
    %2527 = vmatprep.subr.mxu0 0.0
    %2528 = vmatpush2.msra.mxu0 0.0
    %2529 = vmatprep.subr.mxu0 0.0
    %2530 = vmatpush2.msra.mxu0 0.0
    %2531 = vmatprep.subr.mxu0 0.0
    %2532 = vmatpush2.msra.mxu0 0.0
    %2533 = vmatprep.subr.mxu0 0.0
    %2534 = vmatpush2.msra.mxu0 0.0
    %2535 = vmatprep.subr.mxu0 0.0
    %2536 = vmatpush2.msra.mxu0 0.0
    %2537 = vmatprep.subr.mxu0 0.0
    %2538 = vmatpush2.msra.mxu0 0.0
    %2539 = vmatprep.subr.mxu0 0.0
    %2540 = vmatpush2.msra.mxu0 0.0
    %2541 = vmatprep.subr.mxu0 0.0
    %2542 = vmatpush2.msra.mxu0 0.0
    %2543 = vmatprep.subr.mxu0 0.0
    %2544 = vmatpush2.msra.mxu0 0.0
    %2545 = vmatprep.subr.mxu0 0.0
    %2546 = vmatpush2.msra.mxu0 0.0
    %2547 = vmatprep.subr.mxu0 0.0
    %2548 = vmatpush2.msra.mxu0 0.0
    %2549 = vmatprep.subr.mxu0 0.0
    %2550 = vmatpush2.msra.mxu0 0.0
    %2551 = vmatprep.mubr.f32.mxu0 0.0
    %2552 = vmatmul.mubr.f32.gmra.mxu0 %v2485
    %v2553 = vpop.f32.mrf.mxu0
    %v2554 = vadd.f32 0.0, %v2553
    %v2555 = vpop.f32.mrf.mxu0
    %v2556 = vadd.f32 0.0, %v2555
    %2557 = vdwg.mxu0
    %v2558 = vld [vmem:[#allocation2 + $0x10] sm:$0xc0]
    %v2560 = vrot.slane %v2558, 6
    %v2562 = vadd.f32 %v2554, %v2560
    %v2563 = vtanh.pop %v2562
    %v2564 = vld [vmem:[#allocation2 + $0x8] sm:$0x3]
    %v2565 = vadd.f32 %v2556, %v2564
    %v2566 = vtanh.pop %v2565
    %v2567 = vmul.f32 %v2563, 0.5
    %v2568 = vadd.f32 %v2567, 0.5
    %v2569 = vmul.f32 %v2568, %v2444
    %2571 = vrot.lane.b32.xlu0 %v2563, 64
    %v2572 = vpop.permute.xlu0 %2571
    %v2574 = vmul.f32 %v2568, %v2572
    %2576 = vrot.lane.b32.xlu0 %v2574, 32
    %v2577 = vpop.permute.xlu0 %2576
    %v2579 = vadd.f32 %v2569, %v2577
    %v2580 = vtanh.pop %v2579
    %2582 = vrot.lane.b32.xlu0 %v2580, 64
    %v2583 = vpop.permute.xlu0 %2582
    %v2585 = vmul.f32 %v2568, %v2583
    %v2586 = vmul.f32 %v2566, 0.5
    %v2587 = vadd.f32 %v2586, 0.5
    %v2588 = vmul.f32 %v2587, %v2463
    %2590 = vrot.lane.b32.xlu0 %v2566, 64
    %v2591 = vpop.permute.xlu0 %2590
    %v2593 = vmul.f32 %v2587, %v2591
    %2595 = vrot.lane.b32.xlu0 %v2593, 32
    %v2596 = vpop.permute.xlu0 %2595
    %v2598 = vadd.f32 %v2588, %v2596
    %v2599 = vtanh.pop %v2598
    %2601 = vrot.lane.b32.xlu0 %v2599, 64
    %v2602 = vpop.permute.xlu0 %2601
    %v2604 = vmul.f32 %v2587, %v2602
    %2606 = vrot.lane.b32.xlu0 %v2585, 32
    %v2607 = vpop.permute.xlu0 %2606
    %2609 = vst.msk [vmem:[#allocation3 + $0xe] sm:$0x3] %vm343, %v2607
    %2611 = vrot.lane.b32.xlu0 %v2604, 32
    %v2612 = vpop.permute.xlu0 %2611
    %2614 = vst.msk [vmem:[#allocation4] sm:$0x3] %vm343, %v2612
    %v2615 = vld [vmem:[#allocation3] sm:$0xff]
    %v2616 = vld [vmem:[#allocation3 + $0x8] sm:$0xff]
    %v2617 = vld [vmem:[%s8] sm:$0x1]
    %v2619 = vlaneseq
    %v2620 = vshrl.u32 %v2619, 7
    %v2621 = vsub.s32 0, %v2620
    %v2622 = vrot.slane %v2617, %v2621
    %v2624 = vmul.f32 %v2615, %v2622
    %v2625 = vmul.f32 %v2616, %v2622
    %v2626 = vsel %vm353, %v2624, 0.0
    %2627 = vadd.xlane.f32.xlu0 %v2626
    %v2628 = vpop.xlane.xlu0 %2627
    %v2629 = vsel %vm353, %v2625, 0.0
    %2630 = vadd.xlane.f32.xlu0 %v2629
    %v2631 = vpop.xlane.xlu0 %2630
    %v2632 = vld [vmem:[#allocation4] sm:$0xff]
    %v2633 = vld [vmem:[#allocation4 + $0x8] sm:$0xff]
    %v2634 = vld [vmem:[%s9] sm:$0x1]
    %v2636 = vlaneseq
    %v2637 = vshrl.u32 %v2636, 7
    %v2638 = vsub.s32 0, %v2637
    %v2639 = vrot.slane %v2634, %v2638
    %v2641 = vmul.f32 %v2632, %v2639
    %v2642 = vmul.f32 %v2633, %v2639
    %v2643 = vsel %vm353, %v2641, 0.0
    %2644 = vadd.xlane.f32.xlu0 %v2643
    %v2645 = vpop.xlane.xlu0 %2644
    %v2646 = vsel %vm353, %v2642, 0.0
    %2647 = vadd.xlane.f32.xlu0 %v2646
    %v2648 = vpop.xlane.xlu0 %2647
    %v2649 = vadd.f32 %v2628, %v2645
    %v2650 = vadd.f32 %v2631, %v2648
    %v2651 = vld [vmem:[#allocation5] sm:$0x1]
    %v2653 = vlaneseq
    %v2654 = vshrl.u32 %v2653, 7
    %v2655 = vsub.s32 0, %v2654
    %v2656 = vrot.slane %v2651, %v2655
    %v2658 = vadd.f32 %v2649, %v2656
    %v2659 = vadd.f32 %v2650, %v2656
    %v2660 = vxor.u32 %v2658, 2147483648
    %v2661 = vxor.u32 %v2659, 2147483648
    %v2662 = vmul.f32 %v2660, 1.442695
    %v2663 = vpow.pop %v2662
    %v2664 = vmul.f32 %v2661, 1.442695
    %v2665 = vpow.pop %v2664
    %v2666 = vadd.f32 %v2663, 1.0
    %v2667 = vadd.f32 %v2665, 1.0
    %v2668 = vrcp.pop %v2666
    %v2669 = vmul.f32 1.0, %v2668
    %v2670 = vrcp.pop %v2667
    %v2671 = vmul.f32 1.0, %v2670
    %vm2672 = vcmask 7168
    %2673 = vst.msk [vmem:[%s11] sm:$0xff] %vm2672, %v2669
    %2674 = vst.msk [vmem:[%s11 + $0x8] sm:$0xff] %vm2672, %v2671
    // Predicated region
    $region62: #{birnn_char_tagger_forward.1} parent=1 // pred_check
      _
    $region63: #{birnn_char_tagger_forward.1} parent=1 // pred_check_branch
      %2676 = sbr.rel (0) target = $region65
    $region64: #{birnn_char_tagger_forward.1} parent=1 // pred_region
      _
    $region65: #{birnn_char_tagger_forward.1} parent=1 // pred_fallthru
      _
    // Predicated region
    $region66: #{birnn_char_tagger_forward.1} parent=1 // pred_check
      _
    $region67: #{birnn_char_tagger_forward.1} parent=1 // pred_check_branch
      %2678 = sbr.rel (0) target = $region69
    $region68: #{birnn_char_tagger_forward.1} parent=1 // pred_region
      _
    $region69: #{birnn_char_tagger_forward.1} parent=1 // pred_fallthru
      _
    %2679 = vsyncpa [#allocation7], 1
    %2680 = vsyncpa [#allocation9], 1
    %2681 = vsyncpa [#allocation12], 1

</llo_original>
